<compile_context>
chip_gen: v7x
topology: tpu7x:2x2x1
jax: 0.10.0
libtpu: 0.0.40
codegen_flags: <defaults>
</compile_context>

<pallas_src>
import functools

import jax
import jax.numpy as jnp
from jax.experimental import pallas as pl
from jax.experimental.pallas import tpu as pltpu

LANE = 128
OUT_PAD = 128       # lane-dense padded width of the 5-way classifier output
TB_MAX = 256        # max batch-tile rows per grid step


def _round_up(n, m):
    return ((n + m - 1) // m) * m


def _mlp_kernel(x_ref, w1_ref, t1_ref, w2_ref, t2_ref, w3_ref, b3_ref,
                out_ref, f_ref):
    # Layer 1: bf16 matmul on MXU (f32 accumulation) + folded-BN shift + ReLU.
    # (BN scale is already folded into the w1/w2 columns at prep time; x is
    # already bf16 and zero-padded along the contraction dim.)
    h1 = jnp.dot(x_ref[...], w1_ref[...], preferred_element_type=jnp.float32)
    h1 = jnp.maximum(h1 + t1_ref[...], 0.0)

    # Layer 2: same structure.
    h2 = jnp.dot(h1.astype(jnp.bfloat16), w2_ref[...],
                 preferred_element_type=jnp.float32)
    h2 = jnp.maximum(h2 + t2_ref[...], 0.0)

    # f = x.clone() after the second ReLU (+ identity eval-mode Dropout).
    f_ref[...] = h2

    # Layer 3: linear + sigmoid over the lane-dense (padded to 128) output.
    # exp on EUP; approx reciprocal also rides the EUP slot.  exp(-x) -> inf
    # for very negative logits still yields the correct 0.0.
    logits = jnp.dot(h2.astype(jnp.bfloat16), w3_ref[...],
                     preferred_element_type=jnp.float32) + b3_ref[...]
    out_ref[...] = pl.reciprocal(1.0 + jnp.exp(-logits), approx=True)


def prepare_params(params, eps=1e-5):
    """One-time param prep (outside the hot path).

    Folds eval-mode BatchNorm into the linear weights:
        bn(lin(x)) = (x @ W.T) * s + t,  s = gamma/sqrt(var+eps),
                                         t = (b - mean) * s + beta
    Stores weights pre-transposed as [in, out] with the scale folded into the
    output columns, zero-pads layer-1's contraction dim to a lane multiple,
    zero-pads layer-3's output dim to 128 lanes (lane-dense stores), and casts
    weights to bf16 (kernel accumulates in f32).
    """
    w1, b1, g1, be1, m1, v1 = params["l1"]
    w2, b2, g2, be2, m2, v2 = params["l2"]
    w3, b3 = params["l3"]

    s1 = g1 / jnp.sqrt(v1 + eps)
    t1 = (b1 - m1) * s1 + be1
    s2 = g2 / jnp.sqrt(v2 + eps)
    t2 = (b2 - m2) * s2 + be2

    f_in = w1.shape[1]
    f_pad = _round_up(f_in, LANE)                      # 1608 -> 1664 (13 x 128)

    w1_eff = w1.T * s1[None, :]                        # [f_in, 512], scale folded
    w1_eff = jnp.pad(w1_eff, ((0, f_pad - f_in), (0, 0)))
    w2_eff = w2.T * s2[None, :]                        # [512, 256]

    n_out = w3.shape[0]                                # 5
    w3_eff = jnp.pad(w3.T, ((0, 0), (0, OUT_PAD - n_out)))   # [256, 128]
    b3_eff = jnp.pad(b3, (0, OUT_PAD - n_out))               # [128]

    H1, H2 = w1.shape[0], w2.shape[0]
    return {
        "w1": w1_eff.astype(jnp.bfloat16),
        "t1": t1.reshape(1, H1).astype(jnp.float32),
        "w2": w2_eff.astype(jnp.bfloat16),
        "t2": t2.reshape(1, H2).astype(jnp.float32),
        "w3": w3_eff.astype(jnp.bfloat16),
        "b3": b3_eff.reshape(1, OUT_PAD).astype(jnp.float32),
    }


def clip_head_forward(x, prepared, *, n_out=5):
    """x: [B, input_feature] f32 -> (probs [B, n_out] f32, features [B, 256] f32)."""
    B, f_in = x.shape
    f_pad = prepared["w1"].shape[0]
    H1 = prepared["t1"].shape[1]
    H2 = prepared["t2"].shape[1]

    # Batch tile: multiple of 8 sublanes, capped at TB_MAX rows per step.
    tb = min(TB_MAX, _round_up(B, 8))
    b_pad = _round_up(B, tb)
    n_tiles = b_pad // tb

    # Pad (batch + contraction dim) and cast to bf16 in one fused XLA op.
    # Padded contraction columns hit zero-padded w1 rows -> contribute 0.
    x_p = jnp.pad(x.astype(jnp.bfloat16), ((0, b_pad - B), (0, f_pad - f_in)))

    batch_spec = lambda shape: pl.BlockSpec(shape, lambda i: (i, 0))
    const_spec = lambda shape: pl.BlockSpec(shape, lambda i: (0, 0))

    out_probs, out_feat = pl.pallas_call(
        _mlp_kernel,
        out_shape=(
            jax.ShapeDtypeStruct((b_pad, OUT_PAD), jnp.float32),
            jax.ShapeDtypeStruct((b_pad, H2), jnp.float32),
        ),
        grid_spec=pltpu.PrefetchScalarGridSpec(
            num_scalar_prefetch=0,
            grid=(n_tiles,),
            in_specs=[
                batch_spec((tb, f_pad)),                 # x tile
                const_spec((f_pad, H1)), const_spec((1, H1)),   # w1, t1
                const_spec((H1, H2)), const_spec((1, H2)),      # w2, t2
                const_spec((H2, OUT_PAD)), const_spec((1, OUT_PAD)),  # w3, b3
            ],
            out_specs=[
                batch_spec((tb, OUT_PAD)),               # lane-dense probs
                batch_spec((tb, H2)),                    # features
            ],
        ),
        compiler_params=pltpu.CompilerParams(
            dimension_semantics=("parallel",),           # megacore batch split
        ),
    )(x_p, prepared["w1"], prepared["t1"],
      prepared["w2"], prepared["t2"],
      prepared["w3"], prepared["b3"])

    return out_probs[:B, :n_out], out_feat[:B]


def init_params(key, input_feature=1608):
    """Deterministic init mirroring the PyTorch module's parameter shapes."""
    def linear(key, fan_in, fan_out):
        kw, kb = jax.random.split(key)
        bound = 1.0 / jnp.sqrt(fan_in)
        w = jax.random.uniform(kw, (fan_out, fan_in), jnp.float32, -bound, bound)
        b = jax.random.uniform(kb, (fan_out,), jnp.float32, -bound, bound)
        return w, b

    def bn(key, n):
        km, kv = jax.random.split(key)
        gamma = jnp.ones((n,), jnp.float32)
        beta = jnp.zeros((n,), jnp.float32)
        # Non-trivial running stats so BN actually does something.
        mean = 0.1 * jax.random.normal(km, (n,), jnp.float32)
        var = 1.0 + 0.1 * jax.random.uniform(kv, (n,), jnp.float32)
        return gamma, beta, mean, var

    k1, k2, k3, k4, k5 = jax.random.split(key, 5)
    w1, b1 = linear(k1, input_feature, 512)
    g1, be1, m1, v1 = bn(k2, 512)
    w2, b2 = linear(k3, 512, 256)
    g2, be2, m2, v2 = bn(k4, 256)
    w3, b3 = linear(k5, 256, 5)
    return {
        "l1": (w1, b1, g1, be1, m1, v1),
        "l2": (w2, b2, g2, be2, m2, v2),
        "l3": (w3, b3),
    }


def reference_forward(x, params):
    """Pure-JAX f32 reference (eval-mode PyTorch semantics)."""
    eps = 1e-5
    w1, b1, g1, be1, m1, v1 = params["l1"]
    w2, b2, g2, be2, m2, v2 = params["l2"]
    w3, b3 = params["l3"]
    h = x @ w1.T + b1
    h = (h - m1) / jnp.sqrt(v1 + eps) * g1 + be1
    h = jnp.maximum(h, 0.0)
    h = h @ w2.T + b2
    h = (h - m2) / jnp.sqrt(v2 + eps) * g2 + be2
    h = jnp.maximum(h, 0.0)
    f = h
    out = jax.nn.sigmoid(h @ w3.T + b3)
    return out, f


if __name__ == "__main__":
    key = jax.random.PRNGKey(0)
    kx, kp = jax.random.split(key)

    B, F_IN = 8, 1608  # small batch, module's default feature width
    x = jax.random.normal(kx, (B, F_IN), jnp.float32)
    params = init_params(kp, input_feature=F_IN)

    prepared = prepare_params(params)            # one-time, off the hot path
    forward = jax.jit(functools.partial(clip_head_forward, n_out=5))

    probs, feats = forward(x, prepared)
    probs, feats = jax.block_until_ready((probs, feats))

    ref_probs, ref_feats = reference_forward(x, params)
    assert probs.shape == (B, 5) and feats.shape == (B, 256)
    # Tolerances relaxed for bf16 x/weights (f32 accumulation) + approx recip.
    assert jnp.allclose(probs, ref_probs, atol=2e-2, rtol=2e-2), (
        float(jnp.max(jnp.abs(probs - ref_probs))))
    assert jnp.allclose(feats, ref_feats, atol=5e-2, rtol=5e-2), (
        float(jnp.max(jnp.abs(feats - ref_feats))))

    print("KERNEL_OK")
</pallas_src>

<mosaic_0001>
module attributes {stable_mosaic.version = 11 : i64} {
  func.func @_mlp_kernel(%arg0: i32, %arg1: memref<8x1664xbf16, #tpu.memory_space<vmem>>, %arg2: memref<1664x512xbf16, #tpu.memory_space<vmem>>, %arg3: memref<1x512xf32, #tpu.memory_space<vmem>>, %arg4: memref<512x256xbf16, #tpu.memory_space<vmem>>, %arg5: memref<1x256xf32, #tpu.memory_space<vmem>>, %arg6: memref<256x128xbf16, #tpu.memory_space<vmem>>, %arg7: memref<1x128xf32, #tpu.memory_space<vmem>>, %arg8: memref<8x128xf32, #tpu.memory_space<vmem>>, %arg9: memref<8x256xf32, #tpu.memory_space<vmem>>) attributes {dimension_semantics = [#tpu.dimension_semantics<parallel>], iteration_bounds = array<i64: 1>, scalar_prefetch = 0 : i64, scratch_operands = 0 : i64, tpu.core_type = #tpu.core_type<tc>, window_params = [{transform_indices = @transform_0, window_bounds = array<i64: 8, 1664>}, {pipeline_mode = #tpu.pipeline_mode<synchronous>, transform_indices = @transform_1, window_bounds = array<i64: 1664, 512>}, {pipeline_mode = #tpu.pipeline_mode<synchronous>, transform_indices = @transform_2, window_bounds = array<i64: 1, 512>}, {pipeline_mode = #tpu.pipeline_mode<synchronous>, transform_indices = @transform_3, window_bounds = array<i64: 512, 256>}, {pipeline_mode = #tpu.pipeline_mode<synchronous>, transform_indices = @transform_4, window_bounds = array<i64: 1, 256>}, {pipeline_mode = #tpu.pipeline_mode<synchronous>, transform_indices = @transform_5, window_bounds = array<i64: 256, 128>}, {pipeline_mode = #tpu.pipeline_mode<synchronous>, transform_indices = @transform_6, window_bounds = array<i64: 1, 128>}, {transform_indices = @transform_7, window_bounds = array<i64: 8, 128>}, {transform_indices = @transform_8, window_bounds = array<i64: 8, 256>}]} {
    %c0 = arith.constant 0 : index
    %c0_0 = arith.constant 0 : index
    %0 = vector.load %arg1[%c0, %c0_0] : memref<8x1664xbf16, #tpu.memory_space<vmem>>, vector<8x1664xbf16>
    %c0_1 = arith.constant 0 : index
    %c0_2 = arith.constant 0 : index
    %1 = vector.load %arg2[%c0_1, %c0_2] : memref<1664x512xbf16, #tpu.memory_space<vmem>>, vector<1664x512xbf16>
    %cst = arith.constant dense<0.000000e+00> : vector<8x512xf32>
    %2 = tpu.matmul %0, %1, %cst {dimension_numbers = #tpu.dot_dimension_numbers<[1], [0], [0], [1], [0, 0, 1, 1], [], []>} : vector<8x1664xbf16>, vector<1664x512xbf16>, vector<8x512xf32> -> vector<8x512xf32>
    %c0_3 = arith.constant 0 : index
    %c0_4 = arith.constant 0 : index
    %3 = vector.load %arg3[%c0_3, %c0_4] : memref<1x512xf32, #tpu.memory_space<vmem>>, vector<1x512xf32>
    %4 = vector.broadcast %3 : vector<1x512xf32> to vector<8x512xf32>
    %5 = arith.addf %2, %4 : vector<8x512xf32>
    %cst_5 = arith.constant 0.000000e+00 : f32
    %6 = vector.broadcast %cst_5 : f32 to vector<8x512xf32>
    %7 = arith.maximumf %5, %6 : vector<8x512xf32>
    %8 = arith.truncf %7 : vector<8x512xf32> to vector<8x512xbf16>
    %c0_6 = arith.constant 0 : index
    %c0_7 = arith.constant 0 : index
    %9 = vector.load %arg4[%c0_6, %c0_7] : memref<512x256xbf16, #tpu.memory_space<vmem>>, vector<512x256xbf16>
    %cst_8 = arith.constant dense<0.000000e+00> : vector<8x256xf32>
    %10 = tpu.matmul %8, %9, %cst_8 {dimension_numbers = #tpu.dot_dimension_numbers<[1], [0], [0], [1], [0, 0, 1, 1], [], []>} : vector<8x512xbf16>, vector<512x256xbf16>, vector<8x256xf32> -> vector<8x256xf32>
    %c0_9 = arith.constant 0 : index
    %c0_10 = arith.constant 0 : index
    %11 = vector.load %arg5[%c0_9, %c0_10] : memref<1x256xf32, #tpu.memory_space<vmem>>, vector<1x256xf32>
    %12 = vector.broadcast %11 : vector<1x256xf32> to vector<8x256xf32>
    %13 = arith.addf %10, %12 : vector<8x256xf32>
    %cst_11 = arith.constant 0.000000e+00 : f32
    %14 = vector.broadcast %cst_11 : f32 to vector<8x256xf32>
    %15 = arith.maximumf %13, %14 : vector<8x256xf32>
    %c0_12 = arith.constant 0 : index
    %c0_13 = arith.constant 0 : index
    %16 = vector.load %arg9[%c0_12, %c0_13] : memref<8x256xf32, #tpu.memory_space<vmem>>, vector<8x256xf32>
    tpu.vector_store %arg9[%c0_12, %c0_13], %15 {strides = array<i32>} : memref<8x256xf32, #tpu.memory_space<vmem>>, vector<8x256xf32>,
    %17 = arith.truncf %15 : vector<8x256xf32> to vector<8x256xbf16>
    %c0_14 = arith.constant 0 : index
    %c0_15 = arith.constant 0 : index
    %18 = vector.load %arg6[%c0_14, %c0_15] : memref<256x128xbf16, #tpu.memory_space<vmem>>, vector<256x128xbf16>
    %cst_16 = arith.constant dense<0.000000e+00> : vector<8x128xf32>
    %19 = tpu.matmul %17, %18, %cst_16 {dimension_numbers = #tpu.dot_dimension_numbers<[1], [0], [0], [1], [0, 0, 1, 1], [], []>} : vector<8x256xbf16>, vector<256x128xbf16>, vector<8x128xf32> -> vector<8x128xf32>
    %c0_17 = arith.constant 0 : index
    %c0_18 = arith.constant 0 : index
    %20 = vector.load %arg7[%c0_17, %c0_18] : memref<1x128xf32, #tpu.memory_space<vmem>>, vector<1x128xf32>
    %21 = vector.broadcast %20 : vector<1x128xf32> to vector<8x128xf32>
    %22 = arith.addf %19, %21 : vector<8x128xf32>
    %cst_19 = arith.constant 0.000000e+00 : f32
    %23 = vector.broadcast %cst_19 : f32 to vector<8x128xf32>
    %24 = arith.subf %23, %22 : vector<8x128xf32>
    %25 = math.exp %24 : vector<8x128xf32>
    %cst_20 = arith.constant 1.000000e+00 : f32
    %26 = vector.broadcast %cst_20 : f32 to vector<8x128xf32>
    %27 = arith.addf %26, %25 : vector<8x128xf32>
    %28 = tpu.reciprocal %27 {approx = true} : vector<8x128xf32> -> vector<8x128xf32>
    %c0_21 = arith.constant 0 : index
    %c0_22 = arith.constant 0 : index
    %29 = vector.load %arg8[%c0_21, %c0_22] : memref<8x128xf32, #tpu.memory_space<vmem>>, vector<8x128xf32>
    tpu.vector_store %arg8[%c0_21, %c0_22], %28 {strides = array<i32>} : memref<8x128xf32, #tpu.memory_space<vmem>>, vector<8x128xf32>,
    return
  }
  func.func @transform_0(%arg0: i32) -> (i32, i32) {
    %c0_i32 = arith.constant 0 : i32
    %c0_i32_0 = arith.constant 0 : i32
    return %arg0, %c0_i32 : i32, i32
  }
  func.func @transform_1(%arg0: i32) -> (i32, i32) {
    %c0_i32 = arith.constant 0 : i32
    %c0_i32_0 = arith.constant 0 : i32
    %c0_i32_1 = arith.constant 0 : i32
    return %c0_i32, %c0_i32_0 : i32, i32
  }
  func.func @transform_2(%arg0: i32) -> (i32, i32) {
    %c0_i32 = arith.constant 0 : i32
    %c0_i32_0 = arith.constant 0 : i32
    %c0_i32_1 = arith.constant 0 : i32
    return %c0_i32, %c0_i32_0 : i32, i32
  }
  func.func @transform_3(%arg0: i32) -> (i32, i32) {
    %c0_i32 = arith.constant 0 : i32
    %c0_i32_0 = arith.constant 0 : i32
    %c0_i32_1 = arith.constant 0 : i32
    return %c0_i32, %c0_i32_0 : i32, i32
  }
  func.func @transform_4(%arg0: i32) -> (i32, i32) {
    %c0_i32 = arith.constant 0 : i32
    %c0_i32_0 = arith.constant 0 : i32
    %c0_i32_1 = arith.constant 0 : i32
    return %c0_i32, %c0_i32_0 : i32, i32
  }
  func.func @transform_5(%arg0: i32) -> (i32, i32) {
    %c0_i32 = arith.constant 0 : i32
    %c0_i32_0 = arith.constant 0 : i32
    %c0_i32_1 = arith.constant 0 : i32
    return %c0_i32, %c0_i32_0 : i32, i32
  }
  func.func @transform_6(%arg0: i32) -> (i32, i32) {
    %c0_i32 = arith.constant 0 : i32
    %c0_i32_0 = arith.constant 0 : i32
    %c0_i32_1 = arith.constant 0 : i32
    return %c0_i32, %c0_i32_0 : i32, i32
  }
  func.func @transform_7(%arg0: i32) -> (i32, i32) {
    %c0_i32 = arith.constant 0 : i32
    %c0_i32_0 = arith.constant 0 : i32
    return %arg0, %c0_i32 : i32, i32
  }
  func.func @transform_8(%arg0: i32) -> (i32, i32) {
    %c0_i32 = arith.constant 0 : i32
    %c0_i32_0 = arith.constant 0 : i32
    return %arg0, %c0_i32 : i32, i32
  }
}

</mosaic_0001>

<llo_original>
// kernel: clip_head_forward.1
$region0: #{clip_head_forward.1}
  #allocation0 [shape = 'u32[]', space=smem, size = 0x4, offset = 0x4, fixed_abs, tag = 'smem constant byte address 0x4 - core index']
  #allocation1 [shape = 'u32[144,128]{1,0:T(1,128)}', space=vmem, size = 0x12000, scoped, tag = 'internal scratch']
  %s0 = inlined_call_operand.vmem [shape: bf16[8,1664], index: 0, kind: input, shape index: {}]
  %s1 = inlined_call_operand.hbm [shape: bf16[1664,512], index: 1, kind: input, shape index: {}]
  %s2 = inlined_call_operand.hbm [shape: f32[1,512], index: 2, kind: input, shape index: {}]
  %s3 = inlined_call_operand.hbm [shape: bf16[512,256], index: 3, kind: input, shape index: {}]
  %s4 = inlined_call_operand.hbm [shape: f32[1,256], index: 4, kind: input, shape index: {}]
  %s5 = inlined_call_operand.hbm [shape: bf16[256,128], index: 5, kind: input, shape index: {}]
  %s6 = inlined_call_operand.hbm [shape: f32[1,128], index: 6, kind: input, shape index: {}]
  %s7 = inlined_call_operand.hbm [shape: f32[8,128], index: 7, kind: output, shape index: {0}]
  %s8 = inlined_call_operand.hbm [shape: f32[8,256], index: 8, kind: output, shape index: {1}]
  %9 = xla_tuple %s7, %s8
  %s10 = sld [smem:[#allocation0]]
  $region70: #{clip_head_forward.1} parent=0
    _
  %s12 = ssub.s32 1, %s10
  %s13 = scalar_select 0, %s12, %s10
  $region1: #{clip_head_forward.1} parent=0
    #allocation2 [shape = 'u8[1703936]{0}', space=vmem, size = 0x1a0000, scoped, tag = 'input window, operand 1, single buffered']
    #allocation3 [shape = 's32[1]{0}', space=sflag, size = 0x4, scoped, tag = 'scoped memory for clip_head_forward.1']
    #allocation4 [shape = 's32[1]{0}', space=sflag, size = 0x4, scoped, tag = 'scoped memory for clip_head_forward.1']
    #allocation5 [shape = 'u8[2048]{0}', space=vmem, size = 0x800, scoped, tag = 'input window, operand 2, single buffered']
    #allocation6 [shape = 's32[1]{0}', space=sflag, size = 0x4, scoped, tag = 'scoped memory for clip_head_forward.1']
    #allocation7 [shape = 'u8[262144]{0}', space=vmem, size = 0x40000, scoped, tag = 'input window, operand 3, single buffered']
    #allocation8 [shape = 'u8[1024]{0}', space=vmem, size = 0x400, scoped, tag = 'input window, operand 4, single buffered']
    #allocation9 [shape = 's32[1]{0}', space=sflag, size = 0x4, scoped, tag = 'scoped memory for clip_head_forward.1']
    #allocation10 [shape = 'u8[65536]{0}', space=vmem, size = 0x10000, scoped, tag = 'input window, operand 5, single buffered']
    #allocation11 [shape = 'u8[512]{0}', space=vmem, size = 0x400, scoped, tag = 'input window, operand 6, single buffered']
    #allocation12 [shape = 's32[1]{0}', space=sflag, size = 0x4, scoped, tag = 'scoped memory for clip_head_forward.1']
    #allocation13 [shape = 'u8[4096]{0}', space=vmem, size = 0x1000, scoped, tag = 'output window, operand 0, single buffered']
    #allocation14 [shape = 'u8[8192]{0}', space=vmem, size = 0x2000, scoped, tag = 'output window, operand 1, single buffered']
    #allocation15 [shape = 's32[1]{0}', space=sflag, size = 0x4, scoped, tag = 'scoped memory for clip_head_forward.1']
    %14 = vsyncpa [#allocation3], 0
    %15 = vsyncpa [#allocation6], 0
    %16 = vsyncpa [#allocation9], 0
    %17 = vsyncpa [#allocation12], 0
    %18 = vsyncpa [#allocation4], 0
    %19 = vsyncpa [#allocation15], 0
    // Predicated region
    $region2: #{clip_head_forward.1} parent=1 // pred_check
      _
    $region3: #{clip_head_forward.1} parent=1 // pred_check_branch
      %21 = sbr.rel (0) target = $region5
    $region4: #{clip_head_forward.1} parent=1 // pred_region
      _
    $region5: #{clip_head_forward.1} parent=1 // pred_fallthru
      _
    // Predicated region
    $region6: #{clip_head_forward.1} parent=1 // pred_check
      _
    $region7: #{clip_head_forward.1} parent=1 // pred_check_branch
      %23 = sbr.rel (0) target = $region9
    $region8: #{clip_head_forward.1} parent=1 // pred_region
      %s25 = ssub.s32 53248, 53248
      %26 = vsyncadd [#allocation3], %s25
      %s27 = sshll.u32 [#allocation2], 4
      %s28 = int_to_ptr.vmem [resolvable:$true] %s27
      %33 = dma.hbm_to_vmem [thread:$0]  %s1, 53248, %s28, [#allocation3], 256, 256, 16
    $region9: #{clip_head_forward.1} parent=1 // pred_fallthru
      _
    // Predicated region
    $region10: #{clip_head_forward.1} parent=1 // pred_check
      _
    $region11: #{clip_head_forward.1} parent=1 // pred_check_branch
      %35 = sbr.rel (0) target = $region13
    $region12: #{clip_head_forward.1} parent=1 // pred_region
      %s37 = ssub.s32 64, 64
      %38 = vsyncadd [#allocation6], %s37
      %s40 = sshll.u32 [#allocation5], 4
      %s41 = int_to_ptr.vmem [resolvable:$true] %s40
      %43 = dma.hbm_to_vmem [thread:$0]  %s2, 64, %s41, [#allocation6]
    $region13: #{clip_head_forward.1} parent=1 // pred_fallthru
      _
    // Predicated region
    $region14: #{clip_head_forward.1} parent=1 // pred_check
      _
    $region15: #{clip_head_forward.1} parent=1 // pred_check_branch
      %45 = sbr.rel (0) target = $region17
    $region16: #{clip_head_forward.1} parent=1 // pred_region
      %s47 = ssub.s32 8192, 8192
      %48 = vsyncadd [#allocation6], %s47
      %s49 = sshll.u32 [#allocation7], 4
      %s50 = int_to_ptr.vmem [resolvable:$true] %s49
      %55 = dma.hbm_to_vmem [thread:$0]  %s3, 8192, %s50, [#allocation6], 128, 128, 8
    $region17: #{clip_head_forward.1} parent=1 // pred_fallthru
      _
    // Predicated region
    $region18: #{clip_head_forward.1} parent=1 // pred_check
      _
    $region19: #{clip_head_forward.1} parent=1 // pred_check_branch
      %57 = sbr.rel (0) target = $region21
    $region20: #{clip_head_forward.1} parent=1 // pred_region
      %s59 = ssub.s32 32, 32
      %60 = vsyncadd [#allocation9], %s59
      %s62 = sshll.u32 [#allocation8], 4
      %s63 = int_to_ptr.vmem [resolvable:$true] %s62
      %65 = dma.hbm_to_vmem [thread:$0]  %s4, 32, %s63, [#allocation9]
    $region21: #{clip_head_forward.1} parent=1 // pred_fallthru
      _
    // Predicated region
    $region22: #{clip_head_forward.1} parent=1 // pred_check
      _
    $region23: #{clip_head_forward.1} parent=1 // pred_check_branch
      %67 = sbr.rel (0) target = $region25
    $region24: #{clip_head_forward.1} parent=1 // pred_region
      %s69 = ssub.s32 2048, 2048
      %70 = vsyncadd [#allocation9], %s69
      %s71 = sshll.u32 [#allocation10], 4
      %s72 = int_to_ptr.vmem [resolvable:$true] %s71
      %77 = dma.hbm_to_vmem [thread:$0]  %s5, 2048, %s72, [#allocation9], 64, 64, 4
    $region25: #{clip_head_forward.1} parent=1 // pred_fallthru
      _
    // Predicated region
    $region26: #{clip_head_forward.1} parent=1 // pred_check
      _
    $region27: #{clip_head_forward.1} parent=1 // pred_check_branch
      %79 = sbr.rel (0) target = $region29
    $region28: #{clip_head_forward.1} parent=1 // pred_region
      %s81 = ssub.s32 16, 16
      %82 = vsyncadd [#allocation12], %s81
      %s84 = sshll.u32 [#allocation11], 4
      %s85 = int_to_ptr.vmem [resolvable:$true] %s84
      %87 = dma.hbm_to_vmem [thread:$0]  %s6, 16, %s85, [#allocation12]
    $region29: #{clip_head_forward.1} parent=1 // pred_fallthru
      _
    // Predicated region
    $region30: #{clip_head_forward.1} parent=1 // pred_check
      _
    $region31: #{clip_head_forward.1} parent=1 // pred_check_branch
      %89 = sbr.rel (0) target = $region33
    $region32: #{clip_head_forward.1} parent=1 // pred_region
      %90 = dma.done [#allocation3], 53248
    $region33: #{clip_head_forward.1} parent=1 // pred_fallthru
      _
    // Predicated region
    $region34: #{clip_head_forward.1} parent=1 // pred_check
      _
    $region35: #{clip_head_forward.1} parent=1 // pred_check_branch
      %92 = sbr.rel (0) target = $region37
    $region36: #{clip_head_forward.1} parent=1 // pred_region
      %93 = dma.done [#allocation6], 64
    $region37: #{clip_head_forward.1} parent=1 // pred_fallthru
      _
    // Predicated region
    $region38: #{clip_head_forward.1} parent=1 // pred_check
      _
    $region39: #{clip_head_forward.1} parent=1 // pred_check_branch
      %95 = sbr.rel (0) target = $region41
    $region40: #{clip_head_forward.1} parent=1 // pred_region
      %96 = dma.done [#allocation6], 8192
    $region41: #{clip_head_forward.1} parent=1 // pred_fallthru
      _
    // Predicated region
    $region42: #{clip_head_forward.1} parent=1 // pred_check
      _
    $region43: #{clip_head_forward.1} parent=1 // pred_check_branch
      %98 = sbr.rel (0) target = $region45
    $region44: #{clip_head_forward.1} parent=1 // pred_region
      %99 = dma.done [#allocation9], 32
    $region45: #{clip_head_forward.1} parent=1 // pred_fallthru
      _
    // Predicated region
    $region46: #{clip_head_forward.1} parent=1 // pred_check
      _
    $region47: #{clip_head_forward.1} parent=1 // pred_check_branch
      %101 = sbr.rel (0) target = $region49
    $region48: #{clip_head_forward.1} parent=1 // pred_region
      %102 = dma.done [#allocation9], 2048
    $region49: #{clip_head_forward.1} parent=1 // pred_fallthru
      _
    // Predicated region
    $region50: #{clip_head_forward.1} parent=1 // pred_check
      _
    $region51: #{clip_head_forward.1} parent=1 // pred_check_branch
      %104 = sbr.rel (0) target = $region53
    $region52: #{clip_head_forward.1} parent=1 // pred_region
      %105 = dma.done [#allocation12], 16
    $region53: #{clip_head_forward.1} parent=1 // pred_fallthru
      _
    %v107 = vld [vmem:[%s0] sm:$0xff]
    %v108 = vld [vmem:[%s0 + $0x8] sm:$0xff]
    %v109 = vld [vmem:[%s0 + $0x10] sm:$0xff]
    %v110 = vld [vmem:[%s0 + $0x18] sm:$0xff]
    %v111 = vld [vmem:[%s0 + $0x20] sm:$0xff]
    %v112 = vld [vmem:[%s0 + $0x28] sm:$0xff]
    %v113 = vld [vmem:[%s0 + $0x30] sm:$0xf]
    %v114 = vld [vmem:[#allocation2] sm:$0xff]
    %v115 = vld [vmem:[#allocation2 + $0x8] sm:$0xff]
    %v116 = vld [vmem:[#allocation2 + $0x10] sm:$0xff]
    %v117 = vld [vmem:[#allocation2 + $0x18] sm:$0xff]
    %v118 = vld [vmem:[#allocation2 + $0x20] sm:$0xff]
    %v119 = vld [vmem:[#allocation2 + $0x28] sm:$0xff]
    %v120 = vld [vmem:[#allocation2 + $0x30] sm:$0xff]
    %v121 = vld [vmem:[#allocation2 + $0x38] sm:$0xff]
    %v122 = vld [vmem:[#allocation2 + $0x40] sm:$0xff]
    %v123 = vld [vmem:[#allocation2 + $0x48] sm:$0xff]
    %v124 = vld [vmem:[#allocation2 + $0x50] sm:$0xff]
    %v125 = vld [vmem:[#allocation2 + $0x58] sm:$0xff]
    %v126 = vld [vmem:[#allocation2 + $0x60] sm:$0xff]
    %v127 = vld [vmem:[#allocation2 + $0x68] sm:$0xff]
    %v128 = vld [vmem:[#allocation2 + $0x70] sm:$0xff]
    %v129 = vld [vmem:[#allocation2 + $0x78] sm:$0xff]
    %v130 = vld [vmem:[#allocation2 + $0x80] sm:$0xff]
    %v131 = vld [vmem:[#allocation2 + $0x88] sm:$0xff]
    %v132 = vld [vmem:[#allocation2 + $0x90] sm:$0xff]
    %v133 = vld [vmem:[#allocation2 + $0x98] sm:$0xff]
    %v134 = vld [vmem:[#allocation2 + $0xa0] sm:$0xff]
    %v135 = vld [vmem:[#allocation2 + $0xa8] sm:$0xff]
    %v136 = vld [vmem:[#allocation2 + $0xb0] sm:$0xff]
    %v137 = vld [vmem:[#allocation2 + $0xb8] sm:$0xff]
    %v138 = vld [vmem:[#allocation2 + $0xc0] sm:$0xff]
    %v139 = vld [vmem:[#allocation2 + $0xc8] sm:$0xff]
    %v140 = vld [vmem:[#allocation2 + $0xd0] sm:$0xff]
    %v141 = vld [vmem:[#allocation2 + $0xd8] sm:$0xff]
    %v142 = vld [vmem:[#allocation2 + $0xe0] sm:$0xff]
    %v143 = vld [vmem:[#allocation2 + $0xe8] sm:$0xff]
    %v144 = vld [vmem:[#allocation2 + $0xf0] sm:$0xff]
    %v145 = vld [vmem:[#allocation2 + $0xf8] sm:$0xff]
    %v146 = vld [vmem:[#allocation2 + $0x100] sm:$0xff]
    %v147 = vld [vmem:[#allocation2 + $0x108] sm:$0xff]
    %v148 = vld [vmem:[#allocation2 + $0x110] sm:$0xff]
    %v149 = vld [vmem:[#allocation2 + $0x118] sm:$0xff]
    %v150 = vld [vmem:[#allocation2 + $0x120] sm:$0xff]
    %v151 = vld [vmem:[#allocation2 + $0x128] sm:$0xff]
    %v152 = vld [vmem:[#allocation2 + $0x130] sm:$0xff]
    %v153 = vld [vmem:[#allocation2 + $0x138] sm:$0xff]
    %v154 = vld [vmem:[#allocation2 + $0x140] sm:$0xff]
    %v155 = vld [vmem:[#allocation2 + $0x148] sm:$0xff]
    %v156 = vld [vmem:[#allocation2 + $0x150] sm:$0xff]
    %v157 = vld [vmem:[#allocation2 + $0x158] sm:$0xff]
    %v158 = vld [vmem:[#allocation2 + $0x160] sm:$0xff]
    %v159 = vld [vmem:[#allocation2 + $0x168] sm:$0xff]
    %v160 = vld [vmem:[#allocation2 + $0x170] sm:$0xff]
    %v161 = vld [vmem:[#allocation2 + $0x178] sm:$0xff]
    %v162 = vld [vmem:[#allocation2 + $0x180] sm:$0xff]
    %v163 = vld [vmem:[#allocation2 + $0x188] sm:$0xff]
    %v164 = vld [vmem:[#allocation2 + $0x190] sm:$0xff]
    %v165 = vld [vmem:[#allocation2 + $0x198] sm:$0xff]
    %v166 = vld [vmem:[#allocation2 + $0x1a0] sm:$0xff]
    %v167 = vld [vmem:[#allocation2 + $0x1a8] sm:$0xff]
    %v168 = vld [vmem:[#allocation2 + $0x1b0] sm:$0xff]
    %v169 = vld [vmem:[#allocation2 + $0x1b8] sm:$0xff]
    %v170 = vld [vmem:[#allocation2 + $0x1c0] sm:$0xff]
    %v171 = vld [vmem:[#allocation2 + $0x1c8] sm:$0xff]
    %v172 = vld [vmem:[#allocation2 + $0x1d0] sm:$0xff]
    %v173 = vld [vmem:[#allocation2 + $0x1d8] sm:$0xff]
    %v174 = vld [vmem:[#allocation2 + $0x1e0] sm:$0xff]
    %v175 = vld [vmem:[#allocation2 + $0x1e8] sm:$0xff]
    %v176 = vld [vmem:[#allocation2 + $0x1f0] sm:$0xff]
    %v177 = vld [vmem:[#allocation2 + $0x1f8] sm:$0xff]
    %v178 = vld [vmem:[#allocation2 + $0x200] sm:$0xff]
    %v179 = vld [vmem:[#allocation2 + $0x208] sm:$0xff]
    %v180 = vld [vmem:[#allocation2 + $0x210] sm:$0xff]
    %v181 = vld [vmem:[#allocation2 + $0x218] sm:$0xff]
    %v182 = vld [vmem:[#allocation2 + $0x220] sm:$0xff]
    %v183 = vld [vmem:[#allocation2 + $0x228] sm:$0xff]
    %v184 = vld [vmem:[#allocation2 + $0x230] sm:$0xff]
    %v185 = vld [vmem:[#allocation2 + $0x238] sm:$0xff]
    %v186 = vld [vmem:[#allocation2 + $0x240] sm:$0xff]
    %v187 = vld [vmem:[#allocation2 + $0x248] sm:$0xff]
    %v188 = vld [vmem:[#allocation2 + $0x250] sm:$0xff]
    %v189 = vld [vmem:[#allocation2 + $0x258] sm:$0xff]
    %v190 = vld [vmem:[#allocation2 + $0x260] sm:$0xff]
    %v191 = vld [vmem:[#allocation2 + $0x268] sm:$0xff]
    %v192 = vld [vmem:[#allocation2 + $0x270] sm:$0xff]
    %v193 = vld [vmem:[#allocation2 + $0x278] sm:$0xff]
    %v194 = vld [vmem:[#allocation2 + $0x280] sm:$0xff]
    %v195 = vld [vmem:[#allocation2 + $0x288] sm:$0xff]
    %v196 = vld [vmem:[#allocation2 + $0x290] sm:$0xff]
    %v197 = vld [vmem:[#allocation2 + $0x298] sm:$0xff]
    %v198 = vld [vmem:[#allocation2 + $0x2a0] sm:$0xff]
    %v199 = vld [vmem:[#allocation2 + $0x2a8] sm:$0xff]
    %v200 = vld [vmem:[#allocation2 + $0x2b0] sm:$0xff]
    %v201 = vld [vmem:[#allocation2 + $0x2b8] sm:$0xff]
    %v202 = vld [vmem:[#allocation2 + $0x2c0] sm:$0xff]
    %v203 = vld [vmem:[#allocation2 + $0x2c8] sm:$0xff]
    %v204 = vld [vmem:[#allocation2 + $0x2d0] sm:$0xff]
    %v205 = vld [vmem:[#allocation2 + $0x2d8] sm:$0xff]
    %v206 = vld [vmem:[#allocation2 + $0x2e0] sm:$0xff]
    %v207 = vld [vmem:[#allocation2 + $0x2e8] sm:$0xff]
    %v208 = vld [vmem:[#allocation2 + $0x2f0] sm:$0xff]
    %v209 = vld [vmem:[#allocation2 + $0x2f8] sm:$0xff]
    %v210 = vld [vmem:[#allocation2 + $0x300] sm:$0xff]
    %v211 = vld [vmem:[#allocation2 + $0x308] sm:$0xff]
    %v212 = vld [vmem:[#allocation2 + $0x310] sm:$0xff]
    %v213 = vld [vmem:[#allocation2 + $0x318] sm:$0xff]
    %v214 = vld [vmem:[#allocation2 + $0x320] sm:$0xff]
    %v215 = vld [vmem:[#allocation2 + $0x328] sm:$0xff]
    %v216 = vld [vmem:[#allocation2 + $0x330] sm:$0xff]
    %v217 = vld [vmem:[#allocation2 + $0x338] sm:$0xff]
    %v218 = vld [vmem:[#allocation2 + $0x340] sm:$0xff]
    %v219 = vld [vmem:[#allocation2 + $0x348] sm:$0xff]
    %v220 = vld [vmem:[#allocation2 + $0x350] sm:$0xff]
    %v221 = vld [vmem:[#allocation2 + $0x358] sm:$0xff]
    %v222 = vld [vmem:[#allocation2 + $0x360] sm:$0xff]
    %v223 = vld [vmem:[#allocation2 + $0x368] sm:$0xff]
    %v224 = vld [vmem:[#allocation2 + $0x370] sm:$0xff]
    %v225 = vld [vmem:[#allocation2 + $0x378] sm:$0xff]
    %v226 = vld [vmem:[#allocation2 + $0x380] sm:$0xff]
    %v227 = vld [vmem:[#allocation2 + $0x388] sm:$0xff]
    %v228 = vld [vmem:[#allocation2 + $0x390] sm:$0xff]
    %v229 = vld [vmem:[#allocation2 + $0x398] sm:$0xff]
    %v230 = vld [vmem:[#allocation2 + $0x3a0] sm:$0xff]
    %v231 = vld [vmem:[#allocation2 + $0x3a8] sm:$0xff]
    %v232 = vld [vmem:[#allocation2 + $0x3b0] sm:$0xff]
    %v233 = vld [vmem:[#allocation2 + $0x3b8] sm:$0xff]
    %v234 = vld [vmem:[#allocation2 + $0x3c0] sm:$0xff]
    %v235 = vld [vmem:[#allocation2 + $0x3c8] sm:$0xff]
    %v236 = vld [vmem:[#allocation2 + $0x3d0] sm:$0xff]
    %v237 = vld [vmem:[#allocation2 + $0x3d8] sm:$0xff]
    %v238 = vld [vmem:[#allocation2 + $0x3e0] sm:$0xff]
    %v239 = vld [vmem:[#allocation2 + $0x3e8] sm:$0xff]
    %v240 = vld [vmem:[#allocation2 + $0x3f0] sm:$0xff]
    %v241 = vld [vmem:[#allocation2 + $0x3f8] sm:$0xff]
    %v242 = vld [vmem:[#allocation2 + $0x400] sm:$0xff]
    %v243 = vld [vmem:[#allocation2 + $0x408] sm:$0xff]
    %v244 = vld [vmem:[#allocation2 + $0x410] sm:$0xff]
    %v245 = vld [vmem:[#allocation2 + $0x418] sm:$0xff]
    %v246 = vld [vmem:[#allocation2 + $0x420] sm:$0xff]
    %v247 = vld [vmem:[#allocation2 + $0x428] sm:$0xff]
    %v248 = vld [vmem:[#allocation2 + $0x430] sm:$0xff]
    %v249 = vld [vmem:[#allocation2 + $0x438] sm:$0xff]
    %v250 = vld [vmem:[#allocation2 + $0x440] sm:$0xff]
    %v251 = vld [vmem:[#allocation2 + $0x448] sm:$0xff]
    %v252 = vld [vmem:[#allocation2 + $0x450] sm:$0xff]
    %v253 = vld [vmem:[#allocation2 + $0x458] sm:$0xff]
    %v254 = vld [vmem:[#allocation2 + $0x460] sm:$0xff]
    %v255 = vld [vmem:[#allocation2 + $0x468] sm:$0xff]
    %v256 = vld [vmem:[#allocation2 + $0x470] sm:$0xff]
    %v257 = vld [vmem:[#allocation2 + $0x478] sm:$0xff]
    %v258 = vld [vmem:[#allocation2 + $0x480] sm:$0xff]
    %v259 = vld [vmem:[#allocation2 + $0x488] sm:$0xff]
    %v260 = vld [vmem:[#allocation2 + $0x490] sm:$0xff]
    %v261 = vld [vmem:[#allocation2 + $0x498] sm:$0xff]
    %v262 = vld [vmem:[#allocation2 + $0x4a0] sm:$0xff]
    %v263 = vld [vmem:[#allocation2 + $0x4a8] sm:$0xff]
    %v264 = vld [vmem:[#allocation2 + $0x4b0] sm:$0xff]
    %v265 = vld [vmem:[#allocation2 + $0x4b8] sm:$0xff]
    %v266 = vld [vmem:[#allocation2 + $0x4c0] sm:$0xff]
    %v267 = vld [vmem:[#allocation2 + $0x4c8] sm:$0xff]
    %v268 = vld [vmem:[#allocation2 + $0x4d0] sm:$0xff]
    %v269 = vld [vmem:[#allocation2 + $0x4d8] sm:$0xff]
    %v270 = vld [vmem:[#allocation2 + $0x4e0] sm:$0xff]
    %v271 = vld [vmem:[#allocation2 + $0x4e8] sm:$0xff]
    %v272 = vld [vmem:[#allocation2 + $0x4f0] sm:$0xff]
    %v273 = vld [vmem:[#allocation2 + $0x4f8] sm:$0xff]
    %v274 = vld [vmem:[#allocation2 + $0x500] sm:$0xff]
    %v275 = vld [vmem:[#allocation2 + $0x508] sm:$0xff]
    %v276 = vld [vmem:[#allocation2 + $0x510] sm:$0xff]
    %v277 = vld [vmem:[#allocation2 + $0x518] sm:$0xff]
    %v278 = vld [vmem:[#allocation2 + $0x520] sm:$0xff]
    %v279 = vld [vmem:[#allocation2 + $0x528] sm:$0xff]
    %v280 = vld [vmem:[#allocation2 + $0x530] sm:$0xff]
    %v281 = vld [vmem:[#allocation2 + $0x538] sm:$0xff]
    %v282 = vld [vmem:[#allocation2 + $0x540] sm:$0xff]
    %v283 = vld [vmem:[#allocation2 + $0x548] sm:$0xff]
    %v284 = vld [vmem:[#allocation2 + $0x550] sm:$0xff]
    %v285 = vld [vmem:[#allocation2 + $0x558] sm:$0xff]
    %v286 = vld [vmem:[#allocation2 + $0x560] sm:$0xff]
    %v287 = vld [vmem:[#allocation2 + $0x568] sm:$0xff]
    %v288 = vld [vmem:[#allocation2 + $0x570] sm:$0xff]
    %v289 = vld [vmem:[#allocation2 + $0x578] sm:$0xff]
    %v290 = vld [vmem:[#allocation2 + $0x580] sm:$0xff]
    %v291 = vld [vmem:[#allocation2 + $0x588] sm:$0xff]
    %v292 = vld [vmem:[#allocation2 + $0x590] sm:$0xff]
    %v293 = vld [vmem:[#allocation2 + $0x598] sm:$0xff]
    %v294 = vld [vmem:[#allocation2 + $0x5a0] sm:$0xff]
    %v295 = vld [vmem:[#allocation2 + $0x5a8] sm:$0xff]
    %v296 = vld [vmem:[#allocation2 + $0x5b0] sm:$0xff]
    %v297 = vld [vmem:[#allocation2 + $0x5b8] sm:$0xff]
    %v298 = vld [vmem:[#allocation2 + $0x5c0] sm:$0xff]
    %v299 = vld [vmem:[#allocation2 + $0x5c8] sm:$0xff]
    %v300 = vld [vmem:[#allocation2 + $0x5d0] sm:$0xff]
    %v301 = vld [vmem:[#allocation2 + $0x5d8] sm:$0xff]
    %v302 = vld [vmem:[#allocation2 + $0x5e0] sm:$0xff]
    %v303 = vld [vmem:[#allocation2 + $0x5e8] sm:$0xff]
    %v304 = vld [vmem:[#allocation2 + $0x5f0] sm:$0xff]
    %v305 = vld [vmem:[#allocation2 + $0x5f8] sm:$0xff]
    %v306 = vld [vmem:[#allocation2 + $0x600] sm:$0xff]
    %v307 = vld [vmem:[#allocation2 + $0x608] sm:$0xff]
    %v308 = vld [vmem:[#allocation2 + $0x610] sm:$0xff]
    %v309 = vld [vmem:[#allocation2 + $0x618] sm:$0xff]
    %v310 = vld [vmem:[#allocation2 + $0x620] sm:$0xff]
    %v311 = vld [vmem:[#allocation2 + $0x628] sm:$0xff]
    %v312 = vld [vmem:[#allocation2 + $0x630] sm:$0xff]
    %v313 = vld [vmem:[#allocation2 + $0x638] sm:$0xff]
    %v314 = vld [vmem:[#allocation2 + $0x640] sm:$0xff]
    %v315 = vld [vmem:[#allocation2 + $0x648] sm:$0xff]
    %v316 = vld [vmem:[#allocation2 + $0x650] sm:$0xff]
    %v317 = vld [vmem:[#allocation2 + $0x658] sm:$0xff]
    %v318 = vld [vmem:[#allocation2 + $0x660] sm:$0xff]
    %v319 = vld [vmem:[#allocation2 + $0x668] sm:$0xff]
    %v320 = vld [vmem:[#allocation2 + $0x670] sm:$0xff]
    %v321 = vld [vmem:[#allocation2 + $0x678] sm:$0xff]
    %v322 = vld [vmem:[#allocation2 + $0x680] sm:$0xff]
    %v323 = vld [vmem:[#allocation2 + $0x688] sm:$0xff]
    %v324 = vld [vmem:[#allocation2 + $0x690] sm:$0xff]
    %v325 = vld [vmem:[#allocation2 + $0x698] sm:$0xff]
    %v326 = vld [vmem:[#allocation2 + $0x6a0] sm:$0xff]
    %v327 = vld [vmem:[#allocation2 + $0x6a8] sm:$0xff]
    %v328 = vld [vmem:[#allocation2 + $0x6b0] sm:$0xff]
    %v329 = vld [vmem:[#allocation2 + $0x6b8] sm:$0xff]
    %v330 = vld [vmem:[#allocation2 + $0x6c0] sm:$0xff]
    %v331 = vld [vmem:[#allocation2 + $0x6c8] sm:$0xff]
    %v332 = vld [vmem:[#allocation2 + $0x6d0] sm:$0xff]
    %v333 = vld [vmem:[#allocation2 + $0x6d8] sm:$0xff]
    %v334 = vld [vmem:[#allocation2 + $0x6e0] sm:$0xff]
    %v335 = vld [vmem:[#allocation2 + $0x6e8] sm:$0xff]
    %v336 = vld [vmem:[#allocation2 + $0x6f0] sm:$0xff]
    %v337 = vld [vmem:[#allocation2 + $0x6f8] sm:$0xff]
    %v338 = vld [vmem:[#allocation2 + $0x700] sm:$0xff]
    %v339 = vld [vmem:[#allocation2 + $0x708] sm:$0xff]
    %v340 = vld [vmem:[#allocation2 + $0x710] sm:$0xff]
    %v341 = vld [vmem:[#allocation2 + $0x718] sm:$0xff]
    %v342 = vld [vmem:[#allocation2 + $0x720] sm:$0xff]
    %v343 = vld [vmem:[#allocation2 + $0x728] sm:$0xff]
    %v344 = vld [vmem:[#allocation2 + $0x730] sm:$0xff]
    %v345 = vld [vmem:[#allocation2 + $0x738] sm:$0xff]
    %v346 = vld [vmem:[#allocation2 + $0x740] sm:$0xff]
    %v347 = vld [vmem:[#allocation2 + $0x748] sm:$0xff]
    %v348 = vld [vmem:[#allocation2 + $0x750] sm:$0xff]
    %v349 = vld [vmem:[#allocation2 + $0x758] sm:$0xff]
    %v350 = vld [vmem:[#allocation2 + $0x760] sm:$0xff]
    %v351 = vld [vmem:[#allocation2 + $0x768] sm:$0xff]
    %v352 = vld [vmem:[#allocation2 + $0x770] sm:$0xff]
    %v353 = vld [vmem:[#allocation2 + $0x778] sm:$0xff]
    %v354 = vld [vmem:[#allocation2 + $0x780] sm:$0xff]
    %v355 = vld [vmem:[#allocation2 + $0x788] sm:$0xff]
    %v356 = vld [vmem:[#allocation2 + $0x790] sm:$0xff]
    %v357 = vld [vmem:[#allocation2 + $0x798] sm:$0xff]
    %v358 = vld [vmem:[#allocation2 + $0x7a0] sm:$0xff]
    %v359 = vld [vmem:[#allocation2 + $0x7a8] sm:$0xff]
    %v360 = vld [vmem:[#allocation2 + $0x7b0] sm:$0xff]
    %v361 = vld [vmem:[#allocation2 + $0x7b8] sm:$0xff]
    %v362 = vld [vmem:[#allocation2 + $0x7c0] sm:$0xff]
    %v363 = vld [vmem:[#allocation2 + $0x7c8] sm:$0xff]
    %v364 = vld [vmem:[#allocation2 + $0x7d0] sm:$0xff]
    %v365 = vld [vmem:[#allocation2 + $0x7d8] sm:$0xff]
    %v366 = vld [vmem:[#allocation2 + $0x7e0] sm:$0xff]
    %v367 = vld [vmem:[#allocation2 + $0x7e8] sm:$0xff]
    %v368 = vld [vmem:[#allocation2 + $0x7f0] sm:$0xff]
    %v369 = vld [vmem:[#allocation2 + $0x7f8] sm:$0xff]
    %v370 = vld [vmem:[#allocation2 + $0x800] sm:$0xff]
    %v371 = vld [vmem:[#allocation2 + $0x808] sm:$0xff]
    %v372 = vld [vmem:[#allocation2 + $0x810] sm:$0xff]
    %v373 = vld [vmem:[#allocation2 + $0x818] sm:$0xff]
    %v374 = vld [vmem:[#allocation2 + $0x820] sm:$0xff]
    %v375 = vld [vmem:[#allocation2 + $0x828] sm:$0xff]
    %v376 = vld [vmem:[#allocation2 + $0x830] sm:$0xff]
    %v377 = vld [vmem:[#allocation2 + $0x838] sm:$0xff]
    %v378 = vld [vmem:[#allocation2 + $0x840] sm:$0xff]
    %v379 = vld [vmem:[#allocation2 + $0x848] sm:$0xff]
    %v380 = vld [vmem:[#allocation2 + $0x850] sm:$0xff]
    %v381 = vld [vmem:[#allocation2 + $0x858] sm:$0xff]
    %v382 = vld [vmem:[#allocation2 + $0x860] sm:$0xff]
    %v383 = vld [vmem:[#allocation2 + $0x868] sm:$0xff]
    %v384 = vld [vmem:[#allocation2 + $0x870] sm:$0xff]
    %v385 = vld [vmem:[#allocation2 + $0x878] sm:$0xff]
    %v386 = vld [vmem:[#allocation2 + $0x880] sm:$0xff]
    %v387 = vld [vmem:[#allocation2 + $0x888] sm:$0xff]
    %v388 = vld [vmem:[#allocation2 + $0x890] sm:$0xff]
    %v389 = vld [vmem:[#allocation2 + $0x898] sm:$0xff]
    %v390 = vld [vmem:[#allocation2 + $0x8a0] sm:$0xff]
    %v391 = vld [vmem:[#allocation2 + $0x8a8] sm:$0xff]
    %v392 = vld [vmem:[#allocation2 + $0x8b0] sm:$0xff]
    %v393 = vld [vmem:[#allocation2 + $0x8b8] sm:$0xff]
    %v394 = vld [vmem:[#allocation2 + $0x8c0] sm:$0xff]
    %v395 = vld [vmem:[#allocation2 + $0x8c8] sm:$0xff]
    %v396 = vld [vmem:[#allocation2 + $0x8d0] sm:$0xff]
    %v397 = vld [vmem:[#allocation2 + $0x8d8] sm:$0xff]
    %v398 = vld [vmem:[#allocation2 + $0x8e0] sm:$0xff]
    %v399 = vld [vmem:[#allocation2 + $0x8e8] sm:$0xff]
    %v400 = vld [vmem:[#allocation2 + $0x8f0] sm:$0xff]
    %v401 = vld [vmem:[#allocation2 + $0x8f8] sm:$0xff]
    %v402 = vld [vmem:[#allocation2 + $0x900] sm:$0xff]
    %v403 = vld [vmem:[#allocation2 + $0x908] sm:$0xff]
    %v404 = vld [vmem:[#allocation2 + $0x910] sm:$0xff]
    %v405 = vld [vmem:[#allocation2 + $0x918] sm:$0xff]
    %v406 = vld [vmem:[#allocation2 + $0x920] sm:$0xff]
    %v407 = vld [vmem:[#allocation2 + $0x928] sm:$0xff]
    %v408 = vld [vmem:[#allocation2 + $0x930] sm:$0xff]
    %v409 = vld [vmem:[#allocation2 + $0x938] sm:$0xff]
    %v410 = vld [vmem:[#allocation2 + $0x940] sm:$0xff]
    %v411 = vld [vmem:[#allocation2 + $0x948] sm:$0xff]
    %v412 = vld [vmem:[#allocation2 + $0x950] sm:$0xff]
    %v413 = vld [vmem:[#allocation2 + $0x958] sm:$0xff]
    %v414 = vld [vmem:[#allocation2 + $0x960] sm:$0xff]
    %v415 = vld [vmem:[#allocation2 + $0x968] sm:$0xff]
    %v416 = vld [vmem:[#allocation2 + $0x970] sm:$0xff]
    %v417 = vld [vmem:[#allocation2 + $0x978] sm:$0xff]
    %v418 = vld [vmem:[#allocation2 + $0x980] sm:$0xff]
    %v419 = vld [vmem:[#allocation2 + $0x988] sm:$0xff]
    %v420 = vld [vmem:[#allocation2 + $0x990] sm:$0xff]
    %v421 = vld [vmem:[#allocation2 + $0x998] sm:$0xff]
    %v422 = vld [vmem:[#allocation2 + $0x9a0] sm:$0xff]
    %v423 = vld [vmem:[#allocation2 + $0x9a8] sm:$0xff]
    %v424 = vld [vmem:[#allocation2 + $0x9b0] sm:$0xff]
    %v425 = vld [vmem:[#allocation2 + $0x9b8] sm:$0xff]
    %v426 = vld [vmem:[#allocation2 + $0x9c0] sm:$0xff]
    %v427 = vld [vmem:[#allocation2 + $0x9c8] sm:$0xff]
    %v428 = vld [vmem:[#allocation2 + $0x9d0] sm:$0xff]
    %v429 = vld [vmem:[#allocation2 + $0x9d8] sm:$0xff]
    %v430 = vld [vmem:[#allocation2 + $0x9e0] sm:$0xff]
    %v431 = vld [vmem:[#allocation2 + $0x9e8] sm:$0xff]
    %v432 = vld [vmem:[#allocation2 + $0x9f0] sm:$0xff]
    %v433 = vld [vmem:[#allocation2 + $0x9f8] sm:$0xff]
    %v434 = vld [vmem:[#allocation2 + $0xa00] sm:$0xff]
    %v435 = vld [vmem:[#allocation2 + $0xa08] sm:$0xff]
    %v436 = vld [vmem:[#allocation2 + $0xa10] sm:$0xff]
    %v437 = vld [vmem:[#allocation2 + $0xa18] sm:$0xff]
    %v438 = vld [vmem:[#allocation2 + $0xa20] sm:$0xff]
    %v439 = vld [vmem:[#allocation2 + $0xa28] sm:$0xff]
    %v440 = vld [vmem:[#allocation2 + $0xa30] sm:$0xff]
    %v441 = vld [vmem:[#allocation2 + $0xa38] sm:$0xff]
    %v442 = vld [vmem:[#allocation2 + $0xa40] sm:$0xff]
    %v443 = vld [vmem:[#allocation2 + $0xa48] sm:$0xff]
    %v444 = vld [vmem:[#allocation2 + $0xa50] sm:$0xff]
    %v445 = vld [vmem:[#allocation2 + $0xa58] sm:$0xff]
    %v446 = vld [vmem:[#allocation2 + $0xa60] sm:$0xff]
    %v447 = vld [vmem:[#allocation2 + $0xa68] sm:$0xff]
    %v448 = vld [vmem:[#allocation2 + $0xa70] sm:$0xff]
    %v449 = vld [vmem:[#allocation2 + $0xa78] sm:$0xff]
    %v450 = vld [vmem:[#allocation2 + $0xa80] sm:$0xff]
    %v451 = vld [vmem:[#allocation2 + $0xa88] sm:$0xff]
    %v452 = vld [vmem:[#allocation2 + $0xa90] sm:$0xff]
    %v453 = vld [vmem:[#allocation2 + $0xa98] sm:$0xff]
    %v454 = vld [vmem:[#allocation2 + $0xaa0] sm:$0xff]
    %v455 = vld [vmem:[#allocation2 + $0xaa8] sm:$0xff]
    %v456 = vld [vmem:[#allocation2 + $0xab0] sm:$0xff]
    %v457 = vld [vmem:[#allocation2 + $0xab8] sm:$0xff]
    %v458 = vld [vmem:[#allocation2 + $0xac0] sm:$0xff]
    %v459 = vld [vmem:[#allocation2 + $0xac8] sm:$0xff]
    %v460 = vld [vmem:[#allocation2 + $0xad0] sm:$0xff]
    %v461 = vld [vmem:[#allocation2 + $0xad8] sm:$0xff]
    %v462 = vld [vmem:[#allocation2 + $0xae0] sm:$0xff]
    %v463 = vld [vmem:[#allocation2 + $0xae8] sm:$0xff]
    %v464 = vld [vmem:[#allocation2 + $0xaf0] sm:$0xff]
    %v465 = vld [vmem:[#allocation2 + $0xaf8] sm:$0xff]
    %v466 = vld [vmem:[#allocation2 + $0xb00] sm:$0xff]
    %v467 = vld [vmem:[#allocation2 + $0xb08] sm:$0xff]
    %v468 = vld [vmem:[#allocation2 + $0xb10] sm:$0xff]
    %v469 = vld [vmem:[#allocation2 + $0xb18] sm:$0xff]
    %v470 = vld [vmem:[#allocation2 + $0xb20] sm:$0xff]
    %v471 = vld [vmem:[#allocation2 + $0xb28] sm:$0xff]
    %v472 = vld [vmem:[#allocation2 + $0xb30] sm:$0xff]
    %v473 = vld [vmem:[#allocation2 + $0xb38] sm:$0xff]
    %v474 = vld [vmem:[#allocation2 + $0xb40] sm:$0xff]
    %v475 = vld [vmem:[#allocation2 + $0xb48] sm:$0xff]
    %v476 = vld [vmem:[#allocation2 + $0xb50] sm:$0xff]
    %v477 = vld [vmem:[#allocation2 + $0xb58] sm:$0xff]
    %v478 = vld [vmem:[#allocation2 + $0xb60] sm:$0xff]
    %v479 = vld [vmem:[#allocation2 + $0xb68] sm:$0xff]
    %v480 = vld [vmem:[#allocation2 + $0xb70] sm:$0xff]
    %v481 = vld [vmem:[#allocation2 + $0xb78] sm:$0xff]
    %v482 = vld [vmem:[#allocation2 + $0xb80] sm:$0xff]
    %v483 = vld [vmem:[#allocation2 + $0xb88] sm:$0xff]
    %v484 = vld [vmem:[#allocation2 + $0xb90] sm:$0xff]
    %v485 = vld [vmem:[#allocation2 + $0xb98] sm:$0xff]
    %v486 = vld [vmem:[#allocation2 + $0xba0] sm:$0xff]
    %v487 = vld [vmem:[#allocation2 + $0xba8] sm:$0xff]
    %v488 = vld [vmem:[#allocation2 + $0xbb0] sm:$0xff]
    %v489 = vld [vmem:[#allocation2 + $0xbb8] sm:$0xff]
    %v490 = vld [vmem:[#allocation2 + $0xbc0] sm:$0xff]
    %v491 = vld [vmem:[#allocation2 + $0xbc8] sm:$0xff]
    %v492 = vld [vmem:[#allocation2 + $0xbd0] sm:$0xff]
    %v493 = vld [vmem:[#allocation2 + $0xbd8] sm:$0xff]
    %v494 = vld [vmem:[#allocation2 + $0xbe0] sm:$0xff]
    %v495 = vld [vmem:[#allocation2 + $0xbe8] sm:$0xff]
    %v496 = vld [vmem:[#allocation2 + $0xbf0] sm:$0xff]
    %v497 = vld [vmem:[#allocation2 + $0xbf8] sm:$0xff]
    %v498 = vld [vmem:[#allocation2 + $0xc00] sm:$0xff]
    %v499 = vld [vmem:[#allocation2 + $0xc08] sm:$0xff]
    %v500 = vld [vmem:[#allocation2 + $0xc10] sm:$0xff]
    %v501 = vld [vmem:[#allocation2 + $0xc18] sm:$0xff]
    %v502 = vld [vmem:[#allocation2 + $0xc20] sm:$0xff]
    %v503 = vld [vmem:[#allocation2 + $0xc28] sm:$0xff]
    %v504 = vld [vmem:[#allocation2 + $0xc30] sm:$0xff]
    %v505 = vld [vmem:[#allocation2 + $0xc38] sm:$0xff]
    %v506 = vld [vmem:[#allocation2 + $0xc40] sm:$0xff]
    %v507 = vld [vmem:[#allocation2 + $0xc48] sm:$0xff]
    %v508 = vld [vmem:[#allocation2 + $0xc50] sm:$0xff]
    %v509 = vld [vmem:[#allocation2 + $0xc58] sm:$0xff]
    %v510 = vld [vmem:[#allocation2 + $0xc60] sm:$0xff]
    %v511 = vld [vmem:[#allocation2 + $0xc68] sm:$0xff]
    %v512 = vld [vmem:[#allocation2 + $0xc70] sm:$0xff]
    %v513 = vld [vmem:[#allocation2 + $0xc78] sm:$0xff]
    %v514 = vld [vmem:[#allocation2 + $0xc80] sm:$0xff]
    %v515 = vld [vmem:[#allocation2 + $0xc88] sm:$0xff]
    %v516 = vld [vmem:[#allocation2 + $0xc90] sm:$0xff]
    %v517 = vld [vmem:[#allocation2 + $0xc98] sm:$0xff]
    %v518 = vld [vmem:[#allocation2 + $0xca0] sm:$0xff]
    %v519 = vld [vmem:[#allocation2 + $0xca8] sm:$0xff]
    %v520 = vld [vmem:[#allocation2 + $0xcb0] sm:$0xff]
    %v521 = vld [vmem:[#allocation2 + $0xcb8] sm:$0xff]
    %v522 = vld [vmem:[#allocation2 + $0xcc0] sm:$0xff]
    %v523 = vld [vmem:[#allocation2 + $0xcc8] sm:$0xff]
    %v524 = vld [vmem:[#allocation2 + $0xcd0] sm:$0xff]
    %v525 = vld [vmem:[#allocation2 + $0xcd8] sm:$0xff]
    %v526 = vld [vmem:[#allocation2 + $0xce0] sm:$0xff]
    %v527 = vld [vmem:[#allocation2 + $0xce8] sm:$0xff]
    %v528 = vld [vmem:[#allocation2 + $0xcf0] sm:$0xff]
    %v529 = vld [vmem:[#allocation2 + $0xcf8] sm:$0xff]
    %v530 = vld [vmem:[#allocation5] sm:$0xf]
    %v532 = vlaneseq
    %v533 = vshrl.u32 %v532, 7
    %v534 = vsub.s32 0, %v533
    %v535 = vrot.slane %v530, %v534
    %v536 = vlaneseq
    %v537 = vshrl.u32 %v536, 7
    %v538 = vsub.s32 1, %v537
    %v539 = vrot.slane %v530, %v538
    %v540 = vlaneseq
    %v541 = vshrl.u32 %v540, 7
    %v542 = vsub.s32 2, %v541
    %v543 = vrot.slane %v530, %v542
    %v544 = vlaneseq
    %v545 = vshrl.u32 %v544, 7
    %v546 = vsub.s32 3, %v545
    %v547 = vrot.slane %v530, %v546
    %v559 = vunpack.c.l.b16 %v107
    %v560 = vunpack.c.h.b16 %v107
    %v561 = vunpack.c.l.b16 %v108
    %v562 = vunpack.c.h.b16 %v108
    %v563 = vunpack.c.l.b16 %v109
    %v564 = vunpack.c.h.b16 %v109
    %v565 = vunpack.c.l.b16 %v110
    %v566 = vunpack.c.h.b16 %v110
    %v567 = vunpack.c.l.b16 %v111
    %v568 = vunpack.c.h.b16 %v111
    %v569 = vunpack.c.l.b16 %v112
    %v570 = vunpack.c.h.b16 %v112
    %v571 = vunpack.c.l.b16 %v113
    %v572 = vpack.c.b16 %v559, %v559
    %v573 = vpack.c.b16 %v560, %v560
    %v574 = vpack.c.b16 %v561, %v561
    %v575 = vpack.c.b16 %v562, %v562
    %v576 = vpack.c.b16 %v563, %v563
    %v577 = vpack.c.b16 %v564, %v564
    %v578 = vpack.c.b16 %v565, %v565
    %v579 = vpack.c.b16 %v566, %v566
    %v580 = vpack.c.b16 %v567, %v567
    %v581 = vpack.c.b16 %v568, %v568
    %v582 = vpack.c.b16 %v569, %v569
    %v583 = vpack.c.b16 %v570, %v570
    %v584 = vpack.c.b16 %v571, %v571
    %v1014 = vunpack.c.l.b16 %v114
    %v1015 = vunpack.c.h.b16 %v114
    %v1016 = vunpack.c.l.b16 %v115
    %v1017 = vunpack.c.h.b16 %v115
    %v1018 = vunpack.c.l.b16 %v116
    %v1019 = vunpack.c.h.b16 %v116
    %v1020 = vunpack.c.l.b16 %v117
    %v1021 = vunpack.c.h.b16 %v117
    %v1022 = vunpack.c.l.b16 %v118
    %v1023 = vunpack.c.h.b16 %v118
    %v1024 = vunpack.c.l.b16 %v119
    %v1025 = vunpack.c.h.b16 %v119
    %v1026 = vunpack.c.l.b16 %v120
    %v1027 = vunpack.c.h.b16 %v120
    %v1028 = vunpack.c.l.b16 %v121
    %v1029 = vunpack.c.h.b16 %v121
    %v1030 = vunpack.c.l.b16 %v122
    %v1031 = vunpack.c.h.b16 %v122
    %v1032 = vunpack.c.l.b16 %v123
    %v1033 = vunpack.c.h.b16 %v123
    %v1034 = vunpack.c.l.b16 %v124
    %v1035 = vunpack.c.h.b16 %v124
    %v1036 = vunpack.c.l.b16 %v125
    %v1037 = vunpack.c.h.b16 %v125
    %v1038 = vunpack.c.l.b16 %v126
    %v1039 = vunpack.c.h.b16 %v126
    %v1040 = vunpack.c.l.b16 %v127
    %v1041 = vunpack.c.h.b16 %v127
    %v1042 = vunpack.c.l.b16 %v128
    %v1043 = vunpack.c.h.b16 %v128
    %v1044 = vunpack.c.l.b16 %v129
    %v1045 = vunpack.c.h.b16 %v129
    %v1046 = vunpack.c.l.b16 %v130
    %v1047 = vunpack.c.h.b16 %v130
    %v1048 = vunpack.c.l.b16 %v131
    %v1049 = vunpack.c.h.b16 %v131
    %v1050 = vunpack.c.l.b16 %v132
    %v1051 = vunpack.c.h.b16 %v132
    %v1052 = vunpack.c.l.b16 %v133
    %v1053 = vunpack.c.h.b16 %v133
    %v1054 = vunpack.c.l.b16 %v134
    %v1055 = vunpack.c.h.b16 %v134
    %v1056 = vunpack.c.l.b16 %v135
    %v1057 = vunpack.c.h.b16 %v135
    %v1058 = vunpack.c.l.b16 %v136
    %v1059 = vunpack.c.h.b16 %v136
    %v1060 = vunpack.c.l.b16 %v137
    %v1061 = vunpack.c.h.b16 %v137
    %v1062 = vunpack.c.l.b16 %v138
    %v1063 = vunpack.c.h.b16 %v138
    %v1064 = vunpack.c.l.b16 %v139
    %v1065 = vunpack.c.h.b16 %v139
    %v1066 = vunpack.c.l.b16 %v140
    %v1067 = vunpack.c.h.b16 %v140
    %v1068 = vunpack.c.l.b16 %v141
    %v1069 = vunpack.c.h.b16 %v141
    %v1070 = vunpack.c.l.b16 %v142
    %v1071 = vunpack.c.h.b16 %v142
    %v1072 = vunpack.c.l.b16 %v143
    %v1073 = vunpack.c.h.b16 %v143
    %v1074 = vunpack.c.l.b16 %v144
    %v1075 = vunpack.c.h.b16 %v144
    %v1076 = vunpack.c.l.b16 %v145
    %v1077 = vunpack.c.h.b16 %v145
    %v1078 = vunpack.c.l.b16 %v146
    %v1079 = vunpack.c.h.b16 %v146
    %v1080 = vunpack.c.l.b16 %v147
    %v1081 = vunpack.c.h.b16 %v147
    %v1082 = vunpack.c.l.b16 %v148
    %v1083 = vunpack.c.h.b16 %v148
    %v1084 = vunpack.c.l.b16 %v149
    %v1085 = vunpack.c.h.b16 %v149
    %v1086 = vunpack.c.l.b16 %v150
    %v1087 = vunpack.c.h.b16 %v150
    %v1088 = vunpack.c.l.b16 %v151
    %v1089 = vunpack.c.h.b16 %v151
    %v1090 = vunpack.c.l.b16 %v152
    %v1091 = vunpack.c.h.b16 %v152
    %v1092 = vunpack.c.l.b16 %v153
    %v1093 = vunpack.c.h.b16 %v153
    %v1094 = vunpack.c.l.b16 %v154
    %v1095 = vunpack.c.h.b16 %v154
    %v1096 = vunpack.c.l.b16 %v155
    %v1097 = vunpack.c.h.b16 %v155
    %v1098 = vunpack.c.l.b16 %v156
    %v1099 = vunpack.c.h.b16 %v156
    %v1100 = vunpack.c.l.b16 %v157
    %v1101 = vunpack.c.h.b16 %v157
    %v1102 = vunpack.c.l.b16 %v158
    %v1103 = vunpack.c.h.b16 %v158
    %v1104 = vunpack.c.l.b16 %v159
    %v1105 = vunpack.c.h.b16 %v159
    %v1106 = vunpack.c.l.b16 %v160
    %v1107 = vunpack.c.h.b16 %v160
    %v1108 = vunpack.c.l.b16 %v161
    %v1109 = vunpack.c.h.b16 %v161
    %v1110 = vunpack.c.l.b16 %v162
    %v1111 = vunpack.c.h.b16 %v162
    %v1112 = vunpack.c.l.b16 %v163
    %v1113 = vunpack.c.h.b16 %v163
    %v1114 = vunpack.c.l.b16 %v164
    %v1115 = vunpack.c.h.b16 %v164
    %v1116 = vunpack.c.l.b16 %v165
    %v1117 = vunpack.c.h.b16 %v165
    %v1118 = vunpack.c.l.b16 %v166
    %v1119 = vunpack.c.h.b16 %v166
    %v1120 = vunpack.c.l.b16 %v167
    %v1121 = vunpack.c.h.b16 %v167
    %v1122 = vunpack.c.l.b16 %v168
    %v1123 = vunpack.c.h.b16 %v168
    %v1124 = vunpack.c.l.b16 %v169
    %v1125 = vunpack.c.h.b16 %v169
    %v1126 = vunpack.c.l.b16 %v170
    %v1127 = vunpack.c.h.b16 %v170
    %v1128 = vunpack.c.l.b16 %v171
    %v1129 = vunpack.c.h.b16 %v171
    %v1130 = vunpack.c.l.b16 %v172
    %v1131 = vunpack.c.h.b16 %v172
    %v1132 = vunpack.c.l.b16 %v173
    %v1133 = vunpack.c.h.b16 %v173
    %v1134 = vunpack.c.l.b16 %v174
    %v1135 = vunpack.c.h.b16 %v174
    %v1136 = vunpack.c.l.b16 %v175
    %v1137 = vunpack.c.h.b16 %v175
    %v1138 = vunpack.c.l.b16 %v176
    %v1139 = vunpack.c.h.b16 %v176
    %v1140 = vunpack.c.l.b16 %v177
    %v1141 = vunpack.c.h.b16 %v177
    %v1142 = vunpack.c.l.b16 %v178
    %v1143 = vunpack.c.h.b16 %v178
    %v1144 = vunpack.c.l.b16 %v179
    %v1145 = vunpack.c.h.b16 %v179
    %v1146 = vunpack.c.l.b16 %v180
    %v1147 = vunpack.c.h.b16 %v180
    %v1148 = vunpack.c.l.b16 %v181
    %v1149 = vunpack.c.h.b16 %v181
    %v1150 = vunpack.c.l.b16 %v182
    %v1151 = vunpack.c.h.b16 %v182
    %v1152 = vunpack.c.l.b16 %v183
    %v1153 = vunpack.c.h.b16 %v183
    %v1154 = vunpack.c.l.b16 %v184
    %v1155 = vunpack.c.h.b16 %v184
    %v1156 = vunpack.c.l.b16 %v185
    %v1157 = vunpack.c.h.b16 %v185
    %v1158 = vunpack.c.l.b16 %v186
    %v1159 = vunpack.c.h.b16 %v186
    %v1160 = vunpack.c.l.b16 %v187
    %v1161 = vunpack.c.h.b16 %v187
    %v1162 = vunpack.c.l.b16 %v188
    %v1163 = vunpack.c.h.b16 %v188
    %v1164 = vunpack.c.l.b16 %v189
    %v1165 = vunpack.c.h.b16 %v189
    %v1166 = vunpack.c.l.b16 %v190
    %v1167 = vunpack.c.h.b16 %v190
    %v1168 = vunpack.c.l.b16 %v191
    %v1169 = vunpack.c.h.b16 %v191
    %v1170 = vunpack.c.l.b16 %v192
    %v1171 = vunpack.c.h.b16 %v192
    %v1172 = vunpack.c.l.b16 %v193
    %v1173 = vunpack.c.h.b16 %v193
    %v1174 = vunpack.c.l.b16 %v194
    %v1175 = vunpack.c.h.b16 %v194
    %v1176 = vunpack.c.l.b16 %v195
    %v1177 = vunpack.c.h.b16 %v195
    %v1178 = vunpack.c.l.b16 %v196
    %v1179 = vunpack.c.h.b16 %v196
    %v1180 = vunpack.c.l.b16 %v197
    %v1181 = vunpack.c.h.b16 %v197
    %v1182 = vunpack.c.l.b16 %v198
    %v1183 = vunpack.c.h.b16 %v198
    %v1184 = vunpack.c.l.b16 %v199
    %v1185 = vunpack.c.h.b16 %v199
    %v1186 = vunpack.c.l.b16 %v200
    %v1187 = vunpack.c.h.b16 %v200
    %v1188 = vunpack.c.l.b16 %v201
    %v1189 = vunpack.c.h.b16 %v201
    %v1190 = vunpack.c.l.b16 %v202
    %v1191 = vunpack.c.h.b16 %v202
    %v1192 = vunpack.c.l.b16 %v203
    %v1193 = vunpack.c.h.b16 %v203
    %v1194 = vunpack.c.l.b16 %v204
    %v1195 = vunpack.c.h.b16 %v204
    %v1196 = vunpack.c.l.b16 %v205
    %v1197 = vunpack.c.h.b16 %v205
    %v1198 = vunpack.c.l.b16 %v206
    %v1199 = vunpack.c.h.b16 %v206
    %v1200 = vunpack.c.l.b16 %v207
    %v1201 = vunpack.c.h.b16 %v207
    %v1202 = vunpack.c.l.b16 %v208
    %v1203 = vunpack.c.h.b16 %v208
    %v1204 = vunpack.c.l.b16 %v209
    %v1205 = vunpack.c.h.b16 %v209
    %v1206 = vunpack.c.l.b16 %v210
    %v1207 = vunpack.c.h.b16 %v210
    %v1208 = vunpack.c.l.b16 %v211
    %v1209 = vunpack.c.h.b16 %v211
    %v1210 = vunpack.c.l.b16 %v212
    %v1211 = vunpack.c.h.b16 %v212
    %v1212 = vunpack.c.l.b16 %v213
    %v1213 = vunpack.c.h.b16 %v213
    %v1214 = vunpack.c.l.b16 %v214
    %v1215 = vunpack.c.h.b16 %v214
    %v1216 = vunpack.c.l.b16 %v215
    %v1217 = vunpack.c.h.b16 %v215
    %v1218 = vunpack.c.l.b16 %v216
    %v1219 = vunpack.c.h.b16 %v216
    %v1220 = vunpack.c.l.b16 %v217
    %v1221 = vunpack.c.h.b16 %v217
    %v1222 = vunpack.c.l.b16 %v218
    %v1223 = vunpack.c.h.b16 %v218
    %v1224 = vunpack.c.l.b16 %v219
    %v1225 = vunpack.c.h.b16 %v219
    %v1226 = vunpack.c.l.b16 %v220
    %v1227 = vunpack.c.h.b16 %v220
    %v1228 = vunpack.c.l.b16 %v221
    %v1229 = vunpack.c.h.b16 %v221
    %v1230 = vunpack.c.l.b16 %v222
    %v1231 = vunpack.c.h.b16 %v222
    %v1232 = vunpack.c.l.b16 %v223
    %v1233 = vunpack.c.h.b16 %v223
    %v1234 = vunpack.c.l.b16 %v224
    %v1235 = vunpack.c.h.b16 %v224
    %v1236 = vunpack.c.l.b16 %v225
    %v1237 = vunpack.c.h.b16 %v225
    %v1238 = vunpack.c.l.b16 %v226
    %v1239 = vunpack.c.h.b16 %v226
    %v1240 = vunpack.c.l.b16 %v227
    %v1241 = vunpack.c.h.b16 %v227
    %v1242 = vunpack.c.l.b16 %v228
    %v1243 = vunpack.c.h.b16 %v228
    %v1244 = vunpack.c.l.b16 %v229
    %v1245 = vunpack.c.h.b16 %v229
    %v1246 = vunpack.c.l.b16 %v230
    %v1247 = vunpack.c.h.b16 %v230
    %v1248 = vunpack.c.l.b16 %v231
    %v1249 = vunpack.c.h.b16 %v231
    %v1250 = vunpack.c.l.b16 %v232
    %v1251 = vunpack.c.h.b16 %v232
    %v1252 = vunpack.c.l.b16 %v233
    %v1253 = vunpack.c.h.b16 %v233
    %v1254 = vunpack.c.l.b16 %v234
    %v1255 = vunpack.c.h.b16 %v234
    %v1256 = vunpack.c.l.b16 %v235
    %v1257 = vunpack.c.h.b16 %v235
    %v1258 = vunpack.c.l.b16 %v236
    %v1259 = vunpack.c.h.b16 %v236
    %v1260 = vunpack.c.l.b16 %v237
    %v1261 = vunpack.c.h.b16 %v237
    %v1262 = vunpack.c.l.b16 %v238
    %v1263 = vunpack.c.h.b16 %v238
    %v1264 = vunpack.c.l.b16 %v239
    %v1265 = vunpack.c.h.b16 %v239
    %v1266 = vunpack.c.l.b16 %v240
    %v1267 = vunpack.c.h.b16 %v240
    %v1268 = vunpack.c.l.b16 %v241
    %v1269 = vunpack.c.h.b16 %v241
    %v1270 = vunpack.c.l.b16 %v242
    %v1271 = vunpack.c.h.b16 %v242
    %v1272 = vunpack.c.l.b16 %v243
    %v1273 = vunpack.c.h.b16 %v243
    %v1274 = vunpack.c.l.b16 %v244
    %v1275 = vunpack.c.h.b16 %v244
    %v1276 = vunpack.c.l.b16 %v245
    %v1277 = vunpack.c.h.b16 %v245
    %v1278 = vunpack.c.l.b16 %v246
    %v1279 = vunpack.c.h.b16 %v246
    %v1280 = vunpack.c.l.b16 %v247
    %v1281 = vunpack.c.h.b16 %v247
    %v1282 = vunpack.c.l.b16 %v248
    %v1283 = vunpack.c.h.b16 %v248
    %v1284 = vunpack.c.l.b16 %v249
    %v1285 = vunpack.c.h.b16 %v249
    %v1286 = vunpack.c.l.b16 %v250
    %v1287 = vunpack.c.h.b16 %v250
    %v1288 = vunpack.c.l.b16 %v251
    %v1289 = vunpack.c.h.b16 %v251
    %v1290 = vunpack.c.l.b16 %v252
    %v1291 = vunpack.c.h.b16 %v252
    %v1292 = vunpack.c.l.b16 %v253
    %v1293 = vunpack.c.h.b16 %v253
    %v1294 = vunpack.c.l.b16 %v254
    %v1295 = vunpack.c.h.b16 %v254
    %v1296 = vunpack.c.l.b16 %v255
    %v1297 = vunpack.c.h.b16 %v255
    %v1298 = vunpack.c.l.b16 %v256
    %v1299 = vunpack.c.h.b16 %v256
    %v1300 = vunpack.c.l.b16 %v257
    %v1301 = vunpack.c.h.b16 %v257
    %v1302 = vunpack.c.l.b16 %v258
    %v1303 = vunpack.c.h.b16 %v258
    %v1304 = vunpack.c.l.b16 %v259
    %v1305 = vunpack.c.h.b16 %v259
    %v1306 = vunpack.c.l.b16 %v260
    %v1307 = vunpack.c.h.b16 %v260
    %v1308 = vunpack.c.l.b16 %v261
    %v1309 = vunpack.c.h.b16 %v261
    %v1310 = vunpack.c.l.b16 %v262
    %v1311 = vunpack.c.h.b16 %v262
    %v1312 = vunpack.c.l.b16 %v263
    %v1313 = vunpack.c.h.b16 %v263
    %v1314 = vunpack.c.l.b16 %v264
    %v1315 = vunpack.c.h.b16 %v264
    %v1316 = vunpack.c.l.b16 %v265
    %v1317 = vunpack.c.h.b16 %v265
    %v1318 = vunpack.c.l.b16 %v266
    %v1319 = vunpack.c.h.b16 %v266
    %v1320 = vunpack.c.l.b16 %v267
    %v1321 = vunpack.c.h.b16 %v267
    %v1322 = vunpack.c.l.b16 %v268
    %v1323 = vunpack.c.h.b16 %v268
    %v1324 = vunpack.c.l.b16 %v269
    %v1325 = vunpack.c.h.b16 %v269
    %v1326 = vunpack.c.l.b16 %v270
    %v1327 = vunpack.c.h.b16 %v270
    %v1328 = vunpack.c.l.b16 %v271
    %v1329 = vunpack.c.h.b16 %v271
    %v1330 = vunpack.c.l.b16 %v272
    %v1331 = vunpack.c.h.b16 %v272
    %v1332 = vunpack.c.l.b16 %v273
    %v1333 = vunpack.c.h.b16 %v273
    %v1334 = vunpack.c.l.b16 %v274
    %v1335 = vunpack.c.h.b16 %v274
    %v1336 = vunpack.c.l.b16 %v275
    %v1337 = vunpack.c.h.b16 %v275
    %v1338 = vunpack.c.l.b16 %v276
    %v1339 = vunpack.c.h.b16 %v276
    %v1340 = vunpack.c.l.b16 %v277
    %v1341 = vunpack.c.h.b16 %v277
    %v1342 = vunpack.c.l.b16 %v278
    %v1343 = vunpack.c.h.b16 %v278
    %v1344 = vunpack.c.l.b16 %v279
    %v1345 = vunpack.c.h.b16 %v279
    %v1346 = vunpack.c.l.b16 %v280
    %v1347 = vunpack.c.h.b16 %v280
    %v1348 = vunpack.c.l.b16 %v281
    %v1349 = vunpack.c.h.b16 %v281
    %v1350 = vunpack.c.l.b16 %v282
    %v1351 = vunpack.c.h.b16 %v282
    %v1352 = vunpack.c.l.b16 %v283
    %v1353 = vunpack.c.h.b16 %v283
    %v1354 = vunpack.c.l.b16 %v284
    %v1355 = vunpack.c.h.b16 %v284
    %v1356 = vunpack.c.l.b16 %v285
    %v1357 = vunpack.c.h.b16 %v285
    %v1358 = vunpack.c.l.b16 %v286
    %v1359 = vunpack.c.h.b16 %v286
    %v1360 = vunpack.c.l.b16 %v287
    %v1361 = vunpack.c.h.b16 %v287
    %v1362 = vunpack.c.l.b16 %v288
    %v1363 = vunpack.c.h.b16 %v288
    %v1364 = vunpack.c.l.b16 %v289
    %v1365 = vunpack.c.h.b16 %v289
    %v1366 = vunpack.c.l.b16 %v290
    %v1367 = vunpack.c.h.b16 %v290
    %v1368 = vunpack.c.l.b16 %v291
    %v1369 = vunpack.c.h.b16 %v291
    %v1370 = vunpack.c.l.b16 %v292
    %v1371 = vunpack.c.h.b16 %v292
    %v1372 = vunpack.c.l.b16 %v293
    %v1373 = vunpack.c.h.b16 %v293
    %v1374 = vunpack.c.l.b16 %v294
    %v1375 = vunpack.c.h.b16 %v294
    %v1376 = vunpack.c.l.b16 %v295
    %v1377 = vunpack.c.h.b16 %v295
    %v1378 = vunpack.c.l.b16 %v296
    %v1379 = vunpack.c.h.b16 %v296
    %v1380 = vunpack.c.l.b16 %v297
    %v1381 = vunpack.c.h.b16 %v297
    %v1382 = vunpack.c.l.b16 %v298
    %v1383 = vunpack.c.h.b16 %v298
    %v1384 = vunpack.c.l.b16 %v299
    %v1385 = vunpack.c.h.b16 %v299
    %v1386 = vunpack.c.l.b16 %v300
    %v1387 = vunpack.c.h.b16 %v300
    %v1388 = vunpack.c.l.b16 %v301
    %v1389 = vunpack.c.h.b16 %v301
    %v1390 = vunpack.c.l.b16 %v302
    %v1391 = vunpack.c.h.b16 %v302
    %v1392 = vunpack.c.l.b16 %v303
    %v1393 = vunpack.c.h.b16 %v303
    %v1394 = vunpack.c.l.b16 %v304
    %v1395 = vunpack.c.h.b16 %v304
    %v1396 = vunpack.c.l.b16 %v305
    %v1397 = vunpack.c.h.b16 %v305
    %v1398 = vunpack.c.l.b16 %v306
    %v1399 = vunpack.c.h.b16 %v306
    %v1400 = vunpack.c.l.b16 %v307
    %v1401 = vunpack.c.h.b16 %v307
    %v1402 = vunpack.c.l.b16 %v308
    %v1403 = vunpack.c.h.b16 %v308
    %v1404 = vunpack.c.l.b16 %v309
    %v1405 = vunpack.c.h.b16 %v309
    %v1406 = vunpack.c.l.b16 %v310
    %v1407 = vunpack.c.h.b16 %v310
    %v1408 = vunpack.c.l.b16 %v311
    %v1409 = vunpack.c.h.b16 %v311
    %v1410 = vunpack.c.l.b16 %v312
    %v1411 = vunpack.c.h.b16 %v312
    %v1412 = vunpack.c.l.b16 %v313
    %v1413 = vunpack.c.h.b16 %v313
    %v1414 = vunpack.c.l.b16 %v314
    %v1415 = vunpack.c.h.b16 %v314
    %v1416 = vunpack.c.l.b16 %v315
    %v1417 = vunpack.c.h.b16 %v315
    %v1418 = vunpack.c.l.b16 %v316
    %v1419 = vunpack.c.h.b16 %v316
    %v1420 = vunpack.c.l.b16 %v317
    %v1421 = vunpack.c.h.b16 %v317
    %v1422 = vunpack.c.l.b16 %v318
    %v1423 = vunpack.c.h.b16 %v318
    %v1424 = vunpack.c.l.b16 %v319
    %v1425 = vunpack.c.h.b16 %v319
    %v1426 = vunpack.c.l.b16 %v320
    %v1427 = vunpack.c.h.b16 %v320
    %v1428 = vunpack.c.l.b16 %v321
    %v1429 = vunpack.c.h.b16 %v321
    %v1430 = vunpack.c.l.b16 %v322
    %v1431 = vunpack.c.h.b16 %v322
    %v1432 = vunpack.c.l.b16 %v323
    %v1433 = vunpack.c.h.b16 %v323
    %v1434 = vunpack.c.l.b16 %v324
    %v1435 = vunpack.c.h.b16 %v324
    %v1436 = vunpack.c.l.b16 %v325
    %v1437 = vunpack.c.h.b16 %v325
    %v1438 = vunpack.c.l.b16 %v326
    %v1439 = vunpack.c.h.b16 %v326
    %v1440 = vunpack.c.l.b16 %v327
    %v1441 = vunpack.c.h.b16 %v327
    %v1442 = vunpack.c.l.b16 %v328
    %v1443 = vunpack.c.h.b16 %v328
    %v1444 = vunpack.c.l.b16 %v329
    %v1445 = vunpack.c.h.b16 %v329
    %v1446 = vunpack.c.l.b16 %v330
    %v1447 = vunpack.c.h.b16 %v330
    %v1448 = vunpack.c.l.b16 %v331
    %v1449 = vunpack.c.h.b16 %v331
    %v1450 = vunpack.c.l.b16 %v332
    %v1451 = vunpack.c.h.b16 %v332
    %v1452 = vunpack.c.l.b16 %v333
    %v1453 = vunpack.c.h.b16 %v333
    %v1454 = vunpack.c.l.b16 %v334
    %v1455 = vunpack.c.h.b16 %v334
    %v1456 = vunpack.c.l.b16 %v335
    %v1457 = vunpack.c.h.b16 %v335
    %v1458 = vunpack.c.l.b16 %v336
    %v1459 = vunpack.c.h.b16 %v336
    %v1460 = vunpack.c.l.b16 %v337
    %v1461 = vunpack.c.h.b16 %v337
    %v1462 = vunpack.c.l.b16 %v338
    %v1463 = vunpack.c.h.b16 %v338
    %v1464 = vunpack.c.l.b16 %v339
    %v1465 = vunpack.c.h.b16 %v339
    %v1466 = vunpack.c.l.b16 %v340
    %v1467 = vunpack.c.h.b16 %v340
    %v1468 = vunpack.c.l.b16 %v341
    %v1469 = vunpack.c.h.b16 %v341
    %v1470 = vunpack.c.l.b16 %v342
    %v1471 = vunpack.c.h.b16 %v342
    %v1472 = vunpack.c.l.b16 %v343
    %v1473 = vunpack.c.h.b16 %v343
    %v1474 = vunpack.c.l.b16 %v344
    %v1475 = vunpack.c.h.b16 %v344
    %v1476 = vunpack.c.l.b16 %v345
    %v1477 = vunpack.c.h.b16 %v345
    %v1478 = vunpack.c.l.b16 %v346
    %v1479 = vunpack.c.h.b16 %v346
    %v1480 = vunpack.c.l.b16 %v347
    %v1481 = vunpack.c.h.b16 %v347
    %v1482 = vunpack.c.l.b16 %v348
    %v1483 = vunpack.c.h.b16 %v348
    %v1484 = vunpack.c.l.b16 %v349
    %v1485 = vunpack.c.h.b16 %v349
    %v1486 = vunpack.c.l.b16 %v350
    %v1487 = vunpack.c.h.b16 %v350
    %v1488 = vunpack.c.l.b16 %v351
    %v1489 = vunpack.c.h.b16 %v351
    %v1490 = vunpack.c.l.b16 %v352
    %v1491 = vunpack.c.h.b16 %v352
    %v1492 = vunpack.c.l.b16 %v353
    %v1493 = vunpack.c.h.b16 %v353
    %v1494 = vunpack.c.l.b16 %v354
    %v1495 = vunpack.c.h.b16 %v354
    %v1496 = vunpack.c.l.b16 %v355
    %v1497 = vunpack.c.h.b16 %v355
    %v1498 = vunpack.c.l.b16 %v356
    %v1499 = vunpack.c.h.b16 %v356
    %v1500 = vunpack.c.l.b16 %v357
    %v1501 = vunpack.c.h.b16 %v357
    %v1502 = vunpack.c.l.b16 %v358
    %v1503 = vunpack.c.h.b16 %v358
    %v1504 = vunpack.c.l.b16 %v359
    %v1505 = vunpack.c.h.b16 %v359
    %v1506 = vunpack.c.l.b16 %v360
    %v1507 = vunpack.c.h.b16 %v360
    %v1508 = vunpack.c.l.b16 %v361
    %v1509 = vunpack.c.h.b16 %v361
    %v1510 = vunpack.c.l.b16 %v362
    %v1511 = vunpack.c.h.b16 %v362
    %v1512 = vunpack.c.l.b16 %v363
    %v1513 = vunpack.c.h.b16 %v363
    %v1514 = vunpack.c.l.b16 %v364
    %v1515 = vunpack.c.h.b16 %v364
    %v1516 = vunpack.c.l.b16 %v365
    %v1517 = vunpack.c.h.b16 %v365
    %v1518 = vunpack.c.l.b16 %v366
    %v1519 = vunpack.c.h.b16 %v366
    %v1520 = vunpack.c.l.b16 %v367
    %v1521 = vunpack.c.h.b16 %v367
    %v1522 = vunpack.c.l.b16 %v368
    %v1523 = vunpack.c.h.b16 %v368
    %v1524 = vunpack.c.l.b16 %v369
    %v1525 = vunpack.c.h.b16 %v369
    %v1526 = vunpack.c.l.b16 %v370
    %v1527 = vunpack.c.h.b16 %v370
    %v1528 = vunpack.c.l.b16 %v371
    %v1529 = vunpack.c.h.b16 %v371
    %v1530 = vunpack.c.l.b16 %v372
    %v1531 = vunpack.c.h.b16 %v372
    %v1532 = vunpack.c.l.b16 %v373
    %v1533 = vunpack.c.h.b16 %v373
    %v1534 = vunpack.c.l.b16 %v374
    %v1535 = vunpack.c.h.b16 %v374
    %v1536 = vunpack.c.l.b16 %v375
    %v1537 = vunpack.c.h.b16 %v375
    %v1538 = vunpack.c.l.b16 %v376
    %v1539 = vunpack.c.h.b16 %v376
    %v1540 = vunpack.c.l.b16 %v377
    %v1541 = vunpack.c.h.b16 %v377
    %v1542 = vunpack.c.l.b16 %v378
    %v1543 = vunpack.c.h.b16 %v378
    %v1544 = vunpack.c.l.b16 %v379
    %v1545 = vunpack.c.h.b16 %v379
    %v1546 = vunpack.c.l.b16 %v380
    %v1547 = vunpack.c.h.b16 %v380
    %v1548 = vunpack.c.l.b16 %v381
    %v1549 = vunpack.c.h.b16 %v381
    %v1550 = vunpack.c.l.b16 %v382
    %v1551 = vunpack.c.h.b16 %v382
    %v1552 = vunpack.c.l.b16 %v383
    %v1553 = vunpack.c.h.b16 %v383
    %v1554 = vunpack.c.l.b16 %v384
    %v1555 = vunpack.c.h.b16 %v384
    %v1556 = vunpack.c.l.b16 %v385
    %v1557 = vunpack.c.h.b16 %v385
    %v1558 = vunpack.c.l.b16 %v386
    %v1559 = vunpack.c.h.b16 %v386
    %v1560 = vunpack.c.l.b16 %v387
    %v1561 = vunpack.c.h.b16 %v387
    %v1562 = vunpack.c.l.b16 %v388
    %v1563 = vunpack.c.h.b16 %v388
    %v1564 = vunpack.c.l.b16 %v389
    %v1565 = vunpack.c.h.b16 %v389
    %v1566 = vunpack.c.l.b16 %v390
    %v1567 = vunpack.c.h.b16 %v390
    %v1568 = vunpack.c.l.b16 %v391
    %v1569 = vunpack.c.h.b16 %v391
    %v1570 = vunpack.c.l.b16 %v392
    %v1571 = vunpack.c.h.b16 %v392
    %v1572 = vunpack.c.l.b16 %v393
    %v1573 = vunpack.c.h.b16 %v393
    %v1574 = vunpack.c.l.b16 %v394
    %v1575 = vunpack.c.h.b16 %v394
    %v1576 = vunpack.c.l.b16 %v395
    %v1577 = vunpack.c.h.b16 %v395
    %v1578 = vunpack.c.l.b16 %v396
    %v1579 = vunpack.c.h.b16 %v396
    %v1580 = vunpack.c.l.b16 %v397
    %v1581 = vunpack.c.h.b16 %v397
    %v1582 = vunpack.c.l.b16 %v398
    %v1583 = vunpack.c.h.b16 %v398
    %v1584 = vunpack.c.l.b16 %v399
    %v1585 = vunpack.c.h.b16 %v399
    %v1586 = vunpack.c.l.b16 %v400
    %v1587 = vunpack.c.h.b16 %v400
    %v1588 = vunpack.c.l.b16 %v401
    %v1589 = vunpack.c.h.b16 %v401
    %v1590 = vunpack.c.l.b16 %v402
    %v1591 = vunpack.c.h.b16 %v402
    %v1592 = vunpack.c.l.b16 %v403
    %v1593 = vunpack.c.h.b16 %v403
    %v1594 = vunpack.c.l.b16 %v404
    %v1595 = vunpack.c.h.b16 %v404
    %v1596 = vunpack.c.l.b16 %v405
    %v1597 = vunpack.c.h.b16 %v405
    %v1598 = vunpack.c.l.b16 %v406
    %v1599 = vunpack.c.h.b16 %v406
    %v1600 = vunpack.c.l.b16 %v407
    %v1601 = vunpack.c.h.b16 %v407
    %v1602 = vunpack.c.l.b16 %v408
    %v1603 = vunpack.c.h.b16 %v408
    %v1604 = vunpack.c.l.b16 %v409
    %v1605 = vunpack.c.h.b16 %v409
    %v1606 = vunpack.c.l.b16 %v410
    %v1607 = vunpack.c.h.b16 %v410
    %v1608 = vunpack.c.l.b16 %v411
    %v1609 = vunpack.c.h.b16 %v411
    %v1610 = vunpack.c.l.b16 %v412
    %v1611 = vunpack.c.h.b16 %v412
    %v1612 = vunpack.c.l.b16 %v413
    %v1613 = vunpack.c.h.b16 %v413
    %v1614 = vunpack.c.l.b16 %v414
    %v1615 = vunpack.c.h.b16 %v414
    %v1616 = vunpack.c.l.b16 %v415
    %v1617 = vunpack.c.h.b16 %v415
    %v1618 = vunpack.c.l.b16 %v416
    %v1619 = vunpack.c.h.b16 %v416
    %v1620 = vunpack.c.l.b16 %v417
    %v1621 = vunpack.c.h.b16 %v417
    %v1622 = vunpack.c.l.b16 %v418
    %v1623 = vunpack.c.h.b16 %v418
    %v1624 = vunpack.c.l.b16 %v419
    %v1625 = vunpack.c.h.b16 %v419
    %v1626 = vunpack.c.l.b16 %v420
    %v1627 = vunpack.c.h.b16 %v420
    %v1628 = vunpack.c.l.b16 %v421
    %v1629 = vunpack.c.h.b16 %v421
    %v1630 = vunpack.c.l.b16 %v422
    %v1631 = vunpack.c.h.b16 %v422
    %v1632 = vunpack.c.l.b16 %v423
    %v1633 = vunpack.c.h.b16 %v423
    %v1634 = vunpack.c.l.b16 %v424
    %v1635 = vunpack.c.h.b16 %v424
    %v1636 = vunpack.c.l.b16 %v425
    %v1637 = vunpack.c.h.b16 %v425
    %v1638 = vunpack.c.l.b16 %v426
    %v1639 = vunpack.c.h.b16 %v426
    %v1640 = vunpack.c.l.b16 %v427
    %v1641 = vunpack.c.h.b16 %v427
    %v1642 = vunpack.c.l.b16 %v428
    %v1643 = vunpack.c.h.b16 %v428
    %v1644 = vunpack.c.l.b16 %v429
    %v1645 = vunpack.c.h.b16 %v429
    %v1646 = vunpack.c.l.b16 %v430
    %v1647 = vunpack.c.h.b16 %v430
    %v1648 = vunpack.c.l.b16 %v431
    %v1649 = vunpack.c.h.b16 %v431
    %v1650 = vunpack.c.l.b16 %v432
    %v1651 = vunpack.c.h.b16 %v432
    %v1652 = vunpack.c.l.b16 %v433
    %v1653 = vunpack.c.h.b16 %v433
    %v1654 = vunpack.c.l.b16 %v434
    %v1655 = vunpack.c.h.b16 %v434
    %v1656 = vunpack.c.l.b16 %v435
    %v1657 = vunpack.c.h.b16 %v435
    %v1658 = vunpack.c.l.b16 %v436
    %v1659 = vunpack.c.h.b16 %v436
    %v1660 = vunpack.c.l.b16 %v437
    %v1661 = vunpack.c.h.b16 %v437
    %v1662 = vunpack.c.l.b16 %v438
    %v1663 = vunpack.c.h.b16 %v438
    %v1664 = vunpack.c.l.b16 %v439
    %v1665 = vunpack.c.h.b16 %v439
    %v1666 = vunpack.c.l.b16 %v440
    %v1667 = vunpack.c.h.b16 %v440
    %v1668 = vunpack.c.l.b16 %v441
    %v1669 = vunpack.c.h.b16 %v441
    %v1670 = vunpack.c.l.b16 %v442
    %v1671 = vunpack.c.h.b16 %v442
    %v1672 = vunpack.c.l.b16 %v443
    %v1673 = vunpack.c.h.b16 %v443
    %v1674 = vunpack.c.l.b16 %v444
    %v1675 = vunpack.c.h.b16 %v444
    %v1676 = vunpack.c.l.b16 %v445
    %v1677 = vunpack.c.h.b16 %v445
    %v1678 = vunpack.c.l.b16 %v446
    %v1679 = vunpack.c.h.b16 %v446
    %v1680 = vunpack.c.l.b16 %v447
    %v1681 = vunpack.c.h.b16 %v447
    %v1682 = vunpack.c.l.b16 %v448
    %v1683 = vunpack.c.h.b16 %v448
    %v1684 = vunpack.c.l.b16 %v449
    %v1685 = vunpack.c.h.b16 %v449
    %v1686 = vunpack.c.l.b16 %v450
    %v1687 = vunpack.c.h.b16 %v450
    %v1688 = vunpack.c.l.b16 %v451
    %v1689 = vunpack.c.h.b16 %v451
    %v1690 = vunpack.c.l.b16 %v452
    %v1691 = vunpack.c.h.b16 %v452
    %v1692 = vunpack.c.l.b16 %v453
    %v1693 = vunpack.c.h.b16 %v453
    %v1694 = vunpack.c.l.b16 %v454
    %v1695 = vunpack.c.h.b16 %v454
    %v1696 = vunpack.c.l.b16 %v455
    %v1697 = vunpack.c.h.b16 %v455
    %v1698 = vunpack.c.l.b16 %v456
    %v1699 = vunpack.c.h.b16 %v456
    %v1700 = vunpack.c.l.b16 %v457
    %v1701 = vunpack.c.h.b16 %v457
    %v1702 = vunpack.c.l.b16 %v458
    %v1703 = vunpack.c.h.b16 %v458
    %v1704 = vunpack.c.l.b16 %v459
    %v1705 = vunpack.c.h.b16 %v459
    %v1706 = vunpack.c.l.b16 %v460
    %v1707 = vunpack.c.h.b16 %v460
    %v1708 = vunpack.c.l.b16 %v461
    %v1709 = vunpack.c.h.b16 %v461
    %v1710 = vunpack.c.l.b16 %v462
    %v1711 = vunpack.c.h.b16 %v462
    %v1712 = vunpack.c.l.b16 %v463
    %v1713 = vunpack.c.h.b16 %v463
    %v1714 = vunpack.c.l.b16 %v464
    %v1715 = vunpack.c.h.b16 %v464
    %v1716 = vunpack.c.l.b16 %v465
    %v1717 = vunpack.c.h.b16 %v465
    %v1718 = vunpack.c.l.b16 %v466
    %v1719 = vunpack.c.h.b16 %v466
    %v1720 = vunpack.c.l.b16 %v467
    %v1721 = vunpack.c.h.b16 %v467
    %v1722 = vunpack.c.l.b16 %v468
    %v1723 = vunpack.c.h.b16 %v468
    %v1724 = vunpack.c.l.b16 %v469
    %v1725 = vunpack.c.h.b16 %v469
    %v1726 = vunpack.c.l.b16 %v470
    %v1727 = vunpack.c.h.b16 %v470
    %v1728 = vunpack.c.l.b16 %v471
    %v1729 = vunpack.c.h.b16 %v471
    %v1730 = vunpack.c.l.b16 %v472
    %v1731 = vunpack.c.h.b16 %v472
    %v1732 = vunpack.c.l.b16 %v473
    %v1733 = vunpack.c.h.b16 %v473
    %v1734 = vunpack.c.l.b16 %v474
    %v1735 = vunpack.c.h.b16 %v474
    %v1736 = vunpack.c.l.b16 %v475
    %v1737 = vunpack.c.h.b16 %v475
    %v1738 = vunpack.c.l.b16 %v476
    %v1739 = vunpack.c.h.b16 %v476
    %v1740 = vunpack.c.l.b16 %v477
    %v1741 = vunpack.c.h.b16 %v477
    %v1742 = vunpack.c.l.b16 %v478
    %v1743 = vunpack.c.h.b16 %v478
    %v1744 = vunpack.c.l.b16 %v479
    %v1745 = vunpack.c.h.b16 %v479
    %v1746 = vunpack.c.l.b16 %v480
    %v1747 = vunpack.c.h.b16 %v480
    %v1748 = vunpack.c.l.b16 %v481
    %v1749 = vunpack.c.h.b16 %v481
    %v1750 = vunpack.c.l.b16 %v482
    %v1751 = vunpack.c.h.b16 %v482
    %v1752 = vunpack.c.l.b16 %v483
    %v1753 = vunpack.c.h.b16 %v483
    %v1754 = vunpack.c.l.b16 %v484
    %v1755 = vunpack.c.h.b16 %v484
    %v1756 = vunpack.c.l.b16 %v485
    %v1757 = vunpack.c.h.b16 %v485
    %v1758 = vunpack.c.l.b16 %v486
    %v1759 = vunpack.c.h.b16 %v486
    %v1760 = vunpack.c.l.b16 %v487
    %v1761 = vunpack.c.h.b16 %v487
    %v1762 = vunpack.c.l.b16 %v488
    %v1763 = vunpack.c.h.b16 %v488
    %v1764 = vunpack.c.l.b16 %v489
    %v1765 = vunpack.c.h.b16 %v489
    %v1766 = vunpack.c.l.b16 %v490
    %v1767 = vunpack.c.h.b16 %v490
    %v1768 = vunpack.c.l.b16 %v491
    %v1769 = vunpack.c.h.b16 %v491
    %v1770 = vunpack.c.l.b16 %v492
    %v1771 = vunpack.c.h.b16 %v492
    %v1772 = vunpack.c.l.b16 %v493
    %v1773 = vunpack.c.h.b16 %v493
    %v1774 = vunpack.c.l.b16 %v494
    %v1775 = vunpack.c.h.b16 %v494
    %v1776 = vunpack.c.l.b16 %v495
    %v1777 = vunpack.c.h.b16 %v495
    %v1778 = vunpack.c.l.b16 %v496
    %v1779 = vunpack.c.h.b16 %v496
    %v1780 = vunpack.c.l.b16 %v497
    %v1781 = vunpack.c.h.b16 %v497
    %v1782 = vunpack.c.l.b16 %v498
    %v1783 = vunpack.c.h.b16 %v498
    %v1784 = vunpack.c.l.b16 %v499
    %v1785 = vunpack.c.h.b16 %v499
    %v1786 = vunpack.c.l.b16 %v500
    %v1787 = vunpack.c.h.b16 %v500
    %v1788 = vunpack.c.l.b16 %v501
    %v1789 = vunpack.c.h.b16 %v501
    %v1790 = vunpack.c.l.b16 %v502
    %v1791 = vunpack.c.h.b16 %v502
    %v1792 = vunpack.c.l.b16 %v503
    %v1793 = vunpack.c.h.b16 %v503
    %v1794 = vunpack.c.l.b16 %v504
    %v1795 = vunpack.c.h.b16 %v504
    %v1796 = vunpack.c.l.b16 %v505
    %v1797 = vunpack.c.h.b16 %v505
    %v1798 = vunpack.c.l.b16 %v506
    %v1799 = vunpack.c.h.b16 %v506
    %v1800 = vunpack.c.l.b16 %v507
    %v1801 = vunpack.c.h.b16 %v507
    %v1802 = vunpack.c.l.b16 %v508
    %v1803 = vunpack.c.h.b16 %v508
    %v1804 = vunpack.c.l.b16 %v509
    %v1805 = vunpack.c.h.b16 %v509
    %v1806 = vunpack.c.l.b16 %v510
    %v1807 = vunpack.c.h.b16 %v510
    %v1808 = vunpack.c.l.b16 %v511
    %v1809 = vunpack.c.h.b16 %v511
    %v1810 = vunpack.c.l.b16 %v512
    %v1811 = vunpack.c.h.b16 %v512
    %v1812 = vunpack.c.l.b16 %v513
    %v1813 = vunpack.c.h.b16 %v513
    %v1814 = vunpack.c.l.b16 %v514
    %v1815 = vunpack.c.h.b16 %v514
    %v1816 = vunpack.c.l.b16 %v515
    %v1817 = vunpack.c.h.b16 %v515
    %v1818 = vunpack.c.l.b16 %v516
    %v1819 = vunpack.c.h.b16 %v516
    %v1820 = vunpack.c.l.b16 %v517
    %v1821 = vunpack.c.h.b16 %v517
    %v1822 = vunpack.c.l.b16 %v518
    %v1823 = vunpack.c.h.b16 %v518
    %v1824 = vunpack.c.l.b16 %v519
    %v1825 = vunpack.c.h.b16 %v519
    %v1826 = vunpack.c.l.b16 %v520
    %v1827 = vunpack.c.h.b16 %v520
    %v1828 = vunpack.c.l.b16 %v521
    %v1829 = vunpack.c.h.b16 %v521
    %v1830 = vunpack.c.l.b16 %v522
    %v1831 = vunpack.c.h.b16 %v522
    %v1832 = vunpack.c.l.b16 %v523
    %v1833 = vunpack.c.h.b16 %v523
    %v1834 = vunpack.c.l.b16 %v524
    %v1835 = vunpack.c.h.b16 %v524
    %v1836 = vunpack.c.l.b16 %v525
    %v1837 = vunpack.c.h.b16 %v525
    %v1838 = vunpack.c.l.b16 %v526
    %v1839 = vunpack.c.h.b16 %v526
    %v1840 = vunpack.c.l.b16 %v527
    %v1841 = vunpack.c.h.b16 %v527
    %v1842 = vunpack.c.l.b16 %v528
    %v1843 = vunpack.c.h.b16 %v528
    %v1844 = vunpack.c.l.b16 %v529
    %v1845 = vunpack.c.h.b16 %v529
    %v1846 = vpack.c.b16 %v1018, %v1014
    %v1847 = vpack.c.b16 %v1019, %v1015
    %v1848 = vpack.c.b16 %v1020, %v1016
    %v1849 = vpack.c.b16 %v1021, %v1017
    %v1850 = vpack.c.b16 %v1026, %v1022
    %v1851 = vpack.c.b16 %v1027, %v1023
    %v1852 = vpack.c.b16 %v1028, %v1024
    %v1853 = vpack.c.b16 %v1029, %v1025
    %v1854 = vpack.c.b16 %v1034, %v1030
    %v1855 = vpack.c.b16 %v1035, %v1031
    %v1856 = vpack.c.b16 %v1036, %v1032
    %v1857 = vpack.c.b16 %v1037, %v1033
    %v1858 = vpack.c.b16 %v1042, %v1038
    %v1859 = vpack.c.b16 %v1043, %v1039
    %v1860 = vpack.c.b16 %v1044, %v1040
    %v1861 = vpack.c.b16 %v1045, %v1041
    %v1862 = vpack.c.b16 %v1050, %v1046
    %v1863 = vpack.c.b16 %v1051, %v1047
    %v1864 = vpack.c.b16 %v1052, %v1048
    %v1865 = vpack.c.b16 %v1053, %v1049
    %v1866 = vpack.c.b16 %v1058, %v1054
    %v1867 = vpack.c.b16 %v1059, %v1055
    %v1868 = vpack.c.b16 %v1060, %v1056
    %v1869 = vpack.c.b16 %v1061, %v1057
    %v1870 = vpack.c.b16 %v1066, %v1062
    %v1871 = vpack.c.b16 %v1067, %v1063
    %v1872 = vpack.c.b16 %v1068, %v1064
    %v1873 = vpack.c.b16 %v1069, %v1065
    %v1874 = vpack.c.b16 %v1074, %v1070
    %v1875 = vpack.c.b16 %v1075, %v1071
    %v1876 = vpack.c.b16 %v1076, %v1072
    %v1877 = vpack.c.b16 %v1077, %v1073
    %v1878 = vpack.c.b16 %v1082, %v1078
    %v1879 = vpack.c.b16 %v1083, %v1079
    %v1880 = vpack.c.b16 %v1084, %v1080
    %v1881 = vpack.c.b16 %v1085, %v1081
    %v1882 = vpack.c.b16 %v1090, %v1086
    %v1883 = vpack.c.b16 %v1091, %v1087
    %v1884 = vpack.c.b16 %v1092, %v1088
    %v1885 = vpack.c.b16 %v1093, %v1089
    %v1886 = vpack.c.b16 %v1098, %v1094
    %v1887 = vpack.c.b16 %v1099, %v1095
    %v1888 = vpack.c.b16 %v1100, %v1096
    %v1889 = vpack.c.b16 %v1101, %v1097
    %v1890 = vpack.c.b16 %v1106, %v1102
    %v1891 = vpack.c.b16 %v1107, %v1103
    %v1892 = vpack.c.b16 %v1108, %v1104
    %v1893 = vpack.c.b16 %v1109, %v1105
    %v1894 = vpack.c.b16 %v1114, %v1110
    %v1895 = vpack.c.b16 %v1115, %v1111
    %v1896 = vpack.c.b16 %v1116, %v1112
    %v1897 = vpack.c.b16 %v1117, %v1113
    %v1898 = vpack.c.b16 %v1122, %v1118
    %v1899 = vpack.c.b16 %v1123, %v1119
    %v1900 = vpack.c.b16 %v1124, %v1120
    %v1901 = vpack.c.b16 %v1125, %v1121
    %v1902 = vpack.c.b16 %v1130, %v1126
    %v1903 = vpack.c.b16 %v1131, %v1127
    %v1904 = vpack.c.b16 %v1132, %v1128
    %v1905 = vpack.c.b16 %v1133, %v1129
    %v1906 = vpack.c.b16 %v1138, %v1134
    %v1907 = vpack.c.b16 %v1139, %v1135
    %v1908 = vpack.c.b16 %v1140, %v1136
    %v1909 = vpack.c.b16 %v1141, %v1137
    %v1910 = vpack.c.b16 %v1146, %v1142
    %v1911 = vpack.c.b16 %v1147, %v1143
    %v1912 = vpack.c.b16 %v1148, %v1144
    %v1913 = vpack.c.b16 %v1149, %v1145
    %v1914 = vpack.c.b16 %v1154, %v1150
    %v1915 = vpack.c.b16 %v1155, %v1151
    %v1916 = vpack.c.b16 %v1156, %v1152
    %v1917 = vpack.c.b16 %v1157, %v1153
    %v1918 = vpack.c.b16 %v1162, %v1158
    %v1919 = vpack.c.b16 %v1163, %v1159
    %v1920 = vpack.c.b16 %v1164, %v1160
    %v1921 = vpack.c.b16 %v1165, %v1161
    %v1922 = vpack.c.b16 %v1170, %v1166
    %v1923 = vpack.c.b16 %v1171, %v1167
    %v1924 = vpack.c.b16 %v1172, %v1168
    %v1925 = vpack.c.b16 %v1173, %v1169
    %v1926 = vpack.c.b16 %v1178, %v1174
    %v1927 = vpack.c.b16 %v1179, %v1175
    %v1928 = vpack.c.b16 %v1180, %v1176
    %v1929 = vpack.c.b16 %v1181, %v1177
    %v1930 = vpack.c.b16 %v1186, %v1182
    %v1931 = vpack.c.b16 %v1187, %v1183
    %v1932 = vpack.c.b16 %v1188, %v1184
    %v1933 = vpack.c.b16 %v1189, %v1185
    %v1934 = vpack.c.b16 %v1194, %v1190
    %v1935 = vpack.c.b16 %v1195, %v1191
    %v1936 = vpack.c.b16 %v1196, %v1192
    %v1937 = vpack.c.b16 %v1197, %v1193
    %v1938 = vpack.c.b16 %v1202, %v1198
    %v1939 = vpack.c.b16 %v1203, %v1199
    %v1940 = vpack.c.b16 %v1204, %v1200
    %v1941 = vpack.c.b16 %v1205, %v1201
    %v1942 = vpack.c.b16 %v1210, %v1206
    %v1943 = vpack.c.b16 %v1211, %v1207
    %v1944 = vpack.c.b16 %v1212, %v1208
    %v1945 = vpack.c.b16 %v1213, %v1209
    %v1946 = vpack.c.b16 %v1218, %v1214
    %v1947 = vpack.c.b16 %v1219, %v1215
    %v1948 = vpack.c.b16 %v1220, %v1216
    %v1949 = vpack.c.b16 %v1221, %v1217
    %v1950 = vpack.c.b16 %v1226, %v1222
    %v1951 = vpack.c.b16 %v1227, %v1223
    %v1952 = vpack.c.b16 %v1228, %v1224
    %v1953 = vpack.c.b16 %v1229, %v1225
    %v1954 = vpack.c.b16 %v1234, %v1230
    %v1955 = vpack.c.b16 %v1235, %v1231
    %v1956 = vpack.c.b16 %v1236, %v1232
    %v1957 = vpack.c.b16 %v1237, %v1233
    %v1958 = vpack.c.b16 %v1242, %v1238
    %v1959 = vpack.c.b16 %v1243, %v1239
    %v1960 = vpack.c.b16 %v1244, %v1240
    %v1961 = vpack.c.b16 %v1245, %v1241
    %v1962 = vpack.c.b16 %v1250, %v1246
    %v1963 = vpack.c.b16 %v1251, %v1247
    %v1964 = vpack.c.b16 %v1252, %v1248
    %v1965 = vpack.c.b16 %v1253, %v1249
    %v1966 = vpack.c.b16 %v1258, %v1254
    %v1967 = vpack.c.b16 %v1259, %v1255
    %v1968 = vpack.c.b16 %v1260, %v1256
    %v1969 = vpack.c.b16 %v1261, %v1257
    %v1970 = vpack.c.b16 %v1266, %v1262
    %v1971 = vpack.c.b16 %v1267, %v1263
    %v1972 = vpack.c.b16 %v1268, %v1264
    %v1973 = vpack.c.b16 %v1269, %v1265
    %v1974 = vpack.c.b16 %v1274, %v1270
    %v1975 = vpack.c.b16 %v1275, %v1271
    %v1976 = vpack.c.b16 %v1276, %v1272
    %v1977 = vpack.c.b16 %v1277, %v1273
    %v1978 = vpack.c.b16 %v1282, %v1278
    %v1979 = vpack.c.b16 %v1283, %v1279
    %v1980 = vpack.c.b16 %v1284, %v1280
    %v1981 = vpack.c.b16 %v1285, %v1281
    %v1982 = vpack.c.b16 %v1290, %v1286
    %v1983 = vpack.c.b16 %v1291, %v1287
    %v1984 = vpack.c.b16 %v1292, %v1288
    %v1985 = vpack.c.b16 %v1293, %v1289
    %v1986 = vpack.c.b16 %v1298, %v1294
    %v1987 = vpack.c.b16 %v1299, %v1295
    %v1988 = vpack.c.b16 %v1300, %v1296
    %v1989 = vpack.c.b16 %v1301, %v1297
    %v1990 = vpack.c.b16 %v1306, %v1302
    %v1991 = vpack.c.b16 %v1307, %v1303
    %v1992 = vpack.c.b16 %v1308, %v1304
    %v1993 = vpack.c.b16 %v1309, %v1305
    %v1994 = vpack.c.b16 %v1314, %v1310
    %v1995 = vpack.c.b16 %v1315, %v1311
    %v1996 = vpack.c.b16 %v1316, %v1312
    %v1997 = vpack.c.b16 %v1317, %v1313
    %v1998 = vpack.c.b16 %v1322, %v1318
    %v1999 = vpack.c.b16 %v1323, %v1319
    %v2000 = vpack.c.b16 %v1324, %v1320
    %v2001 = vpack.c.b16 %v1325, %v1321
    %v2002 = vpack.c.b16 %v1330, %v1326
    %v2003 = vpack.c.b16 %v1331, %v1327
    %v2004 = vpack.c.b16 %v1332, %v1328
    %v2005 = vpack.c.b16 %v1333, %v1329
    %v2006 = vpack.c.b16 %v1338, %v1334
    %v2007 = vpack.c.b16 %v1339, %v1335
    %v2008 = vpack.c.b16 %v1340, %v1336
    %v2009 = vpack.c.b16 %v1341, %v1337
    %v2010 = vpack.c.b16 %v1346, %v1342
    %v2011 = vpack.c.b16 %v1347, %v1343
    %v2012 = vpack.c.b16 %v1348, %v1344
    %v2013 = vpack.c.b16 %v1349, %v1345
    %v2014 = vpack.c.b16 %v1354, %v1350
    %v2015 = vpack.c.b16 %v1355, %v1351
    %v2016 = vpack.c.b16 %v1356, %v1352
    %v2017 = vpack.c.b16 %v1357, %v1353
    %v2018 = vpack.c.b16 %v1362, %v1358
    %v2019 = vpack.c.b16 %v1363, %v1359
    %v2020 = vpack.c.b16 %v1364, %v1360
    %v2021 = vpack.c.b16 %v1365, %v1361
    %v2022 = vpack.c.b16 %v1370, %v1366
    %v2023 = vpack.c.b16 %v1371, %v1367
    %v2024 = vpack.c.b16 %v1372, %v1368
    %v2025 = vpack.c.b16 %v1373, %v1369
    %v2026 = vpack.c.b16 %v1378, %v1374
    %v2027 = vpack.c.b16 %v1379, %v1375
    %v2028 = vpack.c.b16 %v1380, %v1376
    %v2029 = vpack.c.b16 %v1381, %v1377
    %v2030 = vpack.c.b16 %v1386, %v1382
    %v2031 = vpack.c.b16 %v1387, %v1383
    %v2032 = vpack.c.b16 %v1388, %v1384
    %v2033 = vpack.c.b16 %v1389, %v1385
    %v2034 = vpack.c.b16 %v1394, %v1390
    %v2035 = vpack.c.b16 %v1395, %v1391
    %v2036 = vpack.c.b16 %v1396, %v1392
    %v2037 = vpack.c.b16 %v1397, %v1393
    %v2038 = vpack.c.b16 %v1402, %v1398
    %v2039 = vpack.c.b16 %v1403, %v1399
    %v2040 = vpack.c.b16 %v1404, %v1400
    %v2041 = vpack.c.b16 %v1405, %v1401
    %v2042 = vpack.c.b16 %v1410, %v1406
    %v2043 = vpack.c.b16 %v1411, %v1407
    %v2044 = vpack.c.b16 %v1412, %v1408
    %v2045 = vpack.c.b16 %v1413, %v1409
    %v2046 = vpack.c.b16 %v1418, %v1414
    %v2047 = vpack.c.b16 %v1419, %v1415
    %v2048 = vpack.c.b16 %v1420, %v1416
    %v2049 = vpack.c.b16 %v1421, %v1417
    %v2050 = vpack.c.b16 %v1426, %v1422
    %v2051 = vpack.c.b16 %v1427, %v1423
    %v2052 = vpack.c.b16 %v1428, %v1424
    %v2053 = vpack.c.b16 %v1429, %v1425
    %v2054 = vpack.c.b16 %v1434, %v1430
    %v2055 = vpack.c.b16 %v1435, %v1431
    %v2056 = vpack.c.b16 %v1436, %v1432
    %v2057 = vpack.c.b16 %v1437, %v1433
    %v2058 = vpack.c.b16 %v1442, %v1438
    %v2059 = vpack.c.b16 %v1443, %v1439
    %v2060 = vpack.c.b16 %v1444, %v1440
    %v2061 = vpack.c.b16 %v1445, %v1441
    %v2062 = vpack.c.b16 %v1450, %v1446
    %v2063 = vpack.c.b16 %v1451, %v1447
    %v2064 = vpack.c.b16 %v1452, %v1448
    %v2065 = vpack.c.b16 %v1453, %v1449
    %v2066 = vpack.c.b16 %v1458, %v1454
    %v2067 = vpack.c.b16 %v1459, %v1455
    %v2068 = vpack.c.b16 %v1460, %v1456
    %v2069 = vpack.c.b16 %v1461, %v1457
    %v2070 = vpack.c.b16 %v1466, %v1462
    %v2071 = vpack.c.b16 %v1467, %v1463
    %v2072 = vpack.c.b16 %v1468, %v1464
    %v2073 = vpack.c.b16 %v1469, %v1465
    %v2074 = vpack.c.b16 %v1474, %v1470
    %v2075 = vpack.c.b16 %v1475, %v1471
    %v2076 = vpack.c.b16 %v1476, %v1472
    %v2077 = vpack.c.b16 %v1477, %v1473
    %v2078 = vpack.c.b16 %v1482, %v1478
    %v2079 = vpack.c.b16 %v1483, %v1479
    %v2080 = vpack.c.b16 %v1484, %v1480
    %v2081 = vpack.c.b16 %v1485, %v1481
    %v2082 = vpack.c.b16 %v1490, %v1486
    %v2083 = vpack.c.b16 %v1491, %v1487
    %v2084 = vpack.c.b16 %v1492, %v1488
    %v2085 = vpack.c.b16 %v1493, %v1489
    %v2086 = vpack.c.b16 %v1498, %v1494
    %v2087 = vpack.c.b16 %v1499, %v1495
    %v2088 = vpack.c.b16 %v1500, %v1496
    %v2089 = vpack.c.b16 %v1501, %v1497
    %v2090 = vpack.c.b16 %v1506, %v1502
    %v2091 = vpack.c.b16 %v1507, %v1503
    %v2092 = vpack.c.b16 %v1508, %v1504
    %v2093 = vpack.c.b16 %v1509, %v1505
    %v2094 = vpack.c.b16 %v1514, %v1510
    %v2095 = vpack.c.b16 %v1515, %v1511
    %v2096 = vpack.c.b16 %v1516, %v1512
    %v2097 = vpack.c.b16 %v1517, %v1513
    %v2098 = vpack.c.b16 %v1522, %v1518
    %v2099 = vpack.c.b16 %v1523, %v1519
    %v2100 = vpack.c.b16 %v1524, %v1520
    %v2101 = vpack.c.b16 %v1525, %v1521
    %v2102 = vpack.c.b16 %v1530, %v1526
    %v2103 = vpack.c.b16 %v1531, %v1527
    %v2104 = vpack.c.b16 %v1532, %v1528
    %v2105 = vpack.c.b16 %v1533, %v1529
    %v2106 = vpack.c.b16 %v1538, %v1534
    %v2107 = vpack.c.b16 %v1539, %v1535
    %v2108 = vpack.c.b16 %v1540, %v1536
    %v2109 = vpack.c.b16 %v1541, %v1537
    %v2110 = vpack.c.b16 %v1546, %v1542
    %v2111 = vpack.c.b16 %v1547, %v1543
    %v2112 = vpack.c.b16 %v1548, %v1544
    %v2113 = vpack.c.b16 %v1549, %v1545
    %v2114 = vpack.c.b16 %v1554, %v1550
    %v2115 = vpack.c.b16 %v1555, %v1551
    %v2116 = vpack.c.b16 %v1556, %v1552
    %v2117 = vpack.c.b16 %v1557, %v1553
    %v2118 = vpack.c.b16 %v1562, %v1558
    %v2119 = vpack.c.b16 %v1563, %v1559
    %v2120 = vpack.c.b16 %v1564, %v1560
    %v2121 = vpack.c.b16 %v1565, %v1561
    %v2122 = vpack.c.b16 %v1570, %v1566
    %v2123 = vpack.c.b16 %v1571, %v1567
    %v2124 = vpack.c.b16 %v1572, %v1568
    %v2125 = vpack.c.b16 %v1573, %v1569
    %v2126 = vpack.c.b16 %v1578, %v1574
    %v2127 = vpack.c.b16 %v1579, %v1575
    %v2128 = vpack.c.b16 %v1580, %v1576
    %v2129 = vpack.c.b16 %v1581, %v1577
    %v2130 = vpack.c.b16 %v1586, %v1582
    %v2131 = vpack.c.b16 %v1587, %v1583
    %v2132 = vpack.c.b16 %v1588, %v1584
    %v2133 = vpack.c.b16 %v1589, %v1585
    %v2134 = vpack.c.b16 %v1594, %v1590
    %v2135 = vpack.c.b16 %v1595, %v1591
    %v2136 = vpack.c.b16 %v1596, %v1592
    %v2137 = vpack.c.b16 %v1597, %v1593
    %v2138 = vpack.c.b16 %v1602, %v1598
    %v2139 = vpack.c.b16 %v1603, %v1599
    %v2140 = vpack.c.b16 %v1604, %v1600
    %v2141 = vpack.c.b16 %v1605, %v1601
    %v2142 = vpack.c.b16 %v1610, %v1606
    %v2143 = vpack.c.b16 %v1611, %v1607
    %v2144 = vpack.c.b16 %v1612, %v1608
    %v2145 = vpack.c.b16 %v1613, %v1609
    %v2146 = vpack.c.b16 %v1618, %v1614
    %v2147 = vpack.c.b16 %v1619, %v1615
    %v2148 = vpack.c.b16 %v1620, %v1616
    %v2149 = vpack.c.b16 %v1621, %v1617
    %v2150 = vpack.c.b16 %v1626, %v1622
    %v2151 = vpack.c.b16 %v1627, %v1623
    %v2152 = vpack.c.b16 %v1628, %v1624
    %v2153 = vpack.c.b16 %v1629, %v1625
    %v2154 = vpack.c.b16 %v1634, %v1630
    %v2155 = vpack.c.b16 %v1635, %v1631
    %v2156 = vpack.c.b16 %v1636, %v1632
    %v2157 = vpack.c.b16 %v1637, %v1633
    %v2158 = vpack.c.b16 %v1642, %v1638
    %v2159 = vpack.c.b16 %v1643, %v1639
    %v2160 = vpack.c.b16 %v1644, %v1640
    %v2161 = vpack.c.b16 %v1645, %v1641
    %v2162 = vpack.c.b16 %v1650, %v1646
    %v2163 = vpack.c.b16 %v1651, %v1647
    %v2164 = vpack.c.b16 %v1652, %v1648
    %v2165 = vpack.c.b16 %v1653, %v1649
    %v2166 = vpack.c.b16 %v1658, %v1654
    %v2167 = vpack.c.b16 %v1659, %v1655
    %v2168 = vpack.c.b16 %v1660, %v1656
    %v2169 = vpack.c.b16 %v1661, %v1657
    %v2170 = vpack.c.b16 %v1666, %v1662
    %v2171 = vpack.c.b16 %v1667, %v1663
    %v2172 = vpack.c.b16 %v1668, %v1664
    %v2173 = vpack.c.b16 %v1669, %v1665
    %v2174 = vpack.c.b16 %v1674, %v1670
    %v2175 = vpack.c.b16 %v1675, %v1671
    %v2176 = vpack.c.b16 %v1676, %v1672
    %v2177 = vpack.c.b16 %v1677, %v1673
    %v2178 = vpack.c.b16 %v1682, %v1678
    %v2179 = vpack.c.b16 %v1683, %v1679
    %v2180 = vpack.c.b16 %v1684, %v1680
    %v2181 = vpack.c.b16 %v1685, %v1681
    %v2182 = vpack.c.b16 %v1690, %v1686
    %v2183 = vpack.c.b16 %v1691, %v1687
    %v2184 = vpack.c.b16 %v1692, %v1688
    %v2185 = vpack.c.b16 %v1693, %v1689
    %v2186 = vpack.c.b16 %v1698, %v1694
    %v2187 = vpack.c.b16 %v1699, %v1695
    %v2188 = vpack.c.b16 %v1700, %v1696
    %v2189 = vpack.c.b16 %v1701, %v1697
    %v2190 = vpack.c.b16 %v1706, %v1702
    %v2191 = vpack.c.b16 %v1707, %v1703
    %v2192 = vpack.c.b16 %v1708, %v1704
    %v2193 = vpack.c.b16 %v1709, %v1705
    %v2194 = vpack.c.b16 %v1714, %v1710
    %v2195 = vpack.c.b16 %v1715, %v1711
    %v2196 = vpack.c.b16 %v1716, %v1712
    %v2197 = vpack.c.b16 %v1717, %v1713
    %v2198 = vpack.c.b16 %v1722, %v1718
    %v2199 = vpack.c.b16 %v1723, %v1719
    %v2200 = vpack.c.b16 %v1724, %v1720
    %v2201 = vpack.c.b16 %v1725, %v1721
    %v2202 = vpack.c.b16 %v1730, %v1726
    %v2203 = vpack.c.b16 %v1731, %v1727
    %v2204 = vpack.c.b16 %v1732, %v1728
    %v2205 = vpack.c.b16 %v1733, %v1729
    %v2206 = vpack.c.b16 %v1738, %v1734
    %v2207 = vpack.c.b16 %v1739, %v1735
    %v2208 = vpack.c.b16 %v1740, %v1736
    %v2209 = vpack.c.b16 %v1741, %v1737
    %v2210 = vpack.c.b16 %v1746, %v1742
    %v2211 = vpack.c.b16 %v1747, %v1743
    %v2212 = vpack.c.b16 %v1748, %v1744
    %v2213 = vpack.c.b16 %v1749, %v1745
    %v2214 = vpack.c.b16 %v1754, %v1750
    %v2215 = vpack.c.b16 %v1755, %v1751
    %v2216 = vpack.c.b16 %v1756, %v1752
    %v2217 = vpack.c.b16 %v1757, %v1753
    %v2218 = vpack.c.b16 %v1762, %v1758
    %v2219 = vpack.c.b16 %v1763, %v1759
    %v2220 = vpack.c.b16 %v1764, %v1760
    %v2221 = vpack.c.b16 %v1765, %v1761
    %v2222 = vpack.c.b16 %v1770, %v1766
    %v2223 = vpack.c.b16 %v1771, %v1767
    %v2224 = vpack.c.b16 %v1772, %v1768
    %v2225 = vpack.c.b16 %v1773, %v1769
    %v2226 = vpack.c.b16 %v1778, %v1774
    %v2227 = vpack.c.b16 %v1779, %v1775
    %v2228 = vpack.c.b16 %v1780, %v1776
    %v2229 = vpack.c.b16 %v1781, %v1777
    %v2230 = vpack.c.b16 %v1786, %v1782
    %v2231 = vpack.c.b16 %v1787, %v1783
    %v2232 = vpack.c.b16 %v1788, %v1784
    %v2233 = vpack.c.b16 %v1789, %v1785
    %v2234 = vpack.c.b16 %v1794, %v1790
    %v2235 = vpack.c.b16 %v1795, %v1791
    %v2236 = vpack.c.b16 %v1796, %v1792
    %v2237 = vpack.c.b16 %v1797, %v1793
    %v2238 = vpack.c.b16 %v1802, %v1798
    %v2239 = vpack.c.b16 %v1803, %v1799
    %v2240 = vpack.c.b16 %v1804, %v1800
    %v2241 = vpack.c.b16 %v1805, %v1801
    %v2242 = vpack.c.b16 %v1810, %v1806
    %v2243 = vpack.c.b16 %v1811, %v1807
    %v2244 = vpack.c.b16 %v1812, %v1808
    %v2245 = vpack.c.b16 %v1813, %v1809
    %v2246 = vpack.c.b16 %v1818, %v1814
    %v2247 = vpack.c.b16 %v1819, %v1815
    %v2248 = vpack.c.b16 %v1820, %v1816
    %v2249 = vpack.c.b16 %v1821, %v1817
    %v2250 = vpack.c.b16 %v1826, %v1822
    %v2251 = vpack.c.b16 %v1827, %v1823
    %v2252 = vpack.c.b16 %v1828, %v1824
    %v2253 = vpack.c.b16 %v1829, %v1825
    %v2254 = vpack.c.b16 %v1834, %v1830
    %v2255 = vpack.c.b16 %v1835, %v1831
    %v2256 = vpack.c.b16 %v1836, %v1832
    %v2257 = vpack.c.b16 %v1837, %v1833
    %v2258 = vpack.c.b16 %v1842, %v1838
    %v2259 = vpack.c.b16 %v1843, %v1839
    %v2260 = vpack.c.b16 %v1844, %v1840
    %v2261 = vpack.c.b16 %v1845, %v1841
    %2678 = vmatprep.subr.bf16.mxu0 %v1847
    %2679 = vmatpush1.bf16.msra.mxu0 %v1846
    %2680 = vmatprep.subr.bf16.mxu0 %v1851
    %2681 = vmatpush1.bf16.msra.mxu0 %v1850
    %2682 = vmatprep.subr.bf16.mxu0 %v1855
    %2683 = vmatpush1.bf16.msra.mxu0 %v1854
    %2684 = vmatprep.subr.bf16.mxu0 %v1859
    %2685 = vmatpush1.bf16.msra.mxu0 %v1858
    %2686 = vmatprep.subr.bf16.mxu0 %v1863
    %2687 = vmatpush1.bf16.msra.mxu0 %v1862
    %2688 = vmatprep.subr.bf16.mxu0 %v1867
    %2689 = vmatpush1.bf16.msra.mxu0 %v1866
    %2690 = vmatprep.subr.bf16.mxu0 %v1871
    %2691 = vmatpush1.bf16.msra.mxu0 %v1870
    %2692 = vmatprep.subr.bf16.mxu0 %v1875
    %2693 = vmatpush1.bf16.msra.mxu0 %v1874
    %2694 = vmatprep.subr.bf16.mxu0 %v1879
    %2695 = vmatpush1.bf16.msra.mxu0 %v1878
    %2696 = vmatprep.subr.bf16.mxu0 %v1883
    %2697 = vmatpush1.bf16.msra.mxu0 %v1882
    %2698 = vmatprep.subr.bf16.mxu0 %v1887
    %2699 = vmatpush1.bf16.msra.mxu0 %v1886
    %2700 = vmatprep.subr.bf16.mxu0 %v1891
    %2701 = vmatpush1.bf16.msra.mxu0 %v1890
    %2702 = vmatprep.subr.bf16.mxu0 %v1895
    %2703 = vmatpush1.bf16.msra.mxu0 %v1894
    %2704 = vmatprep.subr.bf16.mxu0 %v1899
    %2705 = vmatpush1.bf16.msra.mxu0 %v1898
    %2706 = vmatprep.subr.bf16.mxu0 %v1903
    %2707 = vmatpush1.bf16.msra.mxu0 %v1902
    %2708 = vmatprep.subr.bf16.mxu0 %v1907
    %2709 = vmatpush1.bf16.msra.mxu0 %v1906
    %2710 = vmatprep.mubr.bf16.mxu0 %v573
    %2711 = vmatmul.mubr.bf16.gmra.mrb[0].mxu0 %v572
    %v2712 = vpop.f32.mrb[0].mxu0
    %v2713 = vadd.f32 %v535, %v2712
    %v2714 = vpop.f32.mrb[0].mxu0
    %v2715 = vadd.f32 %v539, %v2714
    %v2716 = vpop.f32.mrb[0].mxu0
    %v2717 = vpop.f32.mrb[0].mxu0
    %2718 = vdwg.mxu0
    %2719 = vmatprep.subr.bf16.mxu0 %v1911
    %2720 = vmatpush1.bf16.msra.mxu0 %v1910
    %2721 = vmatprep.subr.bf16.mxu0 %v1915
    %2722 = vmatpush1.bf16.msra.mxu0 %v1914
    %2723 = vmatprep.subr.bf16.mxu0 %v1919
    %2724 = vmatpush1.bf16.msra.mxu0 %v1918
    %2725 = vmatprep.subr.bf16.mxu0 %v1923
    %2726 = vmatpush1.bf16.msra.mxu0 %v1922
    %2727 = vmatprep.subr.bf16.mxu0 %v1927
    %2728 = vmatpush1.bf16.msra.mxu0 %v1926
    %2729 = vmatprep.subr.bf16.mxu0 %v1931
    %2730 = vmatpush1.bf16.msra.mxu0 %v1930
    %2731 = vmatprep.subr.bf16.mxu0 %v1935
    %2732 = vmatpush1.bf16.msra.mxu0 %v1934
    %2733 = vmatprep.subr.bf16.mxu0 %v1939
    %2734 = vmatpush1.bf16.msra.mxu0 %v1938
    %2735 = vmatprep.subr.bf16.mxu0 %v1943
    %2736 = vmatpush1.bf16.msra.mxu0 %v1942
    %2737 = vmatprep.subr.bf16.mxu0 %v1947
    %2738 = vmatpush1.bf16.msra.mxu0 %v1946
    %2739 = vmatprep.subr.bf16.mxu0 %v1951
    %2740 = vmatpush1.bf16.msra.mxu0 %v1950
    %2741 = vmatprep.subr.bf16.mxu0 %v1955
    %2742 = vmatpush1.bf16.msra.mxu0 %v1954
    %2743 = vmatprep.subr.bf16.mxu0 %v1959
    %2744 = vmatpush1.bf16.msra.mxu0 %v1958
    %2745 = vmatprep.subr.bf16.mxu0 %v1963
    %2746 = vmatpush1.bf16.msra.mxu0 %v1962
    %2747 = vmatprep.subr.bf16.mxu0 %v1967
    %2748 = vmatpush1.bf16.msra.mxu0 %v1966
    %2749 = vmatprep.subr.bf16.mxu0 %v1971
    %2750 = vmatpush1.bf16.msra.mxu0 %v1970
    %2751 = vmatprep.mubr.bf16.mxu0 %v575
    %2752 = vmatmul.mubr.bf16.gmra.mrb[0].mxu0 %v574
    %v2753 = vpop.f32.mrb[0].mxu0
    %v2754 = vadd.f32 %v2713, %v2753
    %v2755 = vpop.f32.mrb[0].mxu0
    %v2756 = vadd.f32 %v2715, %v2755
    %v2757 = vpop.f32.mrb[0].mxu0
    %v2758 = vpop.f32.mrb[0].mxu0
    %2759 = vdwg.mxu0
    %2760 = vmatprep.subr.bf16.mxu0 %v1975
    %2761 = vmatpush1.bf16.msra.mxu0 %v1974
    %2762 = vmatprep.subr.bf16.mxu0 %v1979
    %2763 = vmatpush1.bf16.msra.mxu0 %v1978
    %2764 = vmatprep.subr.bf16.mxu0 %v1983
    %2765 = vmatpush1.bf16.msra.mxu0 %v1982
    %2766 = vmatprep.subr.bf16.mxu0 %v1987
    %2767 = vmatpush1.bf16.msra.mxu0 %v1986
    %2768 = vmatprep.subr.bf16.mxu0 %v1991
    %2769 = vmatpush1.bf16.msra.mxu0 %v1990
    %2770 = vmatprep.subr.bf16.mxu0 %v1995
    %2771 = vmatpush1.bf16.msra.mxu0 %v1994
    %2772 = vmatprep.subr.bf16.mxu0 %v1999
    %2773 = vmatpush1.bf16.msra.mxu0 %v1998
    %2774 = vmatprep.subr.bf16.mxu0 %v2003
    %2775 = vmatpush1.bf16.msra.mxu0 %v2002
    %2776 = vmatprep.subr.bf16.mxu0 %v2007
    %2777 = vmatpush1.bf16.msra.mxu0 %v2006
    %2778 = vmatprep.subr.bf16.mxu0 %v2011
    %2779 = vmatpush1.bf16.msra.mxu0 %v2010
    %2780 = vmatprep.subr.bf16.mxu0 %v2015
    %2781 = vmatpush1.bf16.msra.mxu0 %v2014
    %2782 = vmatprep.subr.bf16.mxu0 %v2019
    %2783 = vmatpush1.bf16.msra.mxu0 %v2018
    %2784 = vmatprep.subr.bf16.mxu0 %v2023
    %2785 = vmatpush1.bf16.msra.mxu0 %v2022
    %2786 = vmatprep.subr.bf16.mxu0 %v2027
    %2787 = vmatpush1.bf16.msra.mxu0 %v2026
    %2788 = vmatprep.subr.bf16.mxu0 %v2031
    %2789 = vmatpush1.bf16.msra.mxu0 %v2030
    %2790 = vmatprep.subr.bf16.mxu0 %v2035
    %2791 = vmatpush1.bf16.msra.mxu0 %v2034
    %2792 = vmatprep.mubr.bf16.mxu0 %v577
    %2793 = vmatmul.mubr.bf16.gmra.mrb[0].mxu0 %v576
    %v2794 = vpop.f32.mrb[0].mxu0
    %v2795 = vadd.f32 %v2754, %v2794
    %v2796 = vpop.f32.mrb[0].mxu0
    %v2797 = vadd.f32 %v2756, %v2796
    %v2798 = vpop.f32.mrb[0].mxu0
    %v2799 = vpop.f32.mrb[0].mxu0
    %2800 = vdwg.mxu0
    %2801 = vmatprep.subr.bf16.mxu0 %v2039
    %2802 = vmatpush1.bf16.msra.mxu0 %v2038
    %2803 = vmatprep.subr.bf16.mxu0 %v2043
    %2804 = vmatpush1.bf16.msra.mxu0 %v2042
    %2805 = vmatprep.subr.bf16.mxu0 %v2047
    %2806 = vmatpush1.bf16.msra.mxu0 %v2046
    %2807 = vmatprep.subr.bf16.mxu0 %v2051
    %2808 = vmatpush1.bf16.msra.mxu0 %v2050
    %2809 = vmatprep.subr.bf16.mxu0 %v2055
    %2810 = vmatpush1.bf16.msra.mxu0 %v2054
    %2811 = vmatprep.subr.bf16.mxu0 %v2059
    %2812 = vmatpush1.bf16.msra.mxu0 %v2058
    %2813 = vmatprep.subr.bf16.mxu0 %v2063
    %2814 = vmatpush1.bf16.msra.mxu0 %v2062
    %2815 = vmatprep.subr.bf16.mxu0 %v2067
    %2816 = vmatpush1.bf16.msra.mxu0 %v2066
    %2817 = vmatprep.subr.bf16.mxu0 %v2071
    %2818 = vmatpush1.bf16.msra.mxu0 %v2070
    %2819 = vmatprep.subr.bf16.mxu0 %v2075
    %2820 = vmatpush1.bf16.msra.mxu0 %v2074
    %2821 = vmatprep.subr.bf16.mxu0 %v2079
    %2822 = vmatpush1.bf16.msra.mxu0 %v2078
    %2823 = vmatprep.subr.bf16.mxu0 %v2083
    %2824 = vmatpush1.bf16.msra.mxu0 %v2082
    %2825 = vmatprep.subr.bf16.mxu0 %v2087
    %2826 = vmatpush1.bf16.msra.mxu0 %v2086
    %2827 = vmatprep.subr.bf16.mxu0 %v2091
    %2828 = vmatpush1.bf16.msra.mxu0 %v2090
    %2829 = vmatprep.subr.bf16.mxu0 %v2095
    %2830 = vmatpush1.bf16.msra.mxu0 %v2094
    %2831 = vmatprep.subr.bf16.mxu0 %v2099
    %2832 = vmatpush1.bf16.msra.mxu0 %v2098
    %2833 = vmatprep.mubr.bf16.mxu0 %v579
    %2834 = vmatmul.mubr.bf16.gmra.mrb[0].mxu0 %v578
    %v2835 = vpop.f32.mrb[0].mxu0
    %v2836 = vadd.f32 %v2795, %v2835
    %v2837 = vpop.f32.mrb[0].mxu0
    %v2838 = vadd.f32 %v2797, %v2837
    %v2839 = vpop.f32.mrb[0].mxu0
    %v2840 = vpop.f32.mrb[0].mxu0
    %2841 = vdwg.mxu0
    %2842 = vmatprep.subr.bf16.mxu0 %v2103
    %2843 = vmatpush1.bf16.msra.mxu0 %v2102
    %2844 = vmatprep.subr.bf16.mxu0 %v2107
    %2845 = vmatpush1.bf16.msra.mxu0 %v2106
    %2846 = vmatprep.subr.bf16.mxu0 %v2111
    %2847 = vmatpush1.bf16.msra.mxu0 %v2110
    %2848 = vmatprep.subr.bf16.mxu0 %v2115
    %2849 = vmatpush1.bf16.msra.mxu0 %v2114
    %2850 = vmatprep.subr.bf16.mxu0 %v2119
    %2851 = vmatpush1.bf16.msra.mxu0 %v2118
    %2852 = vmatprep.subr.bf16.mxu0 %v2123
    %2853 = vmatpush1.bf16.msra.mxu0 %v2122
    %2854 = vmatprep.subr.bf16.mxu0 %v2127
    %2855 = vmatpush1.bf16.msra.mxu0 %v2126
    %2856 = vmatprep.subr.bf16.mxu0 %v2131
    %2857 = vmatpush1.bf16.msra.mxu0 %v2130
    %2858 = vmatprep.subr.bf16.mxu0 %v2135
    %2859 = vmatpush1.bf16.msra.mxu0 %v2134
    %2860 = vmatprep.subr.bf16.mxu0 %v2139
    %2861 = vmatpush1.bf16.msra.mxu0 %v2138
    %2862 = vmatprep.subr.bf16.mxu0 %v2143
    %2863 = vmatpush1.bf16.msra.mxu0 %v2142
    %2864 = vmatprep.subr.bf16.mxu0 %v2147
    %2865 = vmatpush1.bf16.msra.mxu0 %v2146
    %2866 = vmatprep.subr.bf16.mxu0 %v2151
    %2867 = vmatpush1.bf16.msra.mxu0 %v2150
    %2868 = vmatprep.subr.bf16.mxu0 %v2155
    %2869 = vmatpush1.bf16.msra.mxu0 %v2154
    %2870 = vmatprep.subr.bf16.mxu0 %v2159
    %2871 = vmatpush1.bf16.msra.mxu0 %v2158
    %2872 = vmatprep.subr.bf16.mxu0 %v2163
    %2873 = vmatpush1.bf16.msra.mxu0 %v2162
    %2874 = vmatprep.mubr.bf16.mxu0 %v581
    %2875 = vmatmul.mubr.bf16.gmra.mrb[0].mxu0 %v580
    %v2876 = vpop.f32.mrb[0].mxu0
    %v2877 = vadd.f32 %v2836, %v2876
    %v2878 = vpop.f32.mrb[0].mxu0
    %v2879 = vadd.f32 %v2838, %v2878
    %v2880 = vpop.f32.mrb[0].mxu0
    %v2881 = vpop.f32.mrb[0].mxu0
    %2882 = vdwg.mxu0
    %2883 = vmatprep.subr.bf16.mxu0 %v2167
    %2884 = vmatpush1.bf16.msra.mxu0 %v2166
    %2885 = vmatprep.subr.bf16.mxu0 %v2171
    %2886 = vmatpush1.bf16.msra.mxu0 %v2170
    %2887 = vmatprep.subr.bf16.mxu0 %v2175
    %2888 = vmatpush1.bf16.msra.mxu0 %v2174
    %2889 = vmatprep.subr.bf16.mxu0 %v2179
    %2890 = vmatpush1.bf16.msra.mxu0 %v2178
    %2891 = vmatprep.subr.bf16.mxu0 %v2183
    %2892 = vmatpush1.bf16.msra.mxu0 %v2182
    %2893 = vmatprep.subr.bf16.mxu0 %v2187
    %2894 = vmatpush1.bf16.msra.mxu0 %v2186
    %2895 = vmatprep.subr.bf16.mxu0 %v2191
    %2896 = vmatpush1.bf16.msra.mxu0 %v2190
    %2897 = vmatprep.subr.bf16.mxu0 %v2195
    %2898 = vmatpush1.bf16.msra.mxu0 %v2194
    %2899 = vmatprep.subr.bf16.mxu0 %v2199
    %2900 = vmatpush1.bf16.msra.mxu0 %v2198
    %2901 = vmatprep.subr.bf16.mxu0 %v2203
    %2902 = vmatpush1.bf16.msra.mxu0 %v2202
    %2903 = vmatprep.subr.bf16.mxu0 %v2207
    %2904 = vmatpush1.bf16.msra.mxu0 %v2206
    %2905 = vmatprep.subr.bf16.mxu0 %v2211
    %2906 = vmatpush1.bf16.msra.mxu0 %v2210
    %2907 = vmatprep.subr.bf16.mxu0 %v2215
    %2908 = vmatpush1.bf16.msra.mxu0 %v2214
    %2909 = vmatprep.subr.bf16.mxu0 %v2219
    %2910 = vmatpush1.bf16.msra.mxu0 %v2218
    %2911 = vmatprep.subr.bf16.mxu0 %v2223
    %2912 = vmatpush1.bf16.msra.mxu0 %v2222
    %2913 = vmatprep.subr.bf16.mxu0 %v2227
    %2914 = vmatpush1.bf16.msra.mxu0 %v2226
    %2915 = vmatprep.mubr.bf16.mxu0 %v583
    %2916 = vmatmul.mubr.bf16.gmra.mrb[0].mxu0 %v582
    %v2917 = vpop.f32.mrb[0].mxu0
    %v2918 = vadd.f32 %v2877, %v2917
    %v2919 = vpop.f32.mrb[0].mxu0
    %v2920 = vadd.f32 %v2879, %v2919
    %v2921 = vpop.f32.mrb[0].mxu0
    %v2922 = vpop.f32.mrb[0].mxu0
    %2923 = vdwg.mxu0
    %2924 = vmatprep.subr.bf16.mxu0 %v2231
    %2925 = vmatpush1.bf16.msra.mxu0 %v2230
    %2926 = vmatprep.subr.bf16.mxu0 %v2235
    %2927 = vmatpush1.bf16.msra.mxu0 %v2234
    %2928 = vmatprep.subr.bf16.mxu0 %v2239
    %2929 = vmatpush1.bf16.msra.mxu0 %v2238
    %2930 = vmatprep.subr.bf16.mxu0 %v2243
    %2931 = vmatpush1.bf16.msra.mxu0 %v2242
    %2932 = vmatprep.subr.bf16.mxu0 %v2247
    %2933 = vmatpush1.bf16.msra.mxu0 %v2246
    %2934 = vmatprep.subr.bf16.mxu0 %v2251
    %2935 = vmatpush1.bf16.msra.mxu0 %v2250
    %2936 = vmatprep.subr.bf16.mxu0 %v2255
    %2937 = vmatpush1.bf16.msra.mxu0 %v2254
    %2938 = vmatprep.subr.bf16.mxu0 %v2259
    %2939 = vmatpush1.bf16.msra.mxu0 %v2258
    %2940 = vmatprep.subr.bf16.mxu0 0
    %2941 = vmatpush1.bf16.msra.mxu0 0
    %2942 = vmatprep.subr.bf16.mxu0 0
    %2943 = vmatpush1.bf16.msra.mxu0 0
    %2944 = vmatprep.subr.bf16.mxu0 0
    %2945 = vmatpush1.bf16.msra.mxu0 0
    %2946 = vmatprep.subr.bf16.mxu0 0
    %2947 = vmatpush1.bf16.msra.mxu0 0
    %2948 = vmatprep.subr.bf16.mxu0 0
    %2949 = vmatpush1.bf16.msra.mxu0 0
    %2950 = vmatprep.subr.bf16.mxu0 0
    %2951 = vmatpush1.bf16.msra.mxu0 0
    %2952 = vmatprep.subr.bf16.mxu0 0
    %2953 = vmatpush1.bf16.msra.mxu0 0
    %2954 = vmatprep.subr.bf16.mxu0 0
    %2955 = vmatpush1.bf16.msra.mxu0 0
    %2956 = vmatprep.mubr.bf16.mxu0 0
    %2957 = vmatmul.mubr.bf16.gmra.mrb[0].mxu0 %v584
    %v2958 = vpop.f32.mrb[0].mxu0
    %v2959 = vadd.f32 %v2918, %v2958
    %v2960 = vpop.f32.mrb[0].mxu0
    %v2961 = vadd.f32 %v2920, %v2960
    %v2962 = vpop.f32.mrb[0].mxu0
    %v2963 = vpop.f32.mrb[0].mxu0
    %2964 = vdwg.mxu0
    %2965 = vmatprep.subr.bf16.mxu0 %v1849
    %2966 = vmatpush1.bf16.msra.mxu0 %v1848
    %2967 = vmatprep.subr.bf16.mxu0 %v1853
    %2968 = vmatpush1.bf16.msra.mxu0 %v1852
    %2969 = vmatprep.subr.bf16.mxu0 %v1857
    %2970 = vmatpush1.bf16.msra.mxu0 %v1856
    %2971 = vmatprep.subr.bf16.mxu0 %v1861
    %2972 = vmatpush1.bf16.msra.mxu0 %v1860
    %2973 = vmatprep.subr.bf16.mxu0 %v1865
    %2974 = vmatpush1.bf16.msra.mxu0 %v1864
    %2975 = vmatprep.subr.bf16.mxu0 %v1869
    %2976 = vmatpush1.bf16.msra.mxu0 %v1868
    %2977 = vmatprep.subr.bf16.mxu0 %v1873
    %2978 = vmatpush1.bf16.msra.mxu0 %v1872
    %2979 = vmatprep.subr.bf16.mxu0 %v1877
    %2980 = vmatpush1.bf16.msra.mxu0 %v1876
    %2981 = vmatprep.subr.bf16.mxu0 %v1881
    %2982 = vmatpush1.bf16.msra.mxu0 %v1880
    %2983 = vmatprep.subr.bf16.mxu0 %v1885
    %2984 = vmatpush1.bf16.msra.mxu0 %v1884
    %2985 = vmatprep.subr.bf16.mxu0 %v1889
    %2986 = vmatpush1.bf16.msra.mxu0 %v1888
    %2987 = vmatprep.subr.bf16.mxu0 %v1893
    %2988 = vmatpush1.bf16.msra.mxu0 %v1892
    %2989 = vmatprep.subr.bf16.mxu0 %v1897
    %2990 = vmatpush1.bf16.msra.mxu0 %v1896
    %2991 = vmatprep.subr.bf16.mxu0 %v1901
    %2992 = vmatpush1.bf16.msra.mxu0 %v1900
    %2993 = vmatprep.subr.bf16.mxu0 %v1905
    %2994 = vmatpush1.bf16.msra.mxu0 %v1904
    %2995 = vmatprep.subr.bf16.mxu0 %v1909
    %2996 = vmatpush1.bf16.msra.mxu0 %v1908
    %2997 = vmatprep.mubr.bf16.mxu0 %v573
    %2998 = vmatmul.mubr.bf16.gmra.mrb[0].mxu0 %v572
    %v2999 = vpop.f32.mrb[0].mxu0
    %v3000 = vadd.f32 %v543, %v2999
    %v3001 = vpop.f32.mrb[0].mxu0
    %v3002 = vadd.f32 %v547, %v3001
    %v3003 = vpop.f32.mrb[0].mxu0
    %v3004 = vpop.f32.mrb[0].mxu0
    %3005 = vdwg.mxu0
    %3006 = vmatprep.subr.bf16.mxu0 %v1913
    %3007 = vmatpush1.bf16.msra.mxu0 %v1912
    %3008 = vmatprep.subr.bf16.mxu0 %v1917
    %3009 = vmatpush1.bf16.msra.mxu0 %v1916
    %3010 = vmatprep.subr.bf16.mxu0 %v1921
    %3011 = vmatpush1.bf16.msra.mxu0 %v1920
    %3012 = vmatprep.subr.bf16.mxu0 %v1925
    %3013 = vmatpush1.bf16.msra.mxu0 %v1924
    %3014 = vmatprep.subr.bf16.mxu0 %v1929
    %3015 = vmatpush1.bf16.msra.mxu0 %v1928
    %3016 = vmatprep.subr.bf16.mxu0 %v1933
    %3017 = vmatpush1.bf16.msra.mxu0 %v1932
    %3018 = vmatprep.subr.bf16.mxu0 %v1937
    %3019 = vmatpush1.bf16.msra.mxu0 %v1936
    %3020 = vmatprep.subr.bf16.mxu0 %v1941
    %3021 = vmatpush1.bf16.msra.mxu0 %v1940
    %3022 = vmatprep.subr.bf16.mxu0 %v1945
    %3023 = vmatpush1.bf16.msra.mxu0 %v1944
    %3024 = vmatprep.subr.bf16.mxu0 %v1949
    %3025 = vmatpush1.bf16.msra.mxu0 %v1948
    %3026 = vmatprep.subr.bf16.mxu0 %v1953
    %3027 = vmatpush1.bf16.msra.mxu0 %v1952
    %3028 = vmatprep.subr.bf16.mxu0 %v1957
    %3029 = vmatpush1.bf16.msra.mxu0 %v1956
    %3030 = vmatprep.subr.bf16.mxu0 %v1961
    %3031 = vmatpush1.bf16.msra.mxu0 %v1960
    %3032 = vmatprep.subr.bf16.mxu0 %v1965
    %3033 = vmatpush1.bf16.msra.mxu0 %v1964
    %3034 = vmatprep.subr.bf16.mxu0 %v1969
    %3035 = vmatpush1.bf16.msra.mxu0 %v1968
    %3036 = vmatprep.subr.bf16.mxu0 %v1973
    %3037 = vmatpush1.bf16.msra.mxu0 %v1972
    %3038 = vmatprep.mubr.bf16.mxu0 %v575
    %3039 = vmatmul.mubr.bf16.gmra.mrb[0].mxu0 %v574
    %v3040 = vpop.f32.mrb[0].mxu0
    %v3041 = vadd.f32 %v3000, %v3040
    %v3042 = vpop.f32.mrb[0].mxu0
    %v3043 = vadd.f32 %v3002, %v3042
    %v3044 = vpop.f32.mrb[0].mxu0
    %v3045 = vpop.f32.mrb[0].mxu0
    %3046 = vdwg.mxu0
    %3047 = vmatprep.subr.bf16.mxu0 %v1977
    %3048 = vmatpush1.bf16.msra.mxu0 %v1976
    %3049 = vmatprep.subr.bf16.mxu0 %v1981
    %3050 = vmatpush1.bf16.msra.mxu0 %v1980
    %3051 = vmatprep.subr.bf16.mxu0 %v1985
    %3052 = vmatpush1.bf16.msra.mxu0 %v1984
    %3053 = vmatprep.subr.bf16.mxu0 %v1989
    %3054 = vmatpush1.bf16.msra.mxu0 %v1988
    %3055 = vmatprep.subr.bf16.mxu0 %v1993
    %3056 = vmatpush1.bf16.msra.mxu0 %v1992
    %3057 = vmatprep.subr.bf16.mxu0 %v1997
    %3058 = vmatpush1.bf16.msra.mxu0 %v1996
    %3059 = vmatprep.subr.bf16.mxu0 %v2001
    %3060 = vmatpush1.bf16.msra.mxu0 %v2000
    %3061 = vmatprep.subr.bf16.mxu0 %v2005
    %3062 = vmatpush1.bf16.msra.mxu0 %v2004
    %3063 = vmatprep.subr.bf16.mxu0 %v2009
    %3064 = vmatpush1.bf16.msra.mxu0 %v2008
    %3065 = vmatprep.subr.bf16.mxu0 %v2013
    %3066 = vmatpush1.bf16.msra.mxu0 %v2012
    %3067 = vmatprep.subr.bf16.mxu0 %v2017
    %3068 = vmatpush1.bf16.msra.mxu0 %v2016
    %3069 = vmatprep.subr.bf16.mxu0 %v2021
    %3070 = vmatpush1.bf16.msra.mxu0 %v2020
    %3071 = vmatprep.subr.bf16.mxu0 %v2025
    %3072 = vmatpush1.bf16.msra.mxu0 %v2024
    %3073 = vmatprep.subr.bf16.mxu0 %v2029
    %3074 = vmatpush1.bf16.msra.mxu0 %v2028
    %3075 = vmatprep.subr.bf16.mxu0 %v2033
    %3076 = vmatpush1.bf16.msra.mxu0 %v2032
    %3077 = vmatprep.subr.bf16.mxu0 %v2037
    %3078 = vmatpush1.bf16.msra.mxu0 %v2036
    %3079 = vmatprep.mubr.bf16.mxu0 %v577
    %3080 = vmatmul.mubr.bf16.gmra.mrb[0].mxu0 %v576
    %v3081 = vpop.f32.mrb[0].mxu0
    %v3082 = vadd.f32 %v3041, %v3081
    %v3083 = vpop.f32.mrb[0].mxu0
    %v3084 = vadd.f32 %v3043, %v3083
    %v3085 = vpop.f32.mrb[0].mxu0
    %v3086 = vpop.f32.mrb[0].mxu0
    %3087 = vdwg.mxu0
    %3088 = vmatprep.subr.bf16.mxu0 %v2041
    %3089 = vmatpush1.bf16.msra.mxu0 %v2040
    %3090 = vmatprep.subr.bf16.mxu0 %v2045
    %3091 = vmatpush1.bf16.msra.mxu0 %v2044
    %3092 = vmatprep.subr.bf16.mxu0 %v2049
    %3093 = vmatpush1.bf16.msra.mxu0 %v2048
    %3094 = vmatprep.subr.bf16.mxu0 %v2053
    %3095 = vmatpush1.bf16.msra.mxu0 %v2052
    %3096 = vmatprep.subr.bf16.mxu0 %v2057
    %3097 = vmatpush1.bf16.msra.mxu0 %v2056
    %3098 = vmatprep.subr.bf16.mxu0 %v2061
    %3099 = vmatpush1.bf16.msra.mxu0 %v2060
    %3100 = vmatprep.subr.bf16.mxu0 %v2065
    %3101 = vmatpush1.bf16.msra.mxu0 %v2064
    %3102 = vmatprep.subr.bf16.mxu0 %v2069
    %3103 = vmatpush1.bf16.msra.mxu0 %v2068
    %3104 = vmatprep.subr.bf16.mxu0 %v2073
    %3105 = vmatpush1.bf16.msra.mxu0 %v2072
    %3106 = vmatprep.subr.bf16.mxu0 %v2077
    %3107 = vmatpush1.bf16.msra.mxu0 %v2076
    %3108 = vmatprep.subr.bf16.mxu0 %v2081
    %3109 = vmatpush1.bf16.msra.mxu0 %v2080
    %3110 = vmatprep.subr.bf16.mxu0 %v2085
    %3111 = vmatpush1.bf16.msra.mxu0 %v2084
    %3112 = vmatprep.subr.bf16.mxu0 %v2089
    %3113 = vmatpush1.bf16.msra.mxu0 %v2088
    %3114 = vmatprep.subr.bf16.mxu0 %v2093
    %3115 = vmatpush1.bf16.msra.mxu0 %v2092
    %3116 = vmatprep.subr.bf16.mxu0 %v2097
    %3117 = vmatpush1.bf16.msra.mxu0 %v2096
    %3118 = vmatprep.subr.bf16.mxu0 %v2101
    %3119 = vmatpush1.bf16.msra.mxu0 %v2100
    %3120 = vmatprep.mubr.bf16.mxu0 %v579
    %3121 = vmatmul.mubr.bf16.gmra.mrb[0].mxu0 %v578
    %v3122 = vpop.f32.mrb[0].mxu0
    %v3123 = vadd.f32 %v3082, %v3122
    %v3124 = vpop.f32.mrb[0].mxu0
    %v3125 = vadd.f32 %v3084, %v3124
    %v3126 = vpop.f32.mrb[0].mxu0
    %v3127 = vpop.f32.mrb[0].mxu0
    %3128 = vdwg.mxu0
    %3129 = vmatprep.subr.bf16.mxu0 %v2105
    %3130 = vmatpush1.bf16.msra.mxu0 %v2104
    %3131 = vmatprep.subr.bf16.mxu0 %v2109
    %3132 = vmatpush1.bf16.msra.mxu0 %v2108
    %3133 = vmatprep.subr.bf16.mxu0 %v2113
    %3134 = vmatpush1.bf16.msra.mxu0 %v2112
    %3135 = vmatprep.subr.bf16.mxu0 %v2117
    %3136 = vmatpush1.bf16.msra.mxu0 %v2116
    %3137 = vmatprep.subr.bf16.mxu0 %v2121
    %3138 = vmatpush1.bf16.msra.mxu0 %v2120
    %3139 = vmatprep.subr.bf16.mxu0 %v2125
    %3140 = vmatpush1.bf16.msra.mxu0 %v2124
    %3141 = vmatprep.subr.bf16.mxu0 %v2129
    %3142 = vmatpush1.bf16.msra.mxu0 %v2128
    %3143 = vmatprep.subr.bf16.mxu0 %v2133
    %3144 = vmatpush1.bf16.msra.mxu0 %v2132
    %3145 = vmatprep.subr.bf16.mxu0 %v2137
    %3146 = vmatpush1.bf16.msra.mxu0 %v2136
    %3147 = vmatprep.subr.bf16.mxu0 %v2141
    %3148 = vmatpush1.bf16.msra.mxu0 %v2140
    %3149 = vmatprep.subr.bf16.mxu0 %v2145
    %3150 = vmatpush1.bf16.msra.mxu0 %v2144
    %3151 = vmatprep.subr.bf16.mxu0 %v2149
    %3152 = vmatpush1.bf16.msra.mxu0 %v2148
    %3153 = vmatprep.subr.bf16.mxu0 %v2153
    %3154 = vmatpush1.bf16.msra.mxu0 %v2152
    %3155 = vmatprep.subr.bf16.mxu0 %v2157
    %3156 = vmatpush1.bf16.msra.mxu0 %v2156
    %3157 = vmatprep.subr.bf16.mxu0 %v2161
    %3158 = vmatpush1.bf16.msra.mxu0 %v2160
    %3159 = vmatprep.subr.bf16.mxu0 %v2165
    %3160 = vmatpush1.bf16.msra.mxu0 %v2164
    %3161 = vmatprep.mubr.bf16.mxu0 %v581
    %3162 = vmatmul.mubr.bf16.gmra.mrb[0].mxu0 %v580
    %v3163 = vpop.f32.mrb[0].mxu0
    %v3164 = vadd.f32 %v3123, %v3163
    %v3165 = vpop.f32.mrb[0].mxu0
    %v3166 = vadd.f32 %v3125, %v3165
    %v3167 = vpop.f32.mrb[0].mxu0
    %v3168 = vpop.f32.mrb[0].mxu0
    %3169 = vdwg.mxu0
    %3170 = vmatprep.subr.bf16.mxu0 %v2169
    %3171 = vmatpush1.bf16.msra.mxu0 %v2168
    %3172 = vmatprep.subr.bf16.mxu0 %v2173
    %3173 = vmatpush1.bf16.msra.mxu0 %v2172
    %3174 = vmatprep.subr.bf16.mxu0 %v2177
    %3175 = vmatpush1.bf16.msra.mxu0 %v2176
    %3176 = vmatprep.subr.bf16.mxu0 %v2181
    %3177 = vmatpush1.bf16.msra.mxu0 %v2180
    %3178 = vmatprep.subr.bf16.mxu0 %v2185
    %3179 = vmatpush1.bf16.msra.mxu0 %v2184
    %3180 = vmatprep.subr.bf16.mxu0 %v2189
    %3181 = vmatpush1.bf16.msra.mxu0 %v2188
    %3182 = vmatprep.subr.bf16.mxu0 %v2193
    %3183 = vmatpush1.bf16.msra.mxu0 %v2192
    %3184 = vmatprep.subr.bf16.mxu0 %v2197
    %3185 = vmatpush1.bf16.msra.mxu0 %v2196
    %3186 = vmatprep.subr.bf16.mxu0 %v2201
    %3187 = vmatpush1.bf16.msra.mxu0 %v2200
    %3188 = vmatprep.subr.bf16.mxu0 %v2205
    %3189 = vmatpush1.bf16.msra.mxu0 %v2204
    %3190 = vmatprep.subr.bf16.mxu0 %v2209
    %3191 = vmatpush1.bf16.msra.mxu0 %v2208
    %3192 = vmatprep.subr.bf16.mxu0 %v2213
    %3193 = vmatpush1.bf16.msra.mxu0 %v2212
    %3194 = vmatprep.subr.bf16.mxu0 %v2217
    %3195 = vmatpush1.bf16.msra.mxu0 %v2216
    %3196 = vmatprep.subr.bf16.mxu0 %v2221
    %3197 = vmatpush1.bf16.msra.mxu0 %v2220
    %3198 = vmatprep.subr.bf16.mxu0 %v2225
    %3199 = vmatpush1.bf16.msra.mxu0 %v2224
    %3200 = vmatprep.subr.bf16.mxu0 %v2229
    %3201 = vmatpush1.bf16.msra.mxu0 %v2228
    %3202 = vmatprep.mubr.bf16.mxu0 %v583
    %3203 = vmatmul.mubr.bf16.gmra.mrb[0].mxu0 %v582
    %v3204 = vpop.f32.mrb[0].mxu0
    %v3205 = vadd.f32 %v3164, %v3204
    %v3206 = vpop.f32.mrb[0].mxu0
    %v3207 = vadd.f32 %v3166, %v3206
    %v3208 = vpop.f32.mrb[0].mxu0
    %v3209 = vpop.f32.mrb[0].mxu0
    %3210 = vdwg.mxu0
    %3211 = vmatprep.subr.bf16.mxu0 %v2233
    %3212 = vmatpush1.bf16.msra.mxu0 %v2232
    %3213 = vmatprep.subr.bf16.mxu0 %v2237
    %3214 = vmatpush1.bf16.msra.mxu0 %v2236
    %3215 = vmatprep.subr.bf16.mxu0 %v2241
    %3216 = vmatpush1.bf16.msra.mxu0 %v2240
    %3217 = vmatprep.subr.bf16.mxu0 %v2245
    %3218 = vmatpush1.bf16.msra.mxu0 %v2244
    %3219 = vmatprep.subr.bf16.mxu0 %v2249
    %3220 = vmatpush1.bf16.msra.mxu0 %v2248
    %3221 = vmatprep.subr.bf16.mxu0 %v2253
    %3222 = vmatpush1.bf16.msra.mxu0 %v2252
    %3223 = vmatprep.subr.bf16.mxu0 %v2257
    %3224 = vmatpush1.bf16.msra.mxu0 %v2256
    %3225 = vmatprep.subr.bf16.mxu0 %v2261
    %3226 = vmatpush1.bf16.msra.mxu0 %v2260
    %3227 = vmatprep.subr.bf16.mxu0 0
    %3228 = vmatpush1.bf16.msra.mxu0 0
    %3229 = vmatprep.subr.bf16.mxu0 0
    %3230 = vmatpush1.bf16.msra.mxu0 0
    %3231 = vmatprep.subr.bf16.mxu0 0
    %3232 = vmatpush1.bf16.msra.mxu0 0
    %3233 = vmatprep.subr.bf16.mxu0 0
    %3234 = vmatpush1.bf16.msra.mxu0 0
    %3235 = vmatprep.subr.bf16.mxu0 0
    %3236 = vmatpush1.bf16.msra.mxu0 0
    %3237 = vmatprep.subr.bf16.mxu0 0
    %3238 = vmatpush1.bf16.msra.mxu0 0
    %3239 = vmatprep.subr.bf16.mxu0 0
    %3240 = vmatpush1.bf16.msra.mxu0 0
    %3241 = vmatprep.subr.bf16.mxu0 0
    %3242 = vmatpush1.bf16.msra.mxu0 0
    %3243 = vmatprep.mubr.bf16.mxu0 0
    %3244 = vmatmul.mubr.bf16.gmra.mrb[0].mxu0 %v584
    %v3245 = vpop.f32.mrb[0].mxu0
    %v3246 = vadd.f32 %v3205, %v3245
    %v3247 = vpop.f32.mrb[0].mxu0
    %v3248 = vadd.f32 %v3207, %v3247
    %v3249 = vpop.f32.mrb[0].mxu0
    %v3250 = vpop.f32.mrb[0].mxu0
    %3251 = vdwg.mxu0
    %v3252 = vmax.f32 %v2959, 0.0
    %v3253 = vmax.f32 %v2961, 0.0
    %v3254 = vmax.f32 %v3246, 0.0
    %v3255 = vmax.f32 %v3248, 0.0
    %v3256 = vpack.c.bf16 %v3252, %v3252
    %v3257 = vpack.c.bf16 %v3253, %v3253
    %v3258 = vpack.c.bf16 %v3254, %v3254
    %v3259 = vpack.c.bf16 %v3255, %v3255
    %v3260 = vld [vmem:[#allocation7] sm:$0xff]
    %v3261 = vld [vmem:[#allocation7 + $0x8] sm:$0xff]
    %v3262 = vld [vmem:[#allocation7 + $0x10] sm:$0xff]
    %v3263 = vld [vmem:[#allocation7 + $0x18] sm:$0xff]
    %v3264 = vld [vmem:[#allocation7 + $0x20] sm:$0xff]
    %v3265 = vld [vmem:[#allocation7 + $0x28] sm:$0xff]
    %v3266 = vld [vmem:[#allocation7 + $0x30] sm:$0xff]
    %v3267 = vld [vmem:[#allocation7 + $0x38] sm:$0xff]
    %v3268 = vld [vmem:[#allocation7 + $0x40] sm:$0xff]
    %v3269 = vld [vmem:[#allocation7 + $0x48] sm:$0xff]
    %v3270 = vld [vmem:[#allocation7 + $0x50] sm:$0xff]
    %v3271 = vld [vmem:[#allocation7 + $0x58] sm:$0xff]
    %v3272 = vld [vmem:[#allocation7 + $0x60] sm:$0xff]
    %v3273 = vld [vmem:[#allocation7 + $0x68] sm:$0xff]
    %v3274 = vld [vmem:[#allocation7 + $0x70] sm:$0xff]
    %v3275 = vld [vmem:[#allocation7 + $0x78] sm:$0xff]
    %v3276 = vld [vmem:[#allocation7 + $0x80] sm:$0xff]
    %v3277 = vld [vmem:[#allocation7 + $0x88] sm:$0xff]
    %v3278 = vld [vmem:[#allocation7 + $0x90] sm:$0xff]
    %v3279 = vld [vmem:[#allocation7 + $0x98] sm:$0xff]
    %v3280 = vld [vmem:[#allocation7 + $0xa0] sm:$0xff]
    %v3281 = vld [vmem:[#allocation7 + $0xa8] sm:$0xff]
    %v3282 = vld [vmem:[#allocation7 + $0xb0] sm:$0xff]
    %v3283 = vld [vmem:[#allocation7 + $0xb8] sm:$0xff]
    %v3284 = vld [vmem:[#allocation7 + $0xc0] sm:$0xff]
    %v3285 = vld [vmem:[#allocation7 + $0xc8] sm:$0xff]
    %v3286 = vld [vmem:[#allocation7 + $0xd0] sm:$0xff]
    %v3287 = vld [vmem:[#allocation7 + $0xd8] sm:$0xff]
    %v3288 = vld [vmem:[#allocation7 + $0xe0] sm:$0xff]
    %v3289 = vld [vmem:[#allocation7 + $0xe8] sm:$0xff]
    %v3290 = vld [vmem:[#allocation7 + $0xf0] sm:$0xff]
    %v3291 = vld [vmem:[#allocation7 + $0xf8] sm:$0xff]
    %v3292 = vld [vmem:[#allocation7 + $0x100] sm:$0xff]
    %v3293 = vld [vmem:[#allocation7 + $0x108] sm:$0xff]
    %v3294 = vld [vmem:[#allocation7 + $0x110] sm:$0xff]
    %v3295 = vld [vmem:[#allocation7 + $0x118] sm:$0xff]
    %v3296 = vld [vmem:[#allocation7 + $0x120] sm:$0xff]
    %v3297 = vld [vmem:[#allocation7 + $0x128] sm:$0xff]
    %v3298 = vld [vmem:[#allocation7 + $0x130] sm:$0xff]
    %v3299 = vld [vmem:[#allocation7 + $0x138] sm:$0xff]
    %v3300 = vld [vmem:[#allocation7 + $0x140] sm:$0xff]
    %v3301 = vld [vmem:[#allocation7 + $0x148] sm:$0xff]
    %v3302 = vld [vmem:[#allocation7 + $0x150] sm:$0xff]
    %v3303 = vld [vmem:[#allocation7 + $0x158] sm:$0xff]
    %v3304 = vld [vmem:[#allocation7 + $0x160] sm:$0xff]
    %v3305 = vld [vmem:[#allocation7 + $0x168] sm:$0xff]
    %v3306 = vld [vmem:[#allocation7 + $0x170] sm:$0xff]
    %v3307 = vld [vmem:[#allocation7 + $0x178] sm:$0xff]
    %v3308 = vld [vmem:[#allocation7 + $0x180] sm:$0xff]
    %v3309 = vld [vmem:[#allocation7 + $0x188] sm:$0xff]
    %v3310 = vld [vmem:[#allocation7 + $0x190] sm:$0xff]
    %v3311 = vld [vmem:[#allocation7 + $0x198] sm:$0xff]
    %v3312 = vld [vmem:[#allocation7 + $0x1a0] sm:$0xff]
    %v3313 = vld [vmem:[#allocation7 + $0x1a8] sm:$0xff]
    %v3314 = vld [vmem:[#allocation7 + $0x1b0] sm:$0xff]
    %v3315 = vld [vmem:[#allocation7 + $0x1b8] sm:$0xff]
    %v3316 = vld [vmem:[#allocation7 + $0x1c0] sm:$0xff]
    %v3317 = vld [vmem:[#allocation7 + $0x1c8] sm:$0xff]
    %v3318 = vld [vmem:[#allocation7 + $0x1d0] sm:$0xff]
    %v3319 = vld [vmem:[#allocation7 + $0x1d8] sm:$0xff]
    %v3320 = vld [vmem:[#allocation7 + $0x1e0] sm:$0xff]
    %v3321 = vld [vmem:[#allocation7 + $0x1e8] sm:$0xff]
    %v3322 = vld [vmem:[#allocation7 + $0x1f0] sm:$0xff]
    %v3323 = vld [vmem:[#allocation7 + $0x1f8] sm:$0xff]
    %v3324 = vld [vmem:[#allocation8] sm:$0x3]
    %v3326 = vlaneseq
    %v3327 = vshrl.u32 %v3326, 7
    %v3328 = vsub.s32 0, %v3327
    %v3329 = vrot.slane %v3324, %v3328
    %v3330 = vlaneseq
    %v3331 = vshrl.u32 %v3330, 7
    %v3332 = vsub.s32 1, %v3331
    %v3333 = vrot.slane %v3324, %v3332
    %v3400 = vunpack.c.l.b16 %v3260
    %v3401 = vunpack.c.h.b16 %v3260
    %v3402 = vunpack.c.l.b16 %v3261
    %v3403 = vunpack.c.h.b16 %v3261
    %v3404 = vunpack.c.l.b16 %v3262
    %v3405 = vunpack.c.h.b16 %v3262
    %v3406 = vunpack.c.l.b16 %v3263
    %v3407 = vunpack.c.h.b16 %v3263
    %v3408 = vunpack.c.l.b16 %v3264
    %v3409 = vunpack.c.h.b16 %v3264
    %v3410 = vunpack.c.l.b16 %v3265
    %v3411 = vunpack.c.h.b16 %v3265
    %v3412 = vunpack.c.l.b16 %v3266
    %v3413 = vunpack.c.h.b16 %v3266
    %v3414 = vunpack.c.l.b16 %v3267
    %v3415 = vunpack.c.h.b16 %v3267
    %v3416 = vunpack.c.l.b16 %v3268
    %v3417 = vunpack.c.h.b16 %v3268
    %v3418 = vunpack.c.l.b16 %v3269
    %v3419 = vunpack.c.h.b16 %v3269
    %v3420 = vunpack.c.l.b16 %v3270
    %v3421 = vunpack.c.h.b16 %v3270
    %v3422 = vunpack.c.l.b16 %v3271
    %v3423 = vunpack.c.h.b16 %v3271
    %v3424 = vunpack.c.l.b16 %v3272
    %v3425 = vunpack.c.h.b16 %v3272
    %v3426 = vunpack.c.l.b16 %v3273
    %v3427 = vunpack.c.h.b16 %v3273
    %v3428 = vunpack.c.l.b16 %v3274
    %v3429 = vunpack.c.h.b16 %v3274
    %v3430 = vunpack.c.l.b16 %v3275
    %v3431 = vunpack.c.h.b16 %v3275
    %v3432 = vunpack.c.l.b16 %v3276
    %v3433 = vunpack.c.h.b16 %v3276
    %v3434 = vunpack.c.l.b16 %v3277
    %v3435 = vunpack.c.h.b16 %v3277
    %v3436 = vunpack.c.l.b16 %v3278
    %v3437 = vunpack.c.h.b16 %v3278
    %v3438 = vunpack.c.l.b16 %v3279
    %v3439 = vunpack.c.h.b16 %v3279
    %v3440 = vunpack.c.l.b16 %v3280
    %v3441 = vunpack.c.h.b16 %v3280
    %v3442 = vunpack.c.l.b16 %v3281
    %v3443 = vunpack.c.h.b16 %v3281
    %v3444 = vunpack.c.l.b16 %v3282
    %v3445 = vunpack.c.h.b16 %v3282
    %v3446 = vunpack.c.l.b16 %v3283
    %v3447 = vunpack.c.h.b16 %v3283
    %v3448 = vunpack.c.l.b16 %v3284
    %v3449 = vunpack.c.h.b16 %v3284
    %v3450 = vunpack.c.l.b16 %v3285
    %v3451 = vunpack.c.h.b16 %v3285
    %v3452 = vunpack.c.l.b16 %v3286
    %v3453 = vunpack.c.h.b16 %v3286
    %v3454 = vunpack.c.l.b16 %v3287
    %v3455 = vunpack.c.h.b16 %v3287
    %v3456 = vunpack.c.l.b16 %v3288
    %v3457 = vunpack.c.h.b16 %v3288
    %v3458 = vunpack.c.l.b16 %v3289
    %v3459 = vunpack.c.h.b16 %v3289
    %v3460 = vunpack.c.l.b16 %v3290
    %v3461 = vunpack.c.h.b16 %v3290
    %v3462 = vunpack.c.l.b16 %v3291
    %v3463 = vunpack.c.h.b16 %v3291
    %v3464 = vunpack.c.l.b16 %v3292
    %v3465 = vunpack.c.h.b16 %v3292
    %v3466 = vunpack.c.l.b16 %v3293
    %v3467 = vunpack.c.h.b16 %v3293
    %v3468 = vunpack.c.l.b16 %v3294
    %v3469 = vunpack.c.h.b16 %v3294
    %v3470 = vunpack.c.l.b16 %v3295
    %v3471 = vunpack.c.h.b16 %v3295
    %v3472 = vunpack.c.l.b16 %v3296
    %v3473 = vunpack.c.h.b16 %v3296
    %v3474 = vunpack.c.l.b16 %v3297
    %v3475 = vunpack.c.h.b16 %v3297
    %v3476 = vunpack.c.l.b16 %v3298
    %v3477 = vunpack.c.h.b16 %v3298
    %v3478 = vunpack.c.l.b16 %v3299
    %v3479 = vunpack.c.h.b16 %v3299
    %v3480 = vunpack.c.l.b16 %v3300
    %v3481 = vunpack.c.h.b16 %v3300
    %v3482 = vunpack.c.l.b16 %v3301
    %v3483 = vunpack.c.h.b16 %v3301
    %v3484 = vunpack.c.l.b16 %v3302
    %v3485 = vunpack.c.h.b16 %v3302
    %v3486 = vunpack.c.l.b16 %v3303
    %v3487 = vunpack.c.h.b16 %v3303
    %v3488 = vunpack.c.l.b16 %v3304
    %v3489 = vunpack.c.h.b16 %v3304
    %v3490 = vunpack.c.l.b16 %v3305
    %v3491 = vunpack.c.h.b16 %v3305
    %v3492 = vunpack.c.l.b16 %v3306
    %v3493 = vunpack.c.h.b16 %v3306
    %v3494 = vunpack.c.l.b16 %v3307
    %v3495 = vunpack.c.h.b16 %v3307
    %v3496 = vunpack.c.l.b16 %v3308
    %v3497 = vunpack.c.h.b16 %v3308
    %v3498 = vunpack.c.l.b16 %v3309
    %v3499 = vunpack.c.h.b16 %v3309
    %v3500 = vunpack.c.l.b16 %v3310
    %v3501 = vunpack.c.h.b16 %v3310
    %v3502 = vunpack.c.l.b16 %v3311
    %v3503 = vunpack.c.h.b16 %v3311
    %v3504 = vunpack.c.l.b16 %v3312
    %v3505 = vunpack.c.h.b16 %v3312
    %v3506 = vunpack.c.l.b16 %v3313
    %v3507 = vunpack.c.h.b16 %v3313
    %v3508 = vunpack.c.l.b16 %v3314
    %v3509 = vunpack.c.h.b16 %v3314
    %v3510 = vunpack.c.l.b16 %v3315
    %v3511 = vunpack.c.h.b16 %v3315
    %v3512 = vunpack.c.l.b16 %v3316
    %v3513 = vunpack.c.h.b16 %v3316
    %v3514 = vunpack.c.l.b16 %v3317
    %v3515 = vunpack.c.h.b16 %v3317
    %v3516 = vunpack.c.l.b16 %v3318
    %v3517 = vunpack.c.h.b16 %v3318
    %v3518 = vunpack.c.l.b16 %v3319
    %v3519 = vunpack.c.h.b16 %v3319
    %v3520 = vunpack.c.l.b16 %v3320
    %v3521 = vunpack.c.h.b16 %v3320
    %v3522 = vunpack.c.l.b16 %v3321
    %v3523 = vunpack.c.h.b16 %v3321
    %v3524 = vunpack.c.l.b16 %v3322
    %v3525 = vunpack.c.h.b16 %v3322
    %v3526 = vunpack.c.l.b16 %v3323
    %v3527 = vunpack.c.h.b16 %v3323
    %v3528 = vpack.c.b16 %v3402, %v3400
    %v3529 = vpack.c.b16 %v3403, %v3401
    %v3530 = vpack.c.b16 %v3406, %v3404
    %v3531 = vpack.c.b16 %v3407, %v3405
    %v3532 = vpack.c.b16 %v3410, %v3408
    %v3533 = vpack.c.b16 %v3411, %v3409
    %v3534 = vpack.c.b16 %v3414, %v3412
    %v3535 = vpack.c.b16 %v3415, %v3413
    %v3536 = vpack.c.b16 %v3418, %v3416
    %v3537 = vpack.c.b16 %v3419, %v3417
    %v3538 = vpack.c.b16 %v3422, %v3420
    %v3539 = vpack.c.b16 %v3423, %v3421
    %v3540 = vpack.c.b16 %v3426, %v3424
    %v3541 = vpack.c.b16 %v3427, %v3425
    %v3542 = vpack.c.b16 %v3430, %v3428
    %v3543 = vpack.c.b16 %v3431, %v3429
    %v3544 = vpack.c.b16 %v3434, %v3432
    %v3545 = vpack.c.b16 %v3435, %v3433
    %v3546 = vpack.c.b16 %v3438, %v3436
    %v3547 = vpack.c.b16 %v3439, %v3437
    %v3548 = vpack.c.b16 %v3442, %v3440
    %v3549 = vpack.c.b16 %v3443, %v3441
    %v3550 = vpack.c.b16 %v3446, %v3444
    %v3551 = vpack.c.b16 %v3447, %v3445
    %v3552 = vpack.c.b16 %v3450, %v3448
    %v3553 = vpack.c.b16 %v3451, %v3449
    %v3554 = vpack.c.b16 %v3454, %v3452
    %v3555 = vpack.c.b16 %v3455, %v3453
    %v3556 = vpack.c.b16 %v3458, %v3456
    %v3557 = vpack.c.b16 %v3459, %v3457
    %v3558 = vpack.c.b16 %v3462, %v3460
    %v3559 = vpack.c.b16 %v3463, %v3461
    %v3560 = vpack.c.b16 %v3466, %v3464
    %v3561 = vpack.c.b16 %v3467, %v3465
    %v3562 = vpack.c.b16 %v3470, %v3468
    %v3563 = vpack.c.b16 %v3471, %v3469
    %v3564 = vpack.c.b16 %v3474, %v3472
    %v3565 = vpack.c.b16 %v3475, %v3473
    %v3566 = vpack.c.b16 %v3478, %v3476
    %v3567 = vpack.c.b16 %v3479, %v3477
    %v3568 = vpack.c.b16 %v3482, %v3480
    %v3569 = vpack.c.b16 %v3483, %v3481
    %v3570 = vpack.c.b16 %v3486, %v3484
    %v3571 = vpack.c.b16 %v3487, %v3485
    %v3572 = vpack.c.b16 %v3490, %v3488
    %v3573 = vpack.c.b16 %v3491, %v3489
    %v3574 = vpack.c.b16 %v3494, %v3492
    %v3575 = vpack.c.b16 %v3495, %v3493
    %v3576 = vpack.c.b16 %v3498, %v3496
    %v3577 = vpack.c.b16 %v3499, %v3497
    %v3578 = vpack.c.b16 %v3502, %v3500
    %v3579 = vpack.c.b16 %v3503, %v3501
    %v3580 = vpack.c.b16 %v3506, %v3504
    %v3581 = vpack.c.b16 %v3507, %v3505
    %v3582 = vpack.c.b16 %v3510, %v3508
    %v3583 = vpack.c.b16 %v3511, %v3509
    %v3584 = vpack.c.b16 %v3514, %v3512
    %v3585 = vpack.c.b16 %v3515, %v3513
    %v3586 = vpack.c.b16 %v3518, %v3516
    %v3587 = vpack.c.b16 %v3519, %v3517
    %v3588 = vpack.c.b16 %v3522, %v3520
    %v3589 = vpack.c.b16 %v3523, %v3521
    %v3590 = vpack.c.b16 %v3526, %v3524
    %v3591 = vpack.c.b16 %v3527, %v3525
    %3656 = vmatprep.subr.bf16.mxu0 %v3529
    %3657 = vmatpush1.bf16.msra.mxu0 %v3528
    %3658 = vmatprep.subr.bf16.mxu0 %v3531
    %3659 = vmatpush1.bf16.msra.mxu0 %v3530
    %3660 = vmatprep.subr.bf16.mxu0 %v3533
    %3661 = vmatpush1.bf16.msra.mxu0 %v3532
    %3662 = vmatprep.subr.bf16.mxu0 %v3535
    %3663 = vmatpush1.bf16.msra.mxu0 %v3534
    %3664 = vmatprep.subr.bf16.mxu0 %v3537
    %3665 = vmatpush1.bf16.msra.mxu0 %v3536
    %3666 = vmatprep.subr.bf16.mxu0 %v3539
    %3667 = vmatpush1.bf16.msra.mxu0 %v3538
    %3668 = vmatprep.subr.bf16.mxu0 %v3541
    %3669 = vmatpush1.bf16.msra.mxu0 %v3540
    %3670 = vmatprep.subr.bf16.mxu0 %v3543
    %3671 = vmatpush1.bf16.msra.mxu0 %v3542
    %3672 = vmatprep.subr.bf16.mxu0 %v3545
    %3673 = vmatpush1.bf16.msra.mxu0 %v3544
    %3674 = vmatprep.subr.bf16.mxu0 %v3547
    %3675 = vmatpush1.bf16.msra.mxu0 %v3546
    %3676 = vmatprep.subr.bf16.mxu0 %v3549
    %3677 = vmatpush1.bf16.msra.mxu0 %v3548
    %3678 = vmatprep.subr.bf16.mxu0 %v3551
    %3679 = vmatpush1.bf16.msra.mxu0 %v3550
    %3680 = vmatprep.subr.bf16.mxu0 %v3553
    %3681 = vmatpush1.bf16.msra.mxu0 %v3552
    %3682 = vmatprep.subr.bf16.mxu0 %v3555
    %3683 = vmatpush1.bf16.msra.mxu0 %v3554
    %3684 = vmatprep.subr.bf16.mxu0 %v3557
    %3685 = vmatpush1.bf16.msra.mxu0 %v3556
    %3686 = vmatprep.subr.bf16.mxu0 %v3559
    %3687 = vmatpush1.bf16.msra.mxu0 %v3558
    %3688 = vmatprep.mubr.bf16.mxu0 %v3257
    %3689 = vmatmul.mubr.bf16.gmra.mrb[0].mxu0 %v3256
    %v3690 = vpop.f32.mrb[0].mxu0
    %v3691 = vadd.f32 %v3329, %v3690
    %v3692 = vpop.f32.mrb[0].mxu0
    %v3693 = vadd.f32 %v3333, %v3692
    %v3694 = vpop.f32.mrb[0].mxu0
    %v3695 = vpop.f32.mrb[0].mxu0
    %3696 = vdwg.mxu0
    %3697 = vmatprep.subr.bf16.mxu0 %v3561
    %3698 = vmatpush1.bf16.msra.mxu0 %v3560
    %3699 = vmatprep.subr.bf16.mxu0 %v3563
    %3700 = vmatpush1.bf16.msra.mxu0 %v3562
    %3701 = vmatprep.subr.bf16.mxu0 %v3565
    %3702 = vmatpush1.bf16.msra.mxu0 %v3564
    %3703 = vmatprep.subr.bf16.mxu0 %v3567
    %3704 = vmatpush1.bf16.msra.mxu0 %v3566
    %3705 = vmatprep.subr.bf16.mxu0 %v3569
    %3706 = vmatpush1.bf16.msra.mxu0 %v3568
    %3707 = vmatprep.subr.bf16.mxu0 %v3571
    %3708 = vmatpush1.bf16.msra.mxu0 %v3570
    %3709 = vmatprep.subr.bf16.mxu0 %v3573
    %3710 = vmatpush1.bf16.msra.mxu0 %v3572
    %3711 = vmatprep.subr.bf16.mxu0 %v3575
    %3712 = vmatpush1.bf16.msra.mxu0 %v3574
    %3713 = vmatprep.subr.bf16.mxu0 %v3577
    %3714 = vmatpush1.bf16.msra.mxu0 %v3576
    %3715 = vmatprep.subr.bf16.mxu0 %v3579
    %3716 = vmatpush1.bf16.msra.mxu0 %v3578
    %3717 = vmatprep.subr.bf16.mxu0 %v3581
    %3718 = vmatpush1.bf16.msra.mxu0 %v3580
    %3719 = vmatprep.subr.bf16.mxu0 %v3583
    %3720 = vmatpush1.bf16.msra.mxu0 %v3582
    %3721 = vmatprep.subr.bf16.mxu0 %v3585
    %3722 = vmatpush1.bf16.msra.mxu0 %v3584
    %3723 = vmatprep.subr.bf16.mxu0 %v3587
    %3724 = vmatpush1.bf16.msra.mxu0 %v3586
    %3725 = vmatprep.subr.bf16.mxu0 %v3589
    %3726 = vmatpush1.bf16.msra.mxu0 %v3588
    %3727 = vmatprep.subr.bf16.mxu0 %v3591
    %3728 = vmatpush1.bf16.msra.mxu0 %v3590
    %3729 = vmatprep.mubr.bf16.mxu0 %v3259
    %3730 = vmatmul.mubr.bf16.gmra.mrb[0].mxu0 %v3258
    %v3731 = vpop.f32.mrb[0].mxu0
    %v3732 = vadd.f32 %v3691, %v3731
    %v3733 = vpop.f32.mrb[0].mxu0
    %v3734 = vadd.f32 %v3693, %v3733
    %v3735 = vpop.f32.mrb[0].mxu0
    %v3736 = vpop.f32.mrb[0].mxu0
    %3737 = vdwg.mxu0
    %v3738 = vmax.f32 %v3732, 0.0
    %v3739 = vmax.f32 %v3734, 0.0
    %3740 = vst [vmem:[#allocation14] sm:$0xff] %v3738
    %3741 = vst [vmem:[#allocation14 + $0x8] sm:$0xff] %v3739
    %v3742 = vpack.c.bf16 %v3738, %v3738
    %v3743 = vpack.c.bf16 %v3739, %v3739
    %v3744 = vld [vmem:[#allocation10] sm:$0xf]
    %v3745 = vld [vmem:[#allocation10 + $0x4] sm:$0xf]
    %v3746 = vld [vmem:[#allocation10 + $0x8] sm:$0xf]
    %v3747 = vld [vmem:[#allocation10 + $0xc] sm:$0xf]
    %v3748 = vld [vmem:[#allocation10 + $0x10] sm:$0xf]
    %v3749 = vld [vmem:[#allocation10 + $0x14] sm:$0xf]
    %v3750 = vld [vmem:[#allocation10 + $0x18] sm:$0xf]
    %v3751 = vld [vmem:[#allocation10 + $0x1c] sm:$0xf]
    %v3752 = vld [vmem:[#allocation10 + $0x20] sm:$0xf]
    %v3753 = vld [vmem:[#allocation10 + $0x24] sm:$0xf]
    %v3754 = vld [vmem:[#allocation10 + $0x28] sm:$0xf]
    %v3755 = vld [vmem:[#allocation10 + $0x2c] sm:$0xf]
    %v3756 = vld [vmem:[#allocation10 + $0x30] sm:$0xf]
    %v3757 = vld [vmem:[#allocation10 + $0x34] sm:$0xf]
    %v3758 = vld [vmem:[#allocation10 + $0x38] sm:$0xf]
    %v3759 = vld [vmem:[#allocation10 + $0x3c] sm:$0xf]
    %v3760 = vld [vmem:[#allocation10 + $0x40] sm:$0xf]
    %v3761 = vld [vmem:[#allocation10 + $0x44] sm:$0xf]
    %v3762 = vld [vmem:[#allocation10 + $0x48] sm:$0xf]
    %v3763 = vld [vmem:[#allocation10 + $0x4c] sm:$0xf]
    %v3764 = vld [vmem:[#allocation10 + $0x50] sm:$0xf]
    %v3765 = vld [vmem:[#allocation10 + $0x54] sm:$0xf]
    %v3766 = vld [vmem:[#allocation10 + $0x58] sm:$0xf]
    %v3767 = vld [vmem:[#allocation10 + $0x5c] sm:$0xf]
    %v3768 = vld [vmem:[#allocation10 + $0x60] sm:$0xf]
    %v3769 = vld [vmem:[#allocation10 + $0x64] sm:$0xf]
    %v3770 = vld [vmem:[#allocation10 + $0x68] sm:$0xf]
    %v3771 = vld [vmem:[#allocation10 + $0x6c] sm:$0xf]
    %v3772 = vld [vmem:[#allocation10 + $0x70] sm:$0xf]
    %v3773 = vld [vmem:[#allocation10 + $0x74] sm:$0xf]
    %v3774 = vld [vmem:[#allocation10 + $0x78] sm:$0xf]
    %v3775 = vld [vmem:[#allocation10 + $0x7c] sm:$0xf]
    %v3776 = vld [vmem:[#allocation11] sm:$0x1]
    %v3778 = vlaneseq
    %v3779 = vshrl.u32 %v3778, 7
    %v3780 = vsub.s32 0, %v3779
    %v3781 = vrot.slane %v3776, %v3780
    %v3815 = vunpack.c.l.b16 %v3744
    %v3816 = vunpack.c.l.b16 %v3745
    %v3817 = vunpack.c.l.b16 %v3746
    %v3818 = vunpack.c.l.b16 %v3747
    %v3819 = vunpack.c.l.b16 %v3748
    %v3820 = vunpack.c.l.b16 %v3749
    %v3821 = vunpack.c.l.b16 %v3750
    %v3822 = vunpack.c.l.b16 %v3751
    %v3823 = vunpack.c.l.b16 %v3752
    %v3824 = vunpack.c.l.b16 %v3753
    %v3825 = vunpack.c.l.b16 %v3754
    %v3826 = vunpack.c.l.b16 %v3755
    %v3827 = vunpack.c.l.b16 %v3756
    %v3828 = vunpack.c.l.b16 %v3757
    %v3829 = vunpack.c.l.b16 %v3758
    %v3830 = vunpack.c.l.b16 %v3759
    %v3831 = vunpack.c.l.b16 %v3760
    %v3832 = vunpack.c.l.b16 %v3761
    %v3833 = vunpack.c.l.b16 %v3762
    %v3834 = vunpack.c.l.b16 %v3763
    %v3835 = vunpack.c.l.b16 %v3764
    %v3836 = vunpack.c.l.b16 %v3765
    %v3837 = vunpack.c.l.b16 %v3766
    %v3838 = vunpack.c.l.b16 %v3767
    %v3839 = vunpack.c.l.b16 %v3768
    %v3840 = vunpack.c.l.b16 %v3769
    %v3841 = vunpack.c.l.b16 %v3770
    %v3842 = vunpack.c.l.b16 %v3771
    %v3843 = vunpack.c.l.b16 %v3772
    %v3844 = vunpack.c.l.b16 %v3773
    %v3845 = vunpack.c.l.b16 %v3774
    %v3846 = vunpack.c.l.b16 %v3775
    %v3847 = vpack.c.b16 %v3816, %v3815
    %v3848 = vpack.c.b16 %v3818, %v3817
    %v3849 = vpack.c.b16 %v3820, %v3819
    %v3850 = vpack.c.b16 %v3822, %v3821
    %v3851 = vpack.c.b16 %v3824, %v3823
    %v3852 = vpack.c.b16 %v3826, %v3825
    %v3853 = vpack.c.b16 %v3828, %v3827
    %v3854 = vpack.c.b16 %v3830, %v3829
    %v3855 = vpack.c.b16 %v3832, %v3831
    %v3856 = vpack.c.b16 %v3834, %v3833
    %v3857 = vpack.c.b16 %v3836, %v3835
    %v3858 = vpack.c.b16 %v3838, %v3837
    %v3859 = vpack.c.b16 %v3840, %v3839
    %v3860 = vpack.c.b16 %v3842, %v3841
    %v3861 = vpack.c.b16 %v3844, %v3843
    %v3862 = vpack.c.b16 %v3846, %v3845
    %3879 = vmatprep.subr.bf16.mxu0 0
    %3880 = vmatpush1.bf16.msra.mxu0 %v3847
    %3881 = vmatprep.subr.bf16.mxu0 0
    %3882 = vmatpush1.bf16.msra.mxu0 %v3848
    %3883 = vmatprep.subr.bf16.mxu0 0
    %3884 = vmatpush1.bf16.msra.mxu0 %v3849
    %3885 = vmatprep.subr.bf16.mxu0 0
    %3886 = vmatpush1.bf16.msra.mxu0 %v3850
    %3887 = vmatprep.subr.bf16.mxu0 0
    %3888 = vmatpush1.bf16.msra.mxu0 %v3851
    %3889 = vmatprep.subr.bf16.mxu0 0
    %3890 = vmatpush1.bf16.msra.mxu0 %v3852
    %3891 = vmatprep.subr.bf16.mxu0 0
    %3892 = vmatpush1.bf16.msra.mxu0 %v3853
    %3893 = vmatprep.subr.bf16.mxu0 0
    %3894 = vmatpush1.bf16.msra.mxu0 %v3854
    %3895 = vmatprep.subr.bf16.mxu0 0
    %3896 = vmatpush1.bf16.msra.mxu0 %v3855
    %3897 = vmatprep.subr.bf16.mxu0 0
    %3898 = vmatpush1.bf16.msra.mxu0 %v3856
    %3899 = vmatprep.subr.bf16.mxu0 0
    %3900 = vmatpush1.bf16.msra.mxu0 %v3857
    %3901 = vmatprep.subr.bf16.mxu0 0
    %3902 = vmatpush1.bf16.msra.mxu0 %v3858
    %3903 = vmatprep.subr.bf16.mxu0 0
    %3904 = vmatpush1.bf16.msra.mxu0 %v3859
    %3905 = vmatprep.subr.bf16.mxu0 0
    %3906 = vmatpush1.bf16.msra.mxu0 %v3860
    %3907 = vmatprep.subr.bf16.mxu0 0
    %3908 = vmatpush1.bf16.msra.mxu0 %v3861
    %3909 = vmatprep.subr.bf16.mxu0 0
    %3910 = vmatpush1.bf16.msra.mxu0 %v3862
    %3911 = vmatprep.mubr.bf16.mxu0 %v3743
    %3912 = vmatmul.mubr.bf16.gmra.mrb[0].mxu0 %v3742
    %v3913 = vpop.f32.mrb[0].mxu0
    %v3914 = vadd.f32 %v3781, %v3913
    %v3915 = vpop.f32.mrb[0].mxu0
    %v3916 = vpop.f32.mrb[0].mxu0
    %v3917 = vpop.f32.mrb[0].mxu0
    %3918 = vdwg.mxu0
    %v3919 = vsub.f32 0.0, %v3914
    %v3920 = vmul.f32 %v3919, 1.442695
    %v3921 = vpow.pop %v3920
    %v3922 = vadd.f32 %v3921, 1.0
    %v3923 = vrcp.pop %v3922
    %3924 = vst [vmem:[#allocation13] sm:$0xff] %v3923
    // Predicated region
    $region54: #{clip_head_forward.1} parent=1 // pred_check
      _
    $region55: #{clip_head_forward.1} parent=1 // pred_check_branch
      %3926 = sbr.rel (0) target = $region57
    $region56: #{clip_head_forward.1} parent=1 // pred_region
      %s3928 = ssub.s32 128, 128
      %3929 = vsyncadd [#allocation4], %s3928
      %s3931 = sshll.u32 [#allocation13], 4
      %s3932 = int_to_ptr.vmem [resolvable:$true] %s3931
      %3934 = dma.vmem_to_hbm [thread:$0]  %s3932, 128, %s7, [#allocation4]
    $region57: #{clip_head_forward.1} parent=1 // pred_fallthru
      _
    // Predicated region
    $region58: #{clip_head_forward.1} parent=1 // pred_check
      _
    $region59: #{clip_head_forward.1} parent=1 // pred_check_branch
      %3936 = sbr.rel (0) target = $region61
    $region60: #{clip_head_forward.1} parent=1 // pred_region
      %s3938 = ssub.s32 256, 256
      %3939 = vsyncadd [#allocation15], %s3938
      %s3941 = sshll.u32 [#allocation14], 4
      %s3942 = int_to_ptr.vmem [resolvable:$true] %s3941
      %3944 = dma.vmem_to_hbm [thread:$0]  %s3942, 256, %s8, [#allocation15]
    $region61: #{clip_head_forward.1} parent=1 // pred_fallthru
      _
    // Predicated region
    $region62: #{clip_head_forward.1} parent=1 // pred_check
      _
    $region63: #{clip_head_forward.1} parent=1 // pred_check_branch
      %3946 = sbr.rel (0) target = $region65
    $region64: #{clip_head_forward.1} parent=1 // pred_region
      %3947 = dma.done [#allocation4], 128
    $region65: #{clip_head_forward.1} parent=1 // pred_fallthru
      _
    // Predicated region
    $region66: #{clip_head_forward.1} parent=1 // pred_check
      _
    $region67: #{clip_head_forward.1} parent=1 // pred_check_branch
      %3949 = sbr.rel (0) target = $region69
    $region68: #{clip_head_forward.1} parent=1 // pred_region
      %3950 = dma.done [#allocation15], 256
    $region69: #{clip_head_forward.1} parent=1 // pred_fallthru
      _
    %3951 = vsyncpa [#allocation3], 1
    %3952 = vsyncpa [#allocation6], 1
    %3953 = vsyncpa [#allocation9], 1
    %3954 = vsyncpa [#allocation12], 1
    %3955 = vsyncpa [#allocation4], 1
    %3956 = vsyncpa [#allocation15], 1

</llo_original>
